<compile_context>
chip_gen: v6e
topology: v6e:2x2x1
jax: 0.10.0
libtpu: 0.0.40
codegen_flags: <defaults>
</compile_context>

<pallas_src>
import functools

import jax
import jax.numpy as jnp
from jax.experimental import pallas as pl
from jax.experimental.pallas import tpu as pltpu

# ----------------------------- config (small, consistent with module) -----------------------------
VOCAB_SIZE = 100
MAX_SEQ = 16
BATCH = 2
SEQ = 8
DIM_MODEL = 32
NUM_HEADS = 4
DIM_HEAD = DIM_MODEL // NUM_HEADS          # 8
DIM_FFN = 64
NUM_LAYERS = 2
LN_EPS = 1e-5


# --------------------------------------- fused Pallas kernel --------------------------------------
def _gpt2_fused_kernel(
    we_ref, pe_ref,                                   # (1, S, D) word emb tile / (S, D) pos emb
    eg1_ref, eb1_ref, eg2_ref, eb2_ref,               # (1, D) embedding LayerNorm params
    ln1g_ref, ln1b_ref, ln2g_ref, ln2b_ref,           # (L, 1, D) per-layer LayerNorm params
    wqkv_ref, bqkv_ref,                               # (L, H, D, 3*Dh) bf16, (L, H, 1, 3*Dh) f32
    wo_ref, bo_ref,                                   # (L, H, Dh, D) bf16, (L, 1, D) f32
    w1_ref, b1_ref, w2_ref, b2_ref,                   # (L, D, F) bf16, (L, 1, F), (L, F, D) bf16, (L, 1, D)
    fg_ref, fb_ref,                                   # (1, D) final LayerNorm params
    last_ref, hs_ref,                                 # (1, S, D), (L, 1, S, D)
    *, seq, heads, dim_head, num_layers, eps):

    D = heads * dim_head
    inv_scale = jnp.float32(1.0 / (dim_head ** 0.5))
    bf16 = jnp.bfloat16

    def layer_norm(x, g, b):
        # Short dependency chain: both reductions (sum, sum-of-squares) issue back-to-back.
        mean = jnp.mean(x, axis=-1, keepdims=True)
        mean_sq = jnp.mean(x * x, axis=-1, keepdims=True)
        var = mean_sq - mean * mean                    # biased var (matches nn.LayerNorm)
        return (x - mean) * jax.lax.rsqrt(var + eps) * g + b

    def gelu(x):                                       # exact erf GELU (torch.nn.GELU default)
        return 0.5 * x * (1.0 + jax.lax.erf(x * jnp.float32(0.7071067811865476)))

    # Embedding module: LN(word_emb) + LN(pos_emb); dropout = identity.
    we = layer_norm(we_ref[0], eg1_ref[...], eb1_ref[...])          # (S, D) f32
    pe = layer_norm(pe_ref[...], eg2_ref[...], eb2_ref[...])        # (S, D) f32
    x = we + pe                                                     # (S, D) f32

    for l in range(num_layers):                        # static, fully unrolled (L = 2)
        # ---------------- pre-LN multi-head self-attention (head-batched) ----------------
        ln_x = layer_norm(x, ln1g_ref[l], ln1b_ref[l])              # (S, D) f32
        # Heads on the leading axis: cheap broadcast, no lane shuffles anywhere below.
        ln_b = jnp.broadcast_to(ln_x.astype(bf16)[None], (heads, seq, D))   # (H, S, D) bf16
        qkv = jnp.einsum('hsd,hde->hse', ln_b, wqkv_ref[l],
                         preferred_element_type=jnp.float32) + bqkv_ref[l]  # (H, S, 3*Dh) f32
        q = qkv[..., 0 * dim_head:1 * dim_head]                     # (H, S, Dh)
        k = qkv[..., 1 * dim_head:2 * dim_head]
        v = qkv[..., 2 * dim_head:3 * dim_head]

        # Batched scores + softmax: ONE max-reduce / exp / sum-reduce per layer.
        s = jnp.einsum('hqd,hkd->hqk', q.astype(bf16), k.astype(bf16),
                       preferred_element_type=jnp.float32) * inv_scale      # (H, S, S) f32
        s = s - jnp.max(s, axis=-1, keepdims=True)
        e = jnp.exp(s)
        p = e / jnp.sum(e, axis=-1, keepdims=True)                  # exact divide (tolerance)
        o = jnp.einsum('hqk,hkd->hqd', p.astype(bf16), v.astype(bf16),
                       preferred_element_type=jnp.float32)                  # (H, S, Dh) f32

        # Output projection folded per head into one batched dot + a single leading-axis
        # reduce:  sum_h O_h @ Wo[h*Dh:(h+1)*Dh, :]  ==  concat(heads) @ Wo  (exact).
        proj = jnp.einsum('hqd,hde->hqe', o.astype(bf16), wo_ref[l],
                          preferred_element_type=jnp.float32)               # (H, S, D) f32
        x = jnp.sum(proj, axis=0) + bo_ref[l] + x                   # out-proj bias + residual

        # ---------------- pre-LN feed-forward ----------------
        ln_x2 = layer_norm(x, ln2g_ref[l], ln2b_ref[l])
        hmid = gelu(jnp.dot(ln_x2.astype(bf16), w1_ref[l],
                            preferred_element_type=jnp.float32) + b1_ref[l])    # (S, F) f32
        ff = jnp.dot(hmid.astype(bf16), w2_ref[l],
                     preferred_element_type=jnp.float32) + b2_ref[l]            # (S, D) f32
        x = ff + x                                                  # residual
        hs_ref[l] = x[None]                                         # per-layer hidden state

    last_ref[0] = layer_norm(x, fg_ref[...], fb_ref[...])


# --------------------------------------- parameter init -------------------------------------------
def init_params(key):
    def normal(k, shape, std=0.02):
        return (std * jax.random.normal(k, shape)).astype(jnp.float32)

    keys = iter(jax.random.split(key, 8 + NUM_LAYERS * 8))
    params = {
        "wte": normal(next(keys), (VOCAB_SIZE, DIM_MODEL)),
        "wpe": normal(next(keys), (MAX_SEQ, DIM_MODEL)),
        "emb_ln1_g": jnp.ones((DIM_MODEL,), jnp.float32),
        "emb_ln1_b": jnp.zeros((DIM_MODEL,), jnp.float32),
        "emb_ln2_g": jnp.ones((DIM_MODEL,), jnp.float32),
        "emb_ln2_b": jnp.zeros((DIM_MODEL,), jnp.float32),
        "final_ln_g": jnp.ones((DIM_MODEL,), jnp.float32),
        "final_ln_b": jnp.zeros((DIM_MODEL,), jnp.float32),
        "layers": [],
    }
    for _ in range(NUM_LAYERS):
        layer = {
            "ln1_g": jnp.ones((DIM_MODEL,), jnp.float32),
            "ln1_b": jnp.zeros((DIM_MODEL,), jnp.float32),
            "ln2_g": jnp.ones((DIM_MODEL,), jnp.float32),
            "ln2_b": jnp.zeros((DIM_MODEL,), jnp.float32),
            "wq": normal(next(keys), (DIM_MODEL, DIM_MODEL)),
            "bq": jnp.zeros((DIM_MODEL,), jnp.float32),
            "wk": normal(next(keys), (DIM_MODEL, DIM_MODEL)),
            "bk": jnp.zeros((DIM_MODEL,), jnp.float32),
            "wv": normal(next(keys), (DIM_MODEL, DIM_MODEL)),
            "bv": jnp.zeros((DIM_MODEL,), jnp.float32),
            "wo": normal(next(keys), (DIM_MODEL, DIM_MODEL)),
            "bo": jnp.zeros((DIM_MODEL,), jnp.float32),
            "w1": normal(next(keys), (DIM_MODEL, DIM_FFN)),
            "b1": jnp.zeros((DIM_FFN,), jnp.float32),
            "w2": normal(next(keys), (DIM_FFN, DIM_MODEL)),
            "b2": jnp.zeros((DIM_MODEL,), jnp.float32),
        }
        params["layers"].append(layer)
        for _ in range(2):   # burn remaining keys for determinism across layer-count changes
            next(keys)
    return params


# --------------------------------------- forward pass ---------------------------------------------
def _stack(layers, name):
    return jnp.stack([lyr[name] for lyr in layers], axis=0)


def gpt2_forward(params, token_ids):
    B, S = token_ids.shape
    D, H, Dh, F = DIM_MODEL, NUM_HEADS, DIM_HEAD, DIM_FFN
    L = len(params["layers"])
    bf16 = jnp.bfloat16

    # Embedding gathers stay in plain JAX (data-dependent gather).
    word_emb = jnp.take(params["wte"], token_ids, axis=0)           # (B, S, D) f32
    pos_emb = params["wpe"][:S]                                     # (S, D) f32, shared per batch

    layers = params["layers"]
    ln1_g = _stack(layers, "ln1_g").reshape(L, 1, D)
    ln1_b = _stack(layers, "ln1_b").reshape(L, 1, D)
    ln2_g = _stack(layers, "ln2_g").reshape(L, 1, D)
    ln2_b = _stack(layers, "ln2_b").reshape(L, 1, D)

    # Head-split fused QKV weights/biases: (L, H, D, 3*Dh) / (L, H, 1, 3*Dh).
    wqkv_h = jnp.stack([
        jnp.stack([
            jnp.concatenate([lyr["wq"][:, h * Dh:(h + 1) * Dh],
                             lyr["wk"][:, h * Dh:(h + 1) * Dh],
                             lyr["wv"][:, h * Dh:(h + 1) * Dh]], axis=1)
            for h in range(H)], axis=0)
        for lyr in layers], axis=0).astype(bf16)
    bqkv_h = jnp.stack([
        jnp.stack([
            jnp.concatenate([lyr["bq"][h * Dh:(h + 1) * Dh],
                             lyr["bk"][h * Dh:(h + 1) * Dh],
                             lyr["bv"][h * Dh:(h + 1) * Dh]], axis=0)
            for h in range(H)], axis=0)
        for lyr in layers], axis=0).reshape(L, H, 1, 3 * Dh)
    # Head-split output projection: (L, H, Dh, D), wo_h[l, h] = wo[l][h*Dh:(h+1)*Dh, :].
    wo_h = jnp.stack([
        jnp.stack([lyr["wo"][h * Dh:(h + 1) * Dh, :] for h in range(H)], axis=0)
        for lyr in layers], axis=0).astype(bf16)
    bo = _stack(layers, "bo").reshape(L, 1, D)
    w1 = _stack(layers, "w1").astype(bf16)                          # (L, D, F)
    b1 = _stack(layers, "b1").reshape(L, 1, F)
    w2 = _stack(layers, "w2").astype(bf16)                          # (L, F, D)
    b2 = _stack(layers, "b2").reshape(L, 1, D)

    kernel = functools.partial(
        _gpt2_fused_kernel,
        seq=S, heads=H, dim_head=Dh, num_layers=L, eps=LN_EPS)

    def full(shape):
        return pl.BlockSpec(shape, lambda b, _n=len(shape): (0,) * _n)

    in_specs = [
        pl.BlockSpec((1, S, D), lambda b: (b, 0, 0)),               # word_emb (per batch)
        full((S, D)),                                               # pos_emb (shared)
        full((1, D)), full((1, D)), full((1, D)), full((1, D)),     # embedding LN params
        full((L, 1, D)), full((L, 1, D)), full((L, 1, D)), full((L, 1, D)),
        full((L, H, D, 3 * Dh)), full((L, H, 1, 3 * Dh)),
        full((L, H, Dh, D)), full((L, 1, D)),
        full((L, D, F)), full((L, 1, F)),
        full((L, F, D)), full((L, 1, D)),
        full((1, D)), full((1, D)),                                 # final LN params
    ]
    out_specs = (
        pl.BlockSpec((1, S, D), lambda b: (b, 0, 0)),               # last_hidden_state
        pl.BlockSpec((L, 1, S, D), lambda b: (0, b, 0, 0)),         # hidden_states
    )

    last_hidden_state, hidden_states = pl.pallas_call(
        kernel,
        grid=(B,),
        in_specs=in_specs,
        out_specs=out_specs,
        out_shape=(jax.ShapeDtypeStruct((B, S, D), jnp.float32),
                   jax.ShapeDtypeStruct((L, B, S, D), jnp.float32)),
        compiler_params=pltpu.CompilerParams(
            dimension_semantics=("parallel",),                      # batch across TCs on v7x
            vmem_limit_bytes=32 * 1024 * 1024),
    )(word_emb, pos_emb,
      params["emb_ln1_g"].reshape(1, D), params["emb_ln1_b"].reshape(1, D),
      params["emb_ln2_g"].reshape(1, D), params["emb_ln2_b"].reshape(1, D),
      ln1_g, ln1_b, ln2_g, ln2_b,
      wqkv_h, bqkv_h, wo_h, bo, w1, b1, w2, b2,
      params["final_ln_g"].reshape(1, D), params["final_ln_b"].reshape(1, D))

    return last_hidden_state, hidden_states


# ------------------------------------------- main --------------------------------------------------
if __name__ == "__main__":
    key = jax.random.PRNGKey(0)
    pkey, dkey = jax.random.split(key)
    params = init_params(pkey)
    token_ids = jax.random.randint(dkey, (BATCH, SEQ), 0, VOCAB_SIZE, dtype=jnp.int32)

    fwd = jax.jit(gpt2_forward)
    last_hidden_state, hidden_states = fwd(params, token_ids)
    jax.block_until_ready((last_hidden_state, hidden_states))

    assert last_hidden_state.shape == (BATCH, SEQ, DIM_MODEL)
    assert hidden_states.shape == (NUM_LAYERS, BATCH, SEQ, DIM_MODEL)
    print("KERNEL_OK")
</pallas_src>

<mosaic_0001>
module attributes {stable_mosaic.version = 11 : i64} {
  func.func @_gpt2_fused_kernel(%arg0: i32, %arg1: memref<1x8x32xf32, #tpu.memory_space<vmem>>, %arg2: memref<8x32xf32, #tpu.memory_space<vmem>>, %arg3: memref<1x32xf32, #tpu.memory_space<vmem>>, %arg4: memref<1x32xf32, #tpu.memory_space<vmem>>, %arg5: memref<1x32xf32, #tpu.memory_space<vmem>>, %arg6: memref<1x32xf32, #tpu.memory_space<vmem>>, %arg7: memref<2x1x32xf32, #tpu.memory_space<vmem>>, %arg8: memref<2x1x32xf32, #tpu.memory_space<vmem>>, %arg9: memref<2x1x32xf32, #tpu.memory_space<vmem>>, %arg10: memref<2x1x32xf32, #tpu.memory_space<vmem>>, %arg11: memref<2x4x32x24xbf16, #tpu.memory_space<vmem>>, %arg12: memref<2x4x1x24xf32, #tpu.memory_space<vmem>>, %arg13: memref<2x4x8x32xbf16, #tpu.memory_space<vmem>>, %arg14: memref<2x1x32xf32, #tpu.memory_space<vmem>>, %arg15: memref<2x32x64xbf16, #tpu.memory_space<vmem>>, %arg16: memref<2x1x64xf32, #tpu.memory_space<vmem>>, %arg17: memref<2x64x32xbf16, #tpu.memory_space<vmem>>, %arg18: memref<2x1x32xf32, #tpu.memory_space<vmem>>, %arg19: memref<1x32xf32, #tpu.memory_space<vmem>>, %arg20: memref<1x32xf32, #tpu.memory_space<vmem>>, %arg21: memref<1x8x32xf32, #tpu.memory_space<vmem>>, %arg22: memref<2x1x8x32xf32, #tpu.memory_space<vmem>>) attributes {dimension_semantics = [#tpu.dimension_semantics<parallel>], iteration_bounds = array<i64: 2>, scalar_prefetch = 0 : i64, scratch_operands = 0 : i64, tpu.core_type = #tpu.core_type<tc>, window_params = [{transform_indices = @transform_0, window_bounds = array<i64: 1, 8, 32>}, {pipeline_mode = #tpu.pipeline_mode<synchronous>, transform_indices = @transform_1, window_bounds = array<i64: 8, 32>}, {pipeline_mode = #tpu.pipeline_mode<synchronous>, transform_indices = @transform_2, window_bounds = array<i64: 1, 32>}, {pipeline_mode = #tpu.pipeline_mode<synchronous>, transform_indices = @transform_3, window_bounds = array<i64: 1, 32>}, {pipeline_mode = #tpu.pipeline_mode<synchronous>, transform_indices = @transform_4, window_bounds = array<i64: 1, 32>}, {pipeline_mode = #tpu.pipeline_mode<synchronous>, transform_indices = @transform_5, window_bounds = array<i64: 1, 32>}, {pipeline_mode = #tpu.pipeline_mode<synchronous>, transform_indices = @transform_6, window_bounds = array<i64: 2, 1, 32>}, {pipeline_mode = #tpu.pipeline_mode<synchronous>, transform_indices = @transform_7, window_bounds = array<i64: 2, 1, 32>}, {pipeline_mode = #tpu.pipeline_mode<synchronous>, transform_indices = @transform_8, window_bounds = array<i64: 2, 1, 32>}, {pipeline_mode = #tpu.pipeline_mode<synchronous>, transform_indices = @transform_9, window_bounds = array<i64: 2, 1, 32>}, {pipeline_mode = #tpu.pipeline_mode<synchronous>, transform_indices = @transform_10, window_bounds = array<i64: 2, 4, 32, 24>}, {pipeline_mode = #tpu.pipeline_mode<synchronous>, transform_indices = @transform_11, window_bounds = array<i64: 2, 4, 1, 24>}, {pipeline_mode = #tpu.pipeline_mode<synchronous>, transform_indices = @transform_12, window_bounds = array<i64: 2, 4, 8, 32>}, {pipeline_mode = #tpu.pipeline_mode<synchronous>, transform_indices = @transform_13, window_bounds = array<i64: 2, 1, 32>}, {pipeline_mode = #tpu.pipeline_mode<synchronous>, transform_indices = @transform_14, window_bounds = array<i64: 2, 32, 64>}, {pipeline_mode = #tpu.pipeline_mode<synchronous>, transform_indices = @transform_15, window_bounds = array<i64: 2, 1, 64>}, {pipeline_mode = #tpu.pipeline_mode<synchronous>, transform_indices = @transform_16, window_bounds = array<i64: 2, 64, 32>}, {pipeline_mode = #tpu.pipeline_mode<synchronous>, transform_indices = @transform_17, window_bounds = array<i64: 2, 1, 32>}, {pipeline_mode = #tpu.pipeline_mode<synchronous>, transform_indices = @transform_18, window_bounds = array<i64: 1, 32>}, {pipeline_mode = #tpu.pipeline_mode<synchronous>, transform_indices = @transform_19, window_bounds = array<i64: 1, 32>}, {transform_indices = @transform_20, window_bounds = array<i64: 1, 8, 32>}, {transform_indices = @transform_21, window_bounds = array<i64: 2, 1, 8, 32>}]} {
    %c0 = arith.constant 0 : index
    %c0_0 = arith.constant 0 : index
    %c0_1 = arith.constant 0 : index
    %0 = vector.load %arg1[%c0, %c0_0, %c0_1] : memref<1x8x32xf32, #tpu.memory_space<vmem>>, vector<1x8x32xf32>
    %1 = vector.shape_cast %0 : vector<1x8x32xf32> to vector<8x32xf32>
    %c0_2 = arith.constant 0 : index
    %c0_3 = arith.constant 0 : index
    %2 = vector.load %arg3[%c0_2, %c0_3] : memref<1x32xf32, #tpu.memory_space<vmem>>, vector<1x32xf32>
    %c0_4 = arith.constant 0 : index
    %c0_5 = arith.constant 0 : index
    %3 = vector.load %arg4[%c0_4, %c0_5] : memref<1x32xf32, #tpu.memory_space<vmem>>, vector<1x32xf32>
    %cst = arith.constant dense<0.000000e+00> : vector<8xf32>
    %4 = vector.multi_reduction <add>, %1, %cst [1] : vector<8x32xf32> to vector<8xf32>
    %5 = vector.shape_cast %4 : vector<8xf32> to vector<8x1xf32>
    %cst_6 = arith.constant 3.200000e+01 : f32
    %6 = vector.broadcast %cst_6 : f32 to vector<8x1xf32>
    %7 = arith.divf %5, %6 : vector<8x1xf32>
    %8 = arith.mulf %1, %1 : vector<8x32xf32>
    %cst_7 = arith.constant dense<0.000000e+00> : vector<8xf32>
    %9 = vector.multi_reduction <add>, %8, %cst_7 [1] : vector<8x32xf32> to vector<8xf32>
    %10 = vector.shape_cast %9 : vector<8xf32> to vector<8x1xf32>
    %cst_8 = arith.constant 3.200000e+01 : f32
    %11 = vector.broadcast %cst_8 : f32 to vector<8x1xf32>
    %12 = arith.divf %10, %11 : vector<8x1xf32>
    %13 = arith.mulf %7, %7 : vector<8x1xf32>
    %14 = arith.subf %12, %13 : vector<8x1xf32>
    %15 = vector.broadcast %7 : vector<8x1xf32> to vector<8x32xf32>
    %16 = arith.subf %1, %15 : vector<8x32xf32>
    %cst_9 = arith.constant 9.99999974E-6 : f32
    %17 = vector.broadcast %cst_9 : f32 to vector<8x1xf32>
    %18 = arith.addf %14, %17 : vector<8x1xf32>
    %19 = math.rsqrt %18 : vector<8x1xf32>
    %20 = vector.broadcast %19 : vector<8x1xf32> to vector<8x32xf32>
    %21 = arith.mulf %16, %20 : vector<8x32xf32>
    %22 = vector.broadcast %2 : vector<1x32xf32> to vector<8x32xf32>
    %23 = arith.mulf %21, %22 : vector<8x32xf32>
    %24 = vector.broadcast %3 : vector<1x32xf32> to vector<8x32xf32>
    %25 = arith.addf %23, %24 : vector<8x32xf32>
    %c0_10 = arith.constant 0 : index
    %c0_11 = arith.constant 0 : index
    %26 = vector.load %arg2[%c0_10, %c0_11] : memref<8x32xf32, #tpu.memory_space<vmem>>, vector<8x32xf32>
    %c0_12 = arith.constant 0 : index
    %c0_13 = arith.constant 0 : index
    %27 = vector.load %arg5[%c0_12, %c0_13] : memref<1x32xf32, #tpu.memory_space<vmem>>, vector<1x32xf32>
    %c0_14 = arith.constant 0 : index
    %c0_15 = arith.constant 0 : index
    %28 = vector.load %arg6[%c0_14, %c0_15] : memref<1x32xf32, #tpu.memory_space<vmem>>, vector<1x32xf32>
    %cst_16 = arith.constant dense<0.000000e+00> : vector<8xf32>
    %29 = vector.multi_reduction <add>, %26, %cst_16 [1] : vector<8x32xf32> to vector<8xf32>
    %30 = vector.shape_cast %29 : vector<8xf32> to vector<8x1xf32>
    %cst_17 = arith.constant 3.200000e+01 : f32
    %31 = vector.broadcast %cst_17 : f32 to vector<8x1xf32>
    %32 = arith.divf %30, %31 : vector<8x1xf32>
    %33 = arith.mulf %26, %26 : vector<8x32xf32>
    %cst_18 = arith.constant dense<0.000000e+00> : vector<8xf32>
    %34 = vector.multi_reduction <add>, %33, %cst_18 [1] : vector<8x32xf32> to vector<8xf32>
    %35 = vector.shape_cast %34 : vector<8xf32> to vector<8x1xf32>
    %cst_19 = arith.constant 3.200000e+01 : f32
    %36 = vector.broadcast %cst_19 : f32 to vector<8x1xf32>
    %37 = arith.divf %35, %36 : vector<8x1xf32>
    %38 = arith.mulf %32, %32 : vector<8x1xf32>
    %39 = arith.subf %37, %38 : vector<8x1xf32>
    %40 = vector.broadcast %32 : vector<8x1xf32> to vector<8x32xf32>
    %41 = arith.subf %26, %40 : vector<8x32xf32>
    %cst_20 = arith.constant 9.99999974E-6 : f32
    %42 = vector.broadcast %cst_20 : f32 to vector<8x1xf32>
    %43 = arith.addf %39, %42 : vector<8x1xf32>
    %44 = math.rsqrt %43 : vector<8x1xf32>
    %45 = vector.broadcast %44 : vector<8x1xf32> to vector<8x32xf32>
    %46 = arith.mulf %41, %45 : vector<8x32xf32>
    %47 = vector.broadcast %27 : vector<1x32xf32> to vector<8x32xf32>
    %48 = arith.mulf %46, %47 : vector<8x32xf32>
    %49 = vector.broadcast %28 : vector<1x32xf32> to vector<8x32xf32>
    %50 = arith.addf %48, %49 : vector<8x32xf32>
    %51 = arith.addf %25, %50 : vector<8x32xf32>
    %c0_21 = arith.constant 0 : index
    %c0_22 = arith.constant 0 : index
    %c0_23 = arith.constant 0 : index
    %52 = vector.load %arg7[%c0_21, %c0_22, %c0_23] : memref<2x1x32xf32, #tpu.memory_space<vmem>>, vector<1x1x32xf32>
    %53 = vector.shape_cast %52 : vector<1x1x32xf32> to vector<1x32xf32>
    %c0_24 = arith.constant 0 : index
    %c0_25 = arith.constant 0 : index
    %c0_26 = arith.constant 0 : index
    %54 = vector.load %arg8[%c0_24, %c0_25, %c0_26] : memref<2x1x32xf32, #tpu.memory_space<vmem>>, vector<1x1x32xf32>
    %55 = vector.shape_cast %54 : vector<1x1x32xf32> to vector<1x32xf32>
    %cst_27 = arith.constant dense<0.000000e+00> : vector<8xf32>
    %56 = vector.multi_reduction <add>, %51, %cst_27 [1] : vector<8x32xf32> to vector<8xf32>
    %57 = vector.shape_cast %56 : vector<8xf32> to vector<8x1xf32>
    %cst_28 = arith.constant 3.200000e+01 : f32
    %58 = vector.broadcast %cst_28 : f32 to vector<8x1xf32>
    %59 = arith.divf %57, %58 : vector<8x1xf32>
    %60 = arith.mulf %51, %51 : vector<8x32xf32>
    %cst_29 = arith.constant dense<0.000000e+00> : vector<8xf32>
    %61 = vector.multi_reduction <add>, %60, %cst_29 [1] : vector<8x32xf32> to vector<8xf32>
    %62 = vector.shape_cast %61 : vector<8xf32> to vector<8x1xf32>
    %cst_30 = arith.constant 3.200000e+01 : f32
    %63 = vector.broadcast %cst_30 : f32 to vector<8x1xf32>
    %64 = arith.divf %62, %63 : vector<8x1xf32>
    %65 = arith.mulf %59, %59 : vector<8x1xf32>
    %66 = arith.subf %64, %65 : vector<8x1xf32>
    %67 = vector.broadcast %59 : vector<8x1xf32> to vector<8x32xf32>
    %68 = arith.subf %51, %67 : vector<8x32xf32>
    %cst_31 = arith.constant 9.99999974E-6 : f32
    %69 = vector.broadcast %cst_31 : f32 to vector<8x1xf32>
    %70 = arith.addf %66, %69 : vector<8x1xf32>
    %71 = math.rsqrt %70 : vector<8x1xf32>
    %72 = vector.broadcast %71 : vector<8x1xf32> to vector<8x32xf32>
    %73 = arith.mulf %68, %72 : vector<8x32xf32>
    %74 = vector.broadcast %53 : vector<1x32xf32> to vector<8x32xf32>
    %75 = arith.mulf %73, %74 : vector<8x32xf32>
    %76 = vector.broadcast %55 : vector<1x32xf32> to vector<8x32xf32>
    %77 = arith.addf %75, %76 : vector<8x32xf32>
    %78 = arith.truncf %77 : vector<8x32xf32> to vector<8x32xbf16>
    %79 = vector.shape_cast %78 : vector<8x32xbf16> to vector<1x8x32xbf16>
    %80 = vector.shape_cast %79 : vector<1x8x32xbf16> to vector<1x8x32xbf16>
    %81 = vector.broadcast %80 : vector<1x8x32xbf16> to vector<4x8x32xbf16>
    %c0_32 = arith.constant 0 : index
    %c0_33 = arith.constant 0 : index
    %c0_34 = arith.constant 0 : index
    %c0_35 = arith.constant 0 : index
    %82 = vector.load %arg11[%c0_32, %c0_33, %c0_34, %c0_35] : memref<2x4x32x24xbf16, #tpu.memory_space<vmem>>, vector<1x4x32x24xbf16>
    %83 = vector.shape_cast %82 : vector<1x4x32x24xbf16> to vector<4x32x24xbf16>
    "tpu.trace_start"() <{level = 10 : i32, message = "hsd,hde->hse"}> : () -> ()
    %cst_36 = arith.constant dense<0.000000e+00> : vector<4x8x24xf32>
    %84 = tpu.matmul %81, %83, %cst_36 {dimension_numbers = #tpu.dot_dimension_numbers<[2], [1], [1], [2], [0, 0, 0, 1, 1, 2], [0], [0]>} : vector<4x8x32xbf16>, vector<4x32x24xbf16>, vector<4x8x24xf32> -> vector<4x8x24xf32>
    "tpu.trace_stop"() : () -> ()
    %c0_37 = arith.constant 0 : index
    %c0_38 = arith.constant 0 : index
    %c0_39 = arith.constant 0 : index
    %c0_40 = arith.constant 0 : index
    %85 = vector.load %arg12[%c0_37, %c0_38, %c0_39, %c0_40] : memref<2x4x1x24xf32, #tpu.memory_space<vmem>>, vector<1x4x1x24xf32>
    %86 = vector.shape_cast %85 : vector<1x4x1x24xf32> to vector<4x1x24xf32>
    %87 = vector.broadcast %86 : vector<4x1x24xf32> to vector<4x8x24xf32>
    %88 = arith.addf %84, %87 : vector<4x8x24xf32>
    %89 = vector.extract_strided_slice %88 {offsets = [0, 0, 0], sizes = [4, 8, 8], strides = [1, 1, 1]} : vector<4x8x24xf32> to vector<4x8x8xf32>
    %90 = vector.extract_strided_slice %88 {offsets = [0, 0, 8], sizes = [4, 8, 8], strides = [1, 1, 1]} : vector<4x8x24xf32> to vector<4x8x8xf32>
    %91 = vector.extract_strided_slice %88 {offsets = [0, 0, 16], sizes = [4, 8, 8], strides = [1, 1, 1]} : vector<4x8x24xf32> to vector<4x8x8xf32>
    %92 = arith.truncf %89 : vector<4x8x8xf32> to vector<4x8x8xbf16>
    %93 = arith.truncf %90 : vector<4x8x8xf32> to vector<4x8x8xbf16>
    "tpu.trace_start"() <{level = 10 : i32, message = "hqd,hkd->hqk"}> : () -> ()
    %cst_41 = arith.constant dense<0.000000e+00> : vector<4x8x8xf32>
    %94 = tpu.matmul %92, %93, %cst_41 {dimension_numbers = #tpu.dot_dimension_numbers<[2], [2], [1], [1], [0, 0, 0, 1, 1, 1], [0], [0]>} : vector<4x8x8xbf16>, vector<4x8x8xbf16>, vector<4x8x8xf32> -> vector<4x8x8xf32>
    "tpu.trace_stop"() : () -> ()
    %cst_42 = arith.constant 0.353553385 : f32
    %95 = vector.broadcast %cst_42 : f32 to vector<4x8x8xf32>
    %96 = arith.mulf %94, %95 : vector<4x8x8xf32>
    %cst_43 = arith.constant dense<0xFF800000> : vector<4x8xf32>
    %97 = vector.multi_reduction <maximumf>, %96, %cst_43 [2] : vector<4x8x8xf32> to vector<4x8xf32>
    %98 = vector.shape_cast %97 : vector<4x8xf32> to vector<4x8x1xf32>
    %99 = vector.broadcast %98 : vector<4x8x1xf32> to vector<4x8x8xf32>
    %100 = arith.subf %96, %99 : vector<4x8x8xf32>
    %101 = math.exp %100 : vector<4x8x8xf32>
    %cst_44 = arith.constant dense<0.000000e+00> : vector<4x8xf32>
    %102 = vector.multi_reduction <add>, %101, %cst_44 [2] : vector<4x8x8xf32> to vector<4x8xf32>
    %103 = vector.shape_cast %102 : vector<4x8xf32> to vector<4x8x1xf32>
    %104 = vector.broadcast %103 : vector<4x8x1xf32> to vector<4x8x8xf32>
    %105 = arith.divf %101, %104 : vector<4x8x8xf32>
    %106 = arith.truncf %105 : vector<4x8x8xf32> to vector<4x8x8xbf16>
    %107 = arith.truncf %91 : vector<4x8x8xf32> to vector<4x8x8xbf16>
    "tpu.trace_start"() <{level = 10 : i32, message = "hqk,hkd->hqd"}> : () -> ()
    %cst_45 = arith.constant dense<0.000000e+00> : vector<4x8x8xf32>
    %108 = tpu.matmul %106, %107, %cst_45 {dimension_numbers = #tpu.dot_dimension_numbers<[2], [1], [1], [2], [0, 0, 0, 1, 1, 2], [0], [0]>} : vector<4x8x8xbf16>, vector<4x8x8xbf16>, vector<4x8x8xf32> -> vector<4x8x8xf32>
    "tpu.trace_stop"() : () -> ()
    %109 = arith.truncf %108 : vector<4x8x8xf32> to vector<4x8x8xbf16>
    %c0_46 = arith.constant 0 : index
    %c0_47 = arith.constant 0 : index
    %c0_48 = arith.constant 0 : index
    %c0_49 = arith.constant 0 : index
    %110 = vector.load %arg13[%c0_46, %c0_47, %c0_48, %c0_49] : memref<2x4x8x32xbf16, #tpu.memory_space<vmem>>, vector<1x4x8x32xbf16>
    %111 = vector.shape_cast %110 : vector<1x4x8x32xbf16> to vector<4x8x32xbf16>
    "tpu.trace_start"() <{level = 10 : i32, message = "hqd,hde->hqe"}> : () -> ()
    %cst_50 = arith.constant dense<0.000000e+00> : vector<4x8x32xf32>
    %112 = tpu.matmul %109, %111, %cst_50 {dimension_numbers = #tpu.dot_dimension_numbers<[2], [1], [1], [2], [0, 0, 0, 1, 1, 2], [0], [0]>} : vector<4x8x8xbf16>, vector<4x8x32xbf16>, vector<4x8x32xf32> -> vector<4x8x32xf32>
    "tpu.trace_stop"() : () -> ()
    %cst_51 = arith.constant dense<0.000000e+00> : vector<8x32xf32>
    %113 = vector.multi_reduction <add>, %112, %cst_51 [0] : vector<4x8x32xf32> to vector<8x32xf32>
    %c0_52 = arith.constant 0 : index
    %c0_53 = arith.constant 0 : index
    %c0_54 = arith.constant 0 : index
    %114 = vector.load %arg14[%c0_52, %c0_53, %c0_54] : memref<2x1x32xf32, #tpu.memory_space<vmem>>, vector<1x1x32xf32>
    %115 = vector.shape_cast %114 : vector<1x1x32xf32> to vector<1x32xf32>
    %116 = vector.broadcast %115 : vector<1x32xf32> to vector<8x32xf32>
    %117 = arith.addf %113, %116 : vector<8x32xf32>
    %118 = arith.addf %117, %51 : vector<8x32xf32>
    %c0_55 = arith.constant 0 : index
    %c0_56 = arith.constant 0 : index
    %c0_57 = arith.constant 0 : index
    %119 = vector.load %arg9[%c0_55, %c0_56, %c0_57] : memref<2x1x32xf32, #tpu.memory_space<vmem>>, vector<1x1x32xf32>
    %120 = vector.shape_cast %119 : vector<1x1x32xf32> to vector<1x32xf32>
    %c0_58 = arith.constant 0 : index
    %c0_59 = arith.constant 0 : index
    %c0_60 = arith.constant 0 : index
    %121 = vector.load %arg10[%c0_58, %c0_59, %c0_60] : memref<2x1x32xf32, #tpu.memory_space<vmem>>, vector<1x1x32xf32>
    %122 = vector.shape_cast %121 : vector<1x1x32xf32> to vector<1x32xf32>
    %cst_61 = arith.constant dense<0.000000e+00> : vector<8xf32>
    %123 = vector.multi_reduction <add>, %118, %cst_61 [1] : vector<8x32xf32> to vector<8xf32>
    %124 = vector.shape_cast %123 : vector<8xf32> to vector<8x1xf32>
    %cst_62 = arith.constant 3.200000e+01 : f32
    %125 = vector.broadcast %cst_62 : f32 to vector<8x1xf32>
    %126 = arith.divf %124, %125 : vector<8x1xf32>
    %127 = arith.mulf %118, %118 : vector<8x32xf32>
    %cst_63 = arith.constant dense<0.000000e+00> : vector<8xf32>
    %128 = vector.multi_reduction <add>, %127, %cst_63 [1] : vector<8x32xf32> to vector<8xf32>
    %129 = vector.shape_cast %128 : vector<8xf32> to vector<8x1xf32>
    %cst_64 = arith.constant 3.200000e+01 : f32
    %130 = vector.broadcast %cst_64 : f32 to vector<8x1xf32>
    %131 = arith.divf %129, %130 : vector<8x1xf32>
    %132 = arith.mulf %126, %126 : vector<8x1xf32>
    %133 = arith.subf %131, %132 : vector<8x1xf32>
    %134 = vector.broadcast %126 : vector<8x1xf32> to vector<8x32xf32>
    %135 = arith.subf %118, %134 : vector<8x32xf32>
    %cst_65 = arith.constant 9.99999974E-6 : f32
    %136 = vector.broadcast %cst_65 : f32 to vector<8x1xf32>
    %137 = arith.addf %133, %136 : vector<8x1xf32>
    %138 = math.rsqrt %137 : vector<8x1xf32>
    %139 = vector.broadcast %138 : vector<8x1xf32> to vector<8x32xf32>
    %140 = arith.mulf %135, %139 : vector<8x32xf32>
    %141 = vector.broadcast %120 : vector<1x32xf32> to vector<8x32xf32>
    %142 = arith.mulf %140, %141 : vector<8x32xf32>
    %143 = vector.broadcast %122 : vector<1x32xf32> to vector<8x32xf32>
    %144 = arith.addf %142, %143 : vector<8x32xf32>
    %145 = arith.truncf %144 : vector<8x32xf32> to vector<8x32xbf16>
    %c0_66 = arith.constant 0 : index
    %c0_67 = arith.constant 0 : index
    %c0_68 = arith.constant 0 : index
    %146 = vector.load %arg15[%c0_66, %c0_67, %c0_68] : memref<2x32x64xbf16, #tpu.memory_space<vmem>>, vector<1x32x64xbf16>
    %147 = vector.shape_cast %146 : vector<1x32x64xbf16> to vector<32x64xbf16>
    %cst_69 = arith.constant dense<0.000000e+00> : vector<8x64xf32>
    %148 = tpu.matmul %145, %147, %cst_69 {dimension_numbers = #tpu.dot_dimension_numbers<[1], [0], [0], [1], [0, 0, 1, 1], [], []>} : vector<8x32xbf16>, vector<32x64xbf16>, vector<8x64xf32> -> vector<8x64xf32>
    %c0_70 = arith.constant 0 : index
    %c0_71 = arith.constant 0 : index
    %c0_72 = arith.constant 0 : index
    %149 = vector.load %arg16[%c0_70, %c0_71, %c0_72] : memref<2x1x64xf32, #tpu.memory_space<vmem>>, vector<1x1x64xf32>
    %150 = vector.shape_cast %149 : vector<1x1x64xf32> to vector<1x64xf32>
    %151 = vector.broadcast %150 : vector<1x64xf32> to vector<8x64xf32>
    %152 = arith.addf %148, %151 : vector<8x64xf32>
    %cst_73 = arith.constant 5.000000e-01 : f32
    %153 = vector.broadcast %cst_73 : f32 to vector<8x64xf32>
    %154 = arith.mulf %153, %152 : vector<8x64xf32>
    %cst_74 = arith.constant 0.707106769 : f32
    %155 = vector.broadcast %cst_74 : f32 to vector<8x64xf32>
    %156 = arith.mulf %152, %155 : vector<8x64xf32>
    %157 = math.erf %156 : vector<8x64xf32>
    %cst_75 = arith.constant 1.000000e+00 : f32
    %158 = vector.broadcast %cst_75 : f32 to vector<8x64xf32>
    %159 = arith.addf %158, %157 : vector<8x64xf32>
    %160 = arith.mulf %154, %159 : vector<8x64xf32>
    %161 = arith.truncf %160 : vector<8x64xf32> to vector<8x64xbf16>
    %c0_76 = arith.constant 0 : index
    %c0_77 = arith.constant 0 : index
    %c0_78 = arith.constant 0 : index
    %162 = vector.load %arg17[%c0_76, %c0_77, %c0_78] : memref<2x64x32xbf16, #tpu.memory_space<vmem>>, vector<1x64x32xbf16>
    %163 = vector.shape_cast %162 : vector<1x64x32xbf16> to vector<64x32xbf16>
    %cst_79 = arith.constant dense<0.000000e+00> : vector<8x32xf32>
    %164 = tpu.matmul %161, %163, %cst_79 {dimension_numbers = #tpu.dot_dimension_numbers<[1], [0], [0], [1], [0, 0, 1, 1], [], []>} : vector<8x64xbf16>, vector<64x32xbf16>, vector<8x32xf32> -> vector<8x32xf32>
    %c0_80 = arith.constant 0 : index
    %c0_81 = arith.constant 0 : index
    %c0_82 = arith.constant 0 : index
    %165 = vector.load %arg18[%c0_80, %c0_81, %c0_82] : memref<2x1x32xf32, #tpu.memory_space<vmem>>, vector<1x1x32xf32>
    %166 = vector.shape_cast %165 : vector<1x1x32xf32> to vector<1x32xf32>
    %167 = vector.broadcast %166 : vector<1x32xf32> to vector<8x32xf32>
    %168 = arith.addf %164, %167 : vector<8x32xf32>
    %169 = arith.addf %168, %118 : vector<8x32xf32>
    %170 = vector.shape_cast %169 : vector<8x32xf32> to vector<1x8x32xf32>
    %c0_83 = arith.constant 0 : index
    %c0_84 = arith.constant 0 : index
    %c0_85 = arith.constant 0 : index
    %c0_86 = arith.constant 0 : index
    %171 = vector.load %arg22[%c0_83, %c0_84, %c0_85, %c0_86] : memref<2x1x8x32xf32, #tpu.memory_space<vmem>>, vector<1x1x8x32xf32>
    %172 = vector.shape_cast %171 : vector<1x1x8x32xf32> to vector<1x8x32xf32>
    %173 = vector.shape_cast %170 : vector<1x8x32xf32> to vector<1x1x8x32xf32>
    tpu.vector_store %arg22[%c0_83, %c0_84, %c0_85, %c0_86], %173 {strides = array<i32>} : memref<2x1x8x32xf32, #tpu.memory_space<vmem>>, vector<1x1x8x32xf32>,
    %c1 = arith.constant 1 : index
    %c0_87 = arith.constant 0 : index
    %c0_88 = arith.constant 0 : index
    %174 = vector.load %arg7[%c1, %c0_87, %c0_88] : memref<2x1x32xf32, #tpu.memory_space<vmem>>, vector<1x1x32xf32>
    %175 = vector.shape_cast %174 : vector<1x1x32xf32> to vector<1x32xf32>
    %c1_89 = arith.constant 1 : index
    %c0_90 = arith.constant 0 : index
    %c0_91 = arith.constant 0 : index
    %176 = vector.load %arg8[%c1_89, %c0_90, %c0_91] : memref<2x1x32xf32, #tpu.memory_space<vmem>>, vector<1x1x32xf32>
    %177 = vector.shape_cast %176 : vector<1x1x32xf32> to vector<1x32xf32>
    %cst_92 = arith.constant dense<0.000000e+00> : vector<8xf32>
    %178 = vector.multi_reduction <add>, %169, %cst_92 [1] : vector<8x32xf32> to vector<8xf32>
    %179 = vector.shape_cast %178 : vector<8xf32> to vector<8x1xf32>
    %cst_93 = arith.constant 3.200000e+01 : f32
    %180 = vector.broadcast %cst_93 : f32 to vector<8x1xf32>
    %181 = arith.divf %179, %180 : vector<8x1xf32>
    %182 = arith.mulf %169, %169 : vector<8x32xf32>
    %cst_94 = arith.constant dense<0.000000e+00> : vector<8xf32>
    %183 = vector.multi_reduction <add>, %182, %cst_94 [1] : vector<8x32xf32> to vector<8xf32>
    %184 = vector.shape_cast %183 : vector<8xf32> to vector<8x1xf32>
    %cst_95 = arith.constant 3.200000e+01 : f32
    %185 = vector.broadcast %cst_95 : f32 to vector<8x1xf32>
    %186 = arith.divf %184, %185 : vector<8x1xf32>
    %187 = arith.mulf %181, %181 : vector<8x1xf32>
    %188 = arith.subf %186, %187 : vector<8x1xf32>
    %189 = vector.broadcast %181 : vector<8x1xf32> to vector<8x32xf32>
    %190 = arith.subf %169, %189 : vector<8x32xf32>
    %cst_96 = arith.constant 9.99999974E-6 : f32
    %191 = vector.broadcast %cst_96 : f32 to vector<8x1xf32>
    %192 = arith.addf %188, %191 : vector<8x1xf32>
    %193 = math.rsqrt %192 : vector<8x1xf32>
    %194 = vector.broadcast %193 : vector<8x1xf32> to vector<8x32xf32>
    %195 = arith.mulf %190, %194 : vector<8x32xf32>
    %196 = vector.broadcast %175 : vector<1x32xf32> to vector<8x32xf32>
    %197 = arith.mulf %195, %196 : vector<8x32xf32>
    %198 = vector.broadcast %177 : vector<1x32xf32> to vector<8x32xf32>
    %199 = arith.addf %197, %198 : vector<8x32xf32>
    %200 = arith.truncf %199 : vector<8x32xf32> to vector<8x32xbf16>
    %201 = vector.shape_cast %200 : vector<8x32xbf16> to vector<1x8x32xbf16>
    %202 = vector.shape_cast %201 : vector<1x8x32xbf16> to vector<1x8x32xbf16>
    %203 = vector.broadcast %202 : vector<1x8x32xbf16> to vector<4x8x32xbf16>
    %c1_97 = arith.constant 1 : index
    %c0_98 = arith.constant 0 : index
    %c0_99 = arith.constant 0 : index
    %c0_100 = arith.constant 0 : index
    %204 = vector.load %arg11[%c1_97, %c0_98, %c0_99, %c0_100] : memref<2x4x32x24xbf16, #tpu.memory_space<vmem>>, vector<1x4x32x24xbf16>
    %205 = vector.shape_cast %204 : vector<1x4x32x24xbf16> to vector<4x32x24xbf16>
    "tpu.trace_start"() <{level = 10 : i32, message = "hsd,hde->hse"}> : () -> ()
    %cst_101 = arith.constant dense<0.000000e+00> : vector<4x8x24xf32>
    %206 = tpu.matmul %203, %205, %cst_101 {dimension_numbers = #tpu.dot_dimension_numbers<[2], [1], [1], [2], [0, 0, 0, 1, 1, 2], [0], [0]>} : vector<4x8x32xbf16>, vector<4x32x24xbf16>, vector<4x8x24xf32> -> vector<4x8x24xf32>
    "tpu.trace_stop"() : () -> ()
    %c1_102 = arith.constant 1 : index
    %c0_103 = arith.constant 0 : index
    %c0_104 = arith.constant 0 : index
    %c0_105 = arith.constant 0 : index
    %207 = vector.load %arg12[%c1_102, %c0_103, %c0_104, %c0_105] : memref<2x4x1x24xf32, #tpu.memory_space<vmem>>, vector<1x4x1x24xf32>
    %208 = vector.shape_cast %207 : vector<1x4x1x24xf32> to vector<4x1x24xf32>
    %209 = vector.broadcast %208 : vector<4x1x24xf32> to vector<4x8x24xf32>
    %210 = arith.addf %206, %209 : vector<4x8x24xf32>
    %211 = vector.extract_strided_slice %210 {offsets = [0, 0, 0], sizes = [4, 8, 8], strides = [1, 1, 1]} : vector<4x8x24xf32> to vector<4x8x8xf32>
    %212 = vector.extract_strided_slice %210 {offsets = [0, 0, 8], sizes = [4, 8, 8], strides = [1, 1, 1]} : vector<4x8x24xf32> to vector<4x8x8xf32>
    %213 = vector.extract_strided_slice %210 {offsets = [0, 0, 16], sizes = [4, 8, 8], strides = [1, 1, 1]} : vector<4x8x24xf32> to vector<4x8x8xf32>
    %214 = arith.truncf %211 : vector<4x8x8xf32> to vector<4x8x8xbf16>
    %215 = arith.truncf %212 : vector<4x8x8xf32> to vector<4x8x8xbf16>
    "tpu.trace_start"() <{level = 10 : i32, message = "hqd,hkd->hqk"}> : () -> ()
    %cst_106 = arith.constant dense<0.000000e+00> : vector<4x8x8xf32>
    %216 = tpu.matmul %214, %215, %cst_106 {dimension_numbers = #tpu.dot_dimension_numbers<[2], [2], [1], [1], [0, 0, 0, 1, 1, 1], [0], [0]>} : vector<4x8x8xbf16>, vector<4x8x8xbf16>, vector<4x8x8xf32> -> vector<4x8x8xf32>
    "tpu.trace_stop"() : () -> ()
    %cst_107 = arith.constant 0.353553385 : f32
    %217 = vector.broadcast %cst_107 : f32 to vector<4x8x8xf32>
    %218 = arith.mulf %216, %217 : vector<4x8x8xf32>
    %cst_108 = arith.constant dense<0xFF800000> : vector<4x8xf32>
    %219 = vector.multi_reduction <maximumf>, %218, %cst_108 [2] : vector<4x8x8xf32> to vector<4x8xf32>
    %220 = vector.shape_cast %219 : vector<4x8xf32> to vector<4x8x1xf32>
    %221 = vector.broadcast %220 : vector<4x8x1xf32> to vector<4x8x8xf32>
    %222 = arith.subf %218, %221 : vector<4x8x8xf32>
    %223 = math.exp %222 : vector<4x8x8xf32>
    %cst_109 = arith.constant dense<0.000000e+00> : vector<4x8xf32>
    %224 = vector.multi_reduction <add>, %223, %cst_109 [2] : vector<4x8x8xf32> to vector<4x8xf32>
    %225 = vector.shape_cast %224 : vector<4x8xf32> to vector<4x8x1xf32>
    %226 = vector.broadcast %225 : vector<4x8x1xf32> to vector<4x8x8xf32>
    %227 = arith.divf %223, %226 : vector<4x8x8xf32>
    %228 = arith.truncf %227 : vector<4x8x8xf32> to vector<4x8x8xbf16>
    %229 = arith.truncf %213 : vector<4x8x8xf32> to vector<4x8x8xbf16>
    "tpu.trace_start"() <{level = 10 : i32, message = "hqk,hkd->hqd"}> : () -> ()
    %cst_110 = arith.constant dense<0.000000e+00> : vector<4x8x8xf32>
    %230 = tpu.matmul %228, %229, %cst_110 {dimension_numbers = #tpu.dot_dimension_numbers<[2], [1], [1], [2], [0, 0, 0, 1, 1, 2], [0], [0]>} : vector<4x8x8xbf16>, vector<4x8x8xbf16>, vector<4x8x8xf32> -> vector<4x8x8xf32>
    "tpu.trace_stop"() : () -> ()
    %231 = arith.truncf %230 : vector<4x8x8xf32> to vector<4x8x8xbf16>
    %c1_111 = arith.constant 1 : index
    %c0_112 = arith.constant 0 : index
    %c0_113 = arith.constant 0 : index
    %c0_114 = arith.constant 0 : index
    %232 = vector.load %arg13[%c1_111, %c0_112, %c0_113, %c0_114] : memref<2x4x8x32xbf16, #tpu.memory_space<vmem>>, vector<1x4x8x32xbf16>
    %233 = vector.shape_cast %232 : vector<1x4x8x32xbf16> to vector<4x8x32xbf16>
    "tpu.trace_start"() <{level = 10 : i32, message = "hqd,hde->hqe"}> : () -> ()
    %cst_115 = arith.constant dense<0.000000e+00> : vector<4x8x32xf32>
    %234 = tpu.matmul %231, %233, %cst_115 {dimension_numbers = #tpu.dot_dimension_numbers<[2], [1], [1], [2], [0, 0, 0, 1, 1, 2], [0], [0]>} : vector<4x8x8xbf16>, vector<4x8x32xbf16>, vector<4x8x32xf32> -> vector<4x8x32xf32>
    "tpu.trace_stop"() : () -> ()
    %cst_116 = arith.constant dense<0.000000e+00> : vector<8x32xf32>
    %235 = vector.multi_reduction <add>, %234, %cst_116 [0] : vector<4x8x32xf32> to vector<8x32xf32>
    %c1_117 = arith.constant 1 : index
    %c0_118 = arith.constant 0 : index
    %c0_119 = arith.constant 0 : index
    %236 = vector.load %arg14[%c1_117, %c0_118, %c0_119] : memref<2x1x32xf32, #tpu.memory_space<vmem>>, vector<1x1x32xf32>
    %237 = vector.shape_cast %236 : vector<1x1x32xf32> to vector<1x32xf32>
    %238 = vector.broadcast %237 : vector<1x32xf32> to vector<8x32xf32>
    %239 = arith.addf %235, %238 : vector<8x32xf32>
    %240 = arith.addf %239, %169 : vector<8x32xf32>
    %c1_120 = arith.constant 1 : index
    %c0_121 = arith.constant 0 : index
    %c0_122 = arith.constant 0 : index
    %241 = vector.load %arg9[%c1_120, %c0_121, %c0_122] : memref<2x1x32xf32, #tpu.memory_space<vmem>>, vector<1x1x32xf32>
    %242 = vector.shape_cast %241 : vector<1x1x32xf32> to vector<1x32xf32>
    %c1_123 = arith.constant 1 : index
    %c0_124 = arith.constant 0 : index
    %c0_125 = arith.constant 0 : index
    %243 = vector.load %arg10[%c1_123, %c0_124, %c0_125] : memref<2x1x32xf32, #tpu.memory_space<vmem>>, vector<1x1x32xf32>
    %244 = vector.shape_cast %243 : vector<1x1x32xf32> to vector<1x32xf32>
    %cst_126 = arith.constant dense<0.000000e+00> : vector<8xf32>
    %245 = vector.multi_reduction <add>, %240, %cst_126 [1] : vector<8x32xf32> to vector<8xf32>
    %246 = vector.shape_cast %245 : vector<8xf32> to vector<8x1xf32>
    %cst_127 = arith.constant 3.200000e+01 : f32
    %247 = vector.broadcast %cst_127 : f32 to vector<8x1xf32>
    %248 = arith.divf %246, %247 : vector<8x1xf32>
    %249 = arith.mulf %240, %240 : vector<8x32xf32>
    %cst_128 = arith.constant dense<0.000000e+00> : vector<8xf32>
    %250 = vector.multi_reduction <add>, %249, %cst_128 [1] : vector<8x32xf32> to vector<8xf32>
    %251 = vector.shape_cast %250 : vector<8xf32> to vector<8x1xf32>
    %cst_129 = arith.constant 3.200000e+01 : f32
    %252 = vector.broadcast %cst_129 : f32 to vector<8x1xf32>
    %253 = arith.divf %251, %252 : vector<8x1xf32>
    %254 = arith.mulf %248, %248 : vector<8x1xf32>
    %255 = arith.subf %253, %254 : vector<8x1xf32>
    %256 = vector.broadcast %248 : vector<8x1xf32> to vector<8x32xf32>
    %257 = arith.subf %240, %256 : vector<8x32xf32>
    %cst_130 = arith.constant 9.99999974E-6 : f32
    %258 = vector.broadcast %cst_130 : f32 to vector<8x1xf32>
    %259 = arith.addf %255, %258 : vector<8x1xf32>
    %260 = math.rsqrt %259 : vector<8x1xf32>
    %261 = vector.broadcast %260 : vector<8x1xf32> to vector<8x32xf32>
    %262 = arith.mulf %257, %261 : vector<8x32xf32>
    %263 = vector.broadcast %242 : vector<1x32xf32> to vector<8x32xf32>
    %264 = arith.mulf %262, %263 : vector<8x32xf32>
    %265 = vector.broadcast %244 : vector<1x32xf32> to vector<8x32xf32>
    %266 = arith.addf %264, %265 : vector<8x32xf32>
    %267 = arith.truncf %266 : vector<8x32xf32> to vector<8x32xbf16>
    %c1_131 = arith.constant 1 : index
    %c0_132 = arith.constant 0 : index
    %c0_133 = arith.constant 0 : index
    %268 = vector.load %arg15[%c1_131, %c0_132, %c0_133] : memref<2x32x64xbf16, #tpu.memory_space<vmem>>, vector<1x32x64xbf16>
    %269 = vector.shape_cast %268 : vector<1x32x64xbf16> to vector<32x64xbf16>
    %cst_134 = arith.constant dense<0.000000e+00> : vector<8x64xf32>
    %270 = tpu.matmul %267, %269, %cst_134 {dimension_numbers = #tpu.dot_dimension_numbers<[1], [0], [0], [1], [0, 0, 1, 1], [], []>} : vector<8x32xbf16>, vector<32x64xbf16>, vector<8x64xf32> -> vector<8x64xf32>
    %c1_135 = arith.constant 1 : index
    %c0_136 = arith.constant 0 : index
    %c0_137 = arith.constant 0 : index
    %271 = vector.load %arg16[%c1_135, %c0_136, %c0_137] : memref<2x1x64xf32, #tpu.memory_space<vmem>>, vector<1x1x64xf32>
    %272 = vector.shape_cast %271 : vector<1x1x64xf32> to vector<1x64xf32>
    %273 = vector.broadcast %272 : vector<1x64xf32> to vector<8x64xf32>
    %274 = arith.addf %270, %273 : vector<8x64xf32>
    %cst_138 = arith.constant 5.000000e-01 : f32
    %275 = vector.broadcast %cst_138 : f32 to vector<8x64xf32>
    %276 = arith.mulf %275, %274 : vector<8x64xf32>
    %cst_139 = arith.constant 0.707106769 : f32
    %277 = vector.broadcast %cst_139 : f32 to vector<8x64xf32>
    %278 = arith.mulf %274, %277 : vector<8x64xf32>
    %279 = math.erf %278 : vector<8x64xf32>
    %cst_140 = arith.constant 1.000000e+00 : f32
    %280 = vector.broadcast %cst_140 : f32 to vector<8x64xf32>
    %281 = arith.addf %280, %279 : vector<8x64xf32>
    %282 = arith.mulf %276, %281 : vector<8x64xf32>
    %283 = arith.truncf %282 : vector<8x64xf32> to vector<8x64xbf16>
    %c1_141 = arith.constant 1 : index
    %c0_142 = arith.constant 0 : index
    %c0_143 = arith.constant 0 : index
    %284 = vector.load %arg17[%c1_141, %c0_142, %c0_143] : memref<2x64x32xbf16, #tpu.memory_space<vmem>>, vector<1x64x32xbf16>
    %285 = vector.shape_cast %284 : vector<1x64x32xbf16> to vector<64x32xbf16>
    %cst_144 = arith.constant dense<0.000000e+00> : vector<8x32xf32>
    %286 = tpu.matmul %283, %285, %cst_144 {dimension_numbers = #tpu.dot_dimension_numbers<[1], [0], [0], [1], [0, 0, 1, 1], [], []>} : vector<8x64xbf16>, vector<64x32xbf16>, vector<8x32xf32> -> vector<8x32xf32>
    %c1_145 = arith.constant 1 : index
    %c0_146 = arith.constant 0 : index
    %c0_147 = arith.constant 0 : index
    %287 = vector.load %arg18[%c1_145, %c0_146, %c0_147] : memref<2x1x32xf32, #tpu.memory_space<vmem>>, vector<1x1x32xf32>
    %288 = vector.shape_cast %287 : vector<1x1x32xf32> to vector<1x32xf32>
    %289 = vector.broadcast %288 : vector<1x32xf32> to vector<8x32xf32>
    %290 = arith.addf %286, %289 : vector<8x32xf32>
    %291 = arith.addf %290, %240 : vector<8x32xf32>
    %292 = vector.shape_cast %291 : vector<8x32xf32> to vector<1x8x32xf32>
    %c1_148 = arith.constant 1 : index
    %c0_149 = arith.constant 0 : index
    %c0_150 = arith.constant 0 : index
    %c0_151 = arith.constant 0 : index
    %293 = vector.load %arg22[%c1_148, %c0_149, %c0_150, %c0_151] : memref<2x1x8x32xf32, #tpu.memory_space<vmem>>, vector<1x1x8x32xf32>
    %294 = vector.shape_cast %293 : vector<1x1x8x32xf32> to vector<1x8x32xf32>
    %295 = vector.shape_cast %292 : vector<1x8x32xf32> to vector<1x1x8x32xf32>
    tpu.vector_store %arg22[%c1_148, %c0_149, %c0_150, %c0_151], %295 {strides = array<i32>} : memref<2x1x8x32xf32, #tpu.memory_space<vmem>>, vector<1x1x8x32xf32>,
    %c0_152 = arith.constant 0 : index
    %c0_153 = arith.constant 0 : index
    %296 = vector.load %arg19[%c0_152, %c0_153] : memref<1x32xf32, #tpu.memory_space<vmem>>, vector<1x32xf32>
    %c0_154 = arith.constant 0 : index
    %c0_155 = arith.constant 0 : index
    %297 = vector.load %arg20[%c0_154, %c0_155] : memref<1x32xf32, #tpu.memory_space<vmem>>, vector<1x32xf32>
    %cst_156 = arith.constant dense<0.000000e+00> : vector<8xf32>
    %298 = vector.multi_reduction <add>, %291, %cst_156 [1] : vector<8x32xf32> to vector<8xf32>
    %299 = vector.shape_cast %298 : vector<8xf32> to vector<8x1xf32>
    %cst_157 = arith.constant 3.200000e+01 : f32
    %300 = vector.broadcast %cst_157 : f32 to vector<8x1xf32>
    %301 = arith.divf %299, %300 : vector<8x1xf32>
    %302 = arith.mulf %291, %291 : vector<8x32xf32>
    %cst_158 = arith.constant dense<0.000000e+00> : vector<8xf32>
    %303 = vector.multi_reduction <add>, %302, %cst_158 [1] : vector<8x32xf32> to vector<8xf32>
    %304 = vector.shape_cast %303 : vector<8xf32> to vector<8x1xf32>
    %cst_159 = arith.constant 3.200000e+01 : f32
    %305 = vector.broadcast %cst_159 : f32 to vector<8x1xf32>
    %306 = arith.divf %304, %305 : vector<8x1xf32>
    %307 = arith.mulf %301, %301 : vector<8x1xf32>
    %308 = arith.subf %306, %307 : vector<8x1xf32>
    %309 = vector.broadcast %301 : vector<8x1xf32> to vector<8x32xf32>
    %310 = arith.subf %291, %309 : vector<8x32xf32>
    %cst_160 = arith.constant 9.99999974E-6 : f32
    %311 = vector.broadcast %cst_160 : f32 to vector<8x1xf32>
    %312 = arith.addf %308, %311 : vector<8x1xf32>
    %313 = math.rsqrt %312 : vector<8x1xf32>
    %314 = vector.broadcast %313 : vector<8x1xf32> to vector<8x32xf32>
    %315 = arith.mulf %310, %314 : vector<8x32xf32>
    %316 = vector.broadcast %296 : vector<1x32xf32> to vector<8x32xf32>
    %317 = arith.mulf %315, %316 : vector<8x32xf32>
    %318 = vector.broadcast %297 : vector<1x32xf32> to vector<8x32xf32>
    %319 = arith.addf %317, %318 : vector<8x32xf32>
    %c0_161 = arith.constant 0 : index
    %c0_162 = arith.constant 0 : index
    %c0_163 = arith.constant 0 : index
    %320 = vector.load %arg21[%c0_161, %c0_162, %c0_163] : memref<1x8x32xf32, #tpu.memory_space<vmem>>, vector<1x8x32xf32>
    %321 = vector.shape_cast %320 : vector<1x8x32xf32> to vector<8x32xf32>
    %322 = vector.shape_cast %319 : vector<8x32xf32> to vector<1x8x32xf32>
    tpu.vector_store %arg21[%c0_161, %c0_162, %c0_163], %322 {strides = array<i32>} : memref<1x8x32xf32, #tpu.memory_space<vmem>>, vector<1x8x32xf32>,
    return
  }
  func.func @transform_0(%arg0: i32) -> (i32, i32, i32) {
    %c0_i32 = arith.constant 0 : i32
    %c0_i32_0 = arith.constant 0 : i32
    %c0_i32_1 = arith.constant 0 : i32
    return %arg0, %c0_i32, %c0_i32_0 : i32, i32, i32
  }
  func.func @transform_1(%arg0: i32) -> (i32, i32) {
    %c0_i32 = arith.constant 0 : i32
    %c0_i32_0 = arith.constant 0 : i32
    %c0_i32_1 = arith.constant 0 : i32
    return %c0_i32, %c0_i32_0 : i32, i32
  }
  func.func @transform_2(%arg0: i32) -> (i32, i32) {
    %c0_i32 = arith.constant 0 : i32
    %c0_i32_0 = arith.constant 0 : i32
    %c0_i32_1 = arith.constant 0 : i32
    return %c0_i32, %c0_i32_0 : i32, i32
  }
  func.func @transform_3(%arg0: i32) -> (i32, i32) {
    %c0_i32 = arith.constant 0 : i32
    %c0_i32_0 = arith.constant 0 : i32
    %c0_i32_1 = arith.constant 0 : i32
    return %c0_i32, %c0_i32_0 : i32, i32
  }
  func.func @transform_4(%arg0: i32) -> (i32, i32) {
    %c0_i32 = arith.constant 0 : i32
    %c0_i32_0 = arith.constant 0 : i32
    %c0_i32_1 = arith.constant 0 : i32
    return %c0_i32, %c0_i32_0 : i32, i32
  }
  func.func @transform_5(%arg0: i32) -> (i32, i32) {
    %c0_i32 = arith.constant 0 : i32
    %c0_i32_0 = arith.constant 0 : i32
    %c0_i32_1 = arith.constant 0 : i32
    return %c0_i32, %c0_i32_0 : i32, i32
  }
  func.func @transform_6(%arg0: i32) -> (i32, i32, i32) {
    %c0_i32 = arith.constant 0 : i32
    %c0_i32_0 = arith.constant 0 : i32
    %c0_i32_1 = arith.constant 0 : i32
    %c0_i32_2 = arith.constant 0 : i32
    return %c0_i32, %c0_i32_0, %c0_i32_1 : i32, i32, i32
  }
  func.func @transform_7(%arg0: i32) -> (i32, i32, i32) {
    %c0_i32 = arith.constant 0 : i32
    %c0_i32_0 = arith.constant 0 : i32
    %c0_i32_1 = arith.constant 0 : i32
    %c0_i32_2 = arith.constant 0 : i32
    return %c0_i32, %c0_i32_0, %c0_i32_1 : i32, i32, i32
  }
  func.func @transform_8(%arg0: i32) -> (i32, i32, i32) {
    %c0_i32 = arith.constant 0 : i32
    %c0_i32_0 = arith.constant 0 : i32
    %c0_i32_1 = arith.constant 0 : i32
    %c0_i32_2 = arith.constant 0 : i32
    return %c0_i32, %c0_i32_0, %c0_i32_1 : i32, i32, i32
  }
  func.func @transform_9(%arg0: i32) -> (i32, i32, i32) {
    %c0_i32 = arith.constant 0 : i32
    %c0_i32_0 = arith.constant 0 : i32
    %c0_i32_1 = arith.constant 0 : i32
    %c0_i32_2 = arith.constant 0 : i32
    return %c0_i32, %c0_i32_0, %c0_i32_1 : i32, i32, i32
  }
  func.func @transform_10(%arg0: i32) -> (i32, i32, i32, i32) {
    %c0_i32 = arith.constant 0 : i32
    %c0_i32_0 = arith.constant 0 : i32
    %c0_i32_1 = arith.constant 0 : i32
    %c0_i32_2 = arith.constant 0 : i32
    %c0_i32_3 = arith.constant 0 : i32
    return %c0_i32, %c0_i32_0, %c0_i32_1, %c0_i32_2 : i32, i32, i32, i32
  }
  func.func @transform_11(%arg0: i32) -> (i32, i32, i32, i32) {
    %c0_i32 = arith.constant 0 : i32
    %c0_i32_0 = arith.constant 0 : i32
    %c0_i32_1 = arith.constant 0 : i32
    %c0_i32_2 = arith.constant 0 : i32
    %c0_i32_3 = arith.constant 0 : i32
    return %c0_i32, %c0_i32_0, %c0_i32_1, %c0_i32_2 : i32, i32, i32, i32
  }
  func.func @transform_12(%arg0: i32) -> (i32, i32, i32, i32) {
    %c0_i32 = arith.constant 0 : i32
    %c0_i32_0 = arith.constant 0 : i32
    %c0_i32_1 = arith.constant 0 : i32
    %c0_i32_2 = arith.constant 0 : i32
    %c0_i32_3 = arith.constant 0 : i32
    return %c0_i32, %c0_i32_0, %c0_i32_1, %c0_i32_2 : i32, i32, i32, i32
  }
  func.func @transform_13(%arg0: i32) -> (i32, i32, i32) {
    %c0_i32 = arith.constant 0 : i32
    %c0_i32_0 = arith.constant 0 : i32
    %c0_i32_1 = arith.constant 0 : i32
    %c0_i32_2 = arith.constant 0 : i32
    return %c0_i32, %c0_i32_0, %c0_i32_1 : i32, i32, i32
  }
  func.func @transform_14(%arg0: i32) -> (i32, i32, i32) {
    %c0_i32 = arith.constant 0 : i32
    %c0_i32_0 = arith.constant 0 : i32
    %c0_i32_1 = arith.constant 0 : i32
    %c0_i32_2 = arith.constant 0 : i32
    return %c0_i32, %c0_i32_0, %c0_i32_1 : i32, i32, i32
  }
  func.func @transform_15(%arg0: i32) -> (i32, i32, i32) {
    %c0_i32 = arith.constant 0 : i32
    %c0_i32_0 = arith.constant 0 : i32
    %c0_i32_1 = arith.constant 0 : i32
    %c0_i32_2 = arith.constant 0 : i32
    return %c0_i32, %c0_i32_0, %c0_i32_1 : i32, i32, i32
  }
  func.func @transform_16(%arg0: i32) -> (i32, i32, i32) {
    %c0_i32 = arith.constant 0 : i32
    %c0_i32_0 = arith.constant 0 : i32
    %c0_i32_1 = arith.constant 0 : i32
    %c0_i32_2 = arith.constant 0 : i32
    return %c0_i32, %c0_i32_0, %c0_i32_1 : i32, i32, i32
  }
  func.func @transform_17(%arg0: i32) -> (i32, i32, i32) {
    %c0_i32 = arith.constant 0 : i32
    %c0_i32_0 = arith.constant 0 : i32
    %c0_i32_1 = arith.constant 0 : i32
    %c0_i32_2 = arith.constant 0 : i32
    return %c0_i32, %c0_i32_0, %c0_i32_1 : i32, i32, i32
  }
  func.func @transform_18(%arg0: i32) -> (i32, i32) {
    %c0_i32 = arith.constant 0 : i32
    %c0_i32_0 = arith.constant 0 : i32
    %c0_i32_1 = arith.constant 0 : i32
    return %c0_i32, %c0_i32_0 : i32, i32
  }
  func.func @transform_19(%arg0: i32) -> (i32, i32) {
    %c0_i32 = arith.constant 0 : i32
    %c0_i32_0 = arith.constant 0 : i32
    %c0_i32_1 = arith.constant 0 : i32
    return %c0_i32, %c0_i32_0 : i32, i32
  }
  func.func @transform_20(%arg0: i32) -> (i32, i32, i32) {
    %c0_i32 = arith.constant 0 : i32
    %c0_i32_0 = arith.constant 0 : i32
    %c0_i32_1 = arith.constant 0 : i32
    return %arg0, %c0_i32, %c0_i32_0 : i32, i32, i32
  }
  func.func @transform_21(%arg0: i32) -> (i32, i32, i32, i32) {
    %c0_i32 = arith.constant 0 : i32
    %c0_i32_0 = arith.constant 0 : i32
    %c0_i32_1 = arith.constant 0 : i32
    %c0_i32_2 = arith.constant 0 : i32
    return %c0_i32, %arg0, %c0_i32_0, %c0_i32_1 : i32, i32, i32, i32
  }
}

</mosaic_0001>

<llo_original>
// kernel: gpt2_forward.1
$region0: #{gpt2_forward.1}
  #allocation0 [shape = 'u32[]', space=smem, size = 0x4, offset = 0x4, fixed_abs, tag = 'smem constant byte address 0x4 - core index']
  #allocation1 [shape = 'u32[144,128]{1,0:T(1,128)}', space=vmem, size = 0x12000, scoped, tag = 'internal scratch']
  %s0 = inlined_call_operand.vmem [shape: f32[2,8,32], index: 0, kind: input, shape index: {}]
  %s1 = inlined_call_operand.vmem [shape: f32[8,32], index: 1, kind: input, shape index: {}]
  %s2 = inlined_call_operand.vmem [shape: f32[1,32], index: 2, kind: input, shape index: {}]
  %s3 = inlined_call_operand.vmem [shape: f32[1,32], index: 3, kind: input, shape index: {}]
  %s4 = inlined_call_operand.vmem [shape: f32[1,32], index: 4, kind: input, shape index: {}]
  %s5 = inlined_call_operand.vmem [shape: f32[1,32], index: 5, kind: input, shape index: {}]
  %s6 = inlined_call_operand.vmem [shape: f32[2,1,32], index: 6, kind: input, shape index: {}]
  %s7 = inlined_call_operand.vmem [shape: f32[2,1,32], index: 7, kind: input, shape index: {}]
  %s8 = inlined_call_operand.vmem [shape: f32[2,1,32], index: 8, kind: input, shape index: {}]
  %s9 = inlined_call_operand.vmem [shape: f32[2,1,32], index: 9, kind: input, shape index: {}]
  %s10 = inlined_call_operand.vmem [shape: bf16[2,4,32,24], index: 10, kind: input, shape index: {}]
  %s11 = inlined_call_operand.vmem [shape: f32[2,4,1,24], index: 11, kind: input, shape index: {}]
  %s12 = inlined_call_operand.vmem [shape: bf16[2,4,8,32], index: 12, kind: input, shape index: {}]
  %s13 = inlined_call_operand.vmem [shape: f32[2,1,32], index: 13, kind: input, shape index: {}]
  %s14 = inlined_call_operand.vmem [shape: bf16[2,32,64], index: 14, kind: input, shape index: {}]
  %s15 = inlined_call_operand.vmem [shape: f32[2,1,64], index: 15, kind: input, shape index: {}]
  %s16 = inlined_call_operand.vmem [shape: bf16[2,64,32], index: 16, kind: input, shape index: {}]
  %s17 = inlined_call_operand.vmem [shape: f32[2,1,32], index: 17, kind: input, shape index: {}]
  %s18 = inlined_call_operand.vmem [shape: f32[1,32], index: 18, kind: input, shape index: {}]
  %s19 = inlined_call_operand.vmem [shape: f32[1,32], index: 19, kind: input, shape index: {}]
  %s20 = inlined_call_operand.hbm [shape: f32[2,8,32], index: 20, kind: output, shape index: {0}]
  %s21 = inlined_call_operand.hbm [shape: f32[2,2,8,32], index: 21, kind: output, shape index: {1}]
  %22 = xla_tuple %s20, %s21
  %s23 = sld [smem:[#allocation0]]
  $region121: #{gpt2_forward.1} parent=0
    _
  %s25 = ssub.s32 1, %s23
  %s26 = scalar_select 0, %s25, %s23
  $region1: #{gpt2_forward.1} parent=0
    #allocation2 [shape = 'u8[8192]{0}', space=vmem, size = 0x2000, scoped, tag = 'output window, operand 0']
    #allocation3 [shape = 's32[2]{0}', space=sflag, size = 0x8, scoped, tag = 'scoped memory for gpt2_forward.1']
    #allocation4 [shape = 'u8[16384]{0}', space=vmem, size = 0x4000, scoped, tag = 'output window, operand 1']
    #allocation5 [shape = 's32[2]{0}', space=sflag, size = 0x8, scoped, tag = 'scoped memory for gpt2_forward.1']
    %27 = vsyncpa [#allocation3], 0
    %s28 = scalar_lea.sflag [#allocation3], 1
    %29 = vsyncpa %s28, 0
    %30 = vsyncpa [#allocation5], 0
    %s31 = scalar_lea.sflag [#allocation5], 1
    %32 = vsyncpa %s31, 0
    loop: start=0, step=1, limit=4
    $region2: #{gpt2_forward.1} parent=1 // loop_pre_header
      _
    $region3: #{gpt2_forward.1} parent=1 // loop_header
      %s34 = sphi 0, %s38
      %p35 = scmp.ge.s32.totalorder %s34, 4
      %s44 = sphi 0, %s46
      %s47 = sphi 0, %s44
      %s48 = sphi 0, %s47
      %s64 = sphi 0, %s48
      %s68 = sphi 0, %s68
      %s70 = sphi 0, %s68
      %s71 = sphi 0, %s70
      %s85 = sphi 0, %s71
      %s89 = sphi 0, %s89
      %s91 = sphi 0, %s89
      %s92 = sphi 0, %s91
      %s106 = sphi 0, %s92
      %s110 = sphi 0, %s110
      %s112 = sphi 0, %s110
      %s113 = sphi 0, %s112
      %s127 = sphi 0, %s113
      %s131 = sphi 0, %s131
      %s133 = sphi 0, %s131
      %s134 = sphi 0, %s133
      %s148 = sphi 0, %s134
      %s152 = sphi 0, %s152
      %s154 = sphi 0, %s152
      %s155 = sphi 0, %s154
      %s169 = sphi 0, %s155
      %s173 = sphi 0, %s173
      %s175 = sphi 0, %s173
      %s176 = sphi 0, %s175
      %s190 = sphi 0, %s176
      %s194 = sphi 0, %s194
      %s196 = sphi 0, %s194
      %s197 = sphi 0, %s196
      %s211 = sphi 0, %s197
      %s215 = sphi 0, %s215
      %s217 = sphi 0, %s215
      %s218 = sphi 0, %s217
      %s232 = sphi 0, %s218
      %s236 = sphi 0, %s236
      %s238 = sphi 0, %s236
      %s239 = sphi 0, %s238
      %s253 = sphi 0, %s239
      %s257 = sphi 0, %s257
      %s259 = sphi 0, %s257
      %s260 = sphi 0, %s259
      %s274 = sphi 0, %s260
      %s278 = sphi 0, %s278
      %s280 = sphi 0, %s278
      %s281 = sphi 0, %s280
      %s295 = sphi 0, %s281
      %s299 = sphi 0, %s299
      %s301 = sphi 0, %s299
      %s302 = sphi 0, %s301
      %s316 = sphi 0, %s302
      %s320 = sphi 0, %s320
      %s322 = sphi 0, %s320
      %s323 = sphi 0, %s322
      %s337 = sphi 0, %s323
      %s341 = sphi 0, %s341
      %s343 = sphi 0, %s341
      %s344 = sphi 0, %s343
      %s358 = sphi 0, %s344
      %s362 = sphi 0, %s362
      %s364 = sphi 0, %s362
      %s365 = sphi 0, %s364
      %s379 = sphi 0, %s365
      %s383 = sphi 0, %s383
      %s385 = sphi 0, %s383
      %s386 = sphi 0, %s385
      %s400 = sphi 0, %s386
      %s404 = sphi 0, %s404
      %s406 = sphi 0, %s404
      %s407 = sphi 0, %s406
      %s421 = sphi 0, %s407
      %s425 = sphi 0, %s425
      %s427 = sphi 0, %s425
      %s428 = sphi 0, %s427
      %s442 = sphi 0, %s428
      %s446 = sphi 0, %s446
      %s448 = sphi 0, %s446
      %s449 = sphi 0, %s448
      %s463 = sphi 0, %s449
      %s469 = sphi 0, %s471
      %s472 = sphi 0, %s469
      %s473 = sphi 0, %s472
      %s489 = sphi 0, %s473
      %s495 = sphi 0, %s497
      %s498 = sphi 0, %s495
      %s499 = sphi 0, %s498
      %s515 = sphi 0, %s499
    $region4: #{gpt2_forward.1} parent=1 // loop_header_branch
      %37 = sbr.rel (%p35) target = $region8
    $region5: #{gpt2_forward.1} parent=1 // loop_body
      %s39 = ssub.s32 %s34, 1
      %s40 = ssub.s32 %s34, 2
      %s41 = sadd.s32 %s34, 1
      %s42 = ssub.s32 %s34, %s41
      %p43 = scmp.eq.s32.totalorder %s42, 0
      %s45 = sadd.s32 %s44, 1
      %s46 = scalar_select %p43, %s44, %s45
      %p49 = pneg %p43
      %p50 = scmp.eq.s32.totalorder %s34, 1
      %p51 = por %p49, %p50
      %p52 = scmp.ne.s32.totalorder %s44, %s47
      %p53 = scmp.eq.s32.totalorder %s34, 0
      %p54 = por %p52, %p53
      %p55 = scmp.ne.s32.totalorder %s44, %s47
      %p56 = scmp.eq.s32.totalorder %s39, 1
      %p57 = por %p55, %p56
      %p58 = scmp.ne.s32.totalorder %s47, %s48
      %p59 = scmp.eq.s32.totalorder %s39, 0
      %p60 = por %p58, %p59
      %p61 = scmp.ne.s32.totalorder %s47, %s48
      %p62 = scmp.eq.s32.totalorder %s40, 1
      %p63 = por %p61, %p62
      %p65 = scmp.ne.s32.totalorder %s48, %s64
      %p66 = scmp.eq.s32.totalorder %s40, 0
      %p67 = por %p65, %p66
      %s69 = sadd.s32 %s68, 1
      %p72 = scmp.eq.s32.totalorder %s34, 1
      %p73 = scmp.ne.s32.totalorder %s68, %s70
      %p74 = scmp.eq.s32.totalorder %s34, 0
      %p75 = por %p73, %p74
      %p76 = scmp.ne.s32.totalorder %s68, %s70
      %p77 = scmp.eq.s32.totalorder %s39, 1
      %p78 = por %p76, %p77
      %p79 = scmp.ne.s32.totalorder %s70, %s71
      %p80 = scmp.eq.s32.totalorder %s39, 0
      %p81 = por %p79, %p80
      %p82 = scmp.ne.s32.totalorder %s70, %s71
      %p83 = scmp.eq.s32.totalorder %s40, 1
      %p84 = por %p82, %p83
      %p86 = scmp.ne.s32.totalorder %s71, %s85
      %p87 = scmp.eq.s32.totalorder %s40, 0
      %p88 = por %p86, %p87
      %s90 = sadd.s32 %s89, 1
      %p93 = scmp.eq.s32.totalorder %s34, 1
      %p94 = scmp.ne.s32.totalorder %s89, %s91
      %p95 = scmp.eq.s32.totalorder %s34, 0
      %p96 = por %p94, %p95
      %p97 = scmp.ne.s32.totalorder %s89, %s91
      %p98 = scmp.eq.s32.totalorder %s39, 1
      %p99 = por %p97, %p98
      %p100 = scmp.ne.s32.totalorder %s91, %s92
      %p101 = scmp.eq.s32.totalorder %s39, 0
      %p102 = por %p100, %p101
      %p103 = scmp.ne.s32.totalorder %s91, %s92
      %p104 = scmp.eq.s32.totalorder %s40, 1
      %p105 = por %p103, %p104
      %p107 = scmp.ne.s32.totalorder %s92, %s106
      %p108 = scmp.eq.s32.totalorder %s40, 0
      %p109 = por %p107, %p108
      %s111 = sadd.s32 %s110, 1
      %p114 = scmp.eq.s32.totalorder %s34, 1
      %p115 = scmp.ne.s32.totalorder %s110, %s112
      %p116 = scmp.eq.s32.totalorder %s34, 0
      %p117 = por %p115, %p116
      %p118 = scmp.ne.s32.totalorder %s110, %s112
      %p119 = scmp.eq.s32.totalorder %s39, 1
      %p120 = por %p118, %p119
      %p121 = scmp.ne.s32.totalorder %s112, %s113
      %p122 = scmp.eq.s32.totalorder %s39, 0
      %p123 = por %p121, %p122
      %p124 = scmp.ne.s32.totalorder %s112, %s113
      %p125 = scmp.eq.s32.totalorder %s40, 1
      %p126 = por %p124, %p125
      %p128 = scmp.ne.s32.totalorder %s113, %s127
      %p129 = scmp.eq.s32.totalorder %s40, 0
      %p130 = por %p128, %p129
      %s132 = sadd.s32 %s131, 1
      %p135 = scmp.eq.s32.totalorder %s34, 1
      %p136 = scmp.ne.s32.totalorder %s131, %s133
      %p137 = scmp.eq.s32.totalorder %s34, 0
      %p138 = por %p136, %p137
      %p139 = scmp.ne.s32.totalorder %s131, %s133
      %p140 = scmp.eq.s32.totalorder %s39, 1
      %p141 = por %p139, %p140
      %p142 = scmp.ne.s32.totalorder %s133, %s134
      %p143 = scmp.eq.s32.totalorder %s39, 0
      %p144 = por %p142, %p143
      %p145 = scmp.ne.s32.totalorder %s133, %s134
      %p146 = scmp.eq.s32.totalorder %s40, 1
      %p147 = por %p145, %p146
      %p149 = scmp.ne.s32.totalorder %s134, %s148
      %p150 = scmp.eq.s32.totalorder %s40, 0
      %p151 = por %p149, %p150
      %s153 = sadd.s32 %s152, 1
      %p156 = scmp.eq.s32.totalorder %s34, 1
      %p157 = scmp.ne.s32.totalorder %s152, %s154
      %p158 = scmp.eq.s32.totalorder %s34, 0
      %p159 = por %p157, %p158
      %p160 = scmp.ne.s32.totalorder %s152, %s154
      %p161 = scmp.eq.s32.totalorder %s39, 1
      %p162 = por %p160, %p161
      %p163 = scmp.ne.s32.totalorder %s154, %s155
      %p164 = scmp.eq.s32.totalorder %s39, 0
      %p165 = por %p163, %p164
      %p166 = scmp.ne.s32.totalorder %s154, %s155
      %p167 = scmp.eq.s32.totalorder %s40, 1
      %p168 = por %p166, %p167
      %p170 = scmp.ne.s32.totalorder %s155, %s169
      %p171 = scmp.eq.s32.totalorder %s40, 0
      %p172 = por %p170, %p171
      %s174 = sadd.s32 %s173, 1
      %p177 = scmp.eq.s32.totalorder %s34, 1
      %p178 = scmp.ne.s32.totalorder %s173, %s175
      %p179 = scmp.eq.s32.totalorder %s34, 0
      %p180 = por %p178, %p179
      %p181 = scmp.ne.s32.totalorder %s173, %s175
      %p182 = scmp.eq.s32.totalorder %s39, 1
      %p183 = por %p181, %p182
      %p184 = scmp.ne.s32.totalorder %s175, %s176
      %p185 = scmp.eq.s32.totalorder %s39, 0
      %p186 = por %p184, %p185
      %p187 = scmp.ne.s32.totalorder %s175, %s176
      %p188 = scmp.eq.s32.totalorder %s40, 1
      %p189 = por %p187, %p188
      %p191 = scmp.ne.s32.totalorder %s176, %s190
      %p192 = scmp.eq.s32.totalorder %s40, 0
      %p193 = por %p191, %p192
      %s195 = sadd.s32 %s194, 1
      %p198 = scmp.eq.s32.totalorder %s34, 1
      %p199 = scmp.ne.s32.totalorder %s194, %s196
      %p200 = scmp.eq.s32.totalorder %s34, 0
      %p201 = por %p199, %p200
      %p202 = scmp.ne.s32.totalorder %s194, %s196
      %p203 = scmp.eq.s32.totalorder %s39, 1
      %p204 = por %p202, %p203
      %p205 = scmp.ne.s32.totalorder %s196, %s197
      %p206 = scmp.eq.s32.totalorder %s39, 0
      %p207 = por %p205, %p206
      %p208 = scmp.ne.s32.totalorder %s196, %s197
      %p209 = scmp.eq.s32.totalorder %s40, 1
      %p210 = por %p208, %p209
      %p212 = scmp.ne.s32.totalorder %s197, %s211
      %p213 = scmp.eq.s32.totalorder %s40, 0
      %p214 = por %p212, %p213
      %s216 = sadd.s32 %s215, 1
      %p219 = scmp.eq.s32.totalorder %s34, 1
      %p220 = scmp.ne.s32.totalorder %s215, %s217
      %p221 = scmp.eq.s32.totalorder %s34, 0
      %p222 = por %p220, %p221
      %p223 = scmp.ne.s32.totalorder %s215, %s217
      %p224 = scmp.eq.s32.totalorder %s39, 1
      %p225 = por %p223, %p224
      %p226 = scmp.ne.s32.totalorder %s217, %s218
      %p227 = scmp.eq.s32.totalorder %s39, 0
      %p228 = por %p226, %p227
      %p229 = scmp.ne.s32.totalorder %s217, %s218
      %p230 = scmp.eq.s32.totalorder %s40, 1
      %p231 = por %p229, %p230
      %p233 = scmp.ne.s32.totalorder %s218, %s232
      %p234 = scmp.eq.s32.totalorder %s40, 0
      %p235 = por %p233, %p234
      %s237 = sadd.s32 %s236, 1
      %p240 = scmp.eq.s32.totalorder %s34, 1
      %p241 = scmp.ne.s32.totalorder %s236, %s238
      %p242 = scmp.eq.s32.totalorder %s34, 0
      %p243 = por %p241, %p242
      %p244 = scmp.ne.s32.totalorder %s236, %s238
      %p245 = scmp.eq.s32.totalorder %s39, 1
      %p246 = por %p244, %p245
      %p247 = scmp.ne.s32.totalorder %s238, %s239
      %p248 = scmp.eq.s32.totalorder %s39, 0
      %p249 = por %p247, %p248
      %p250 = scmp.ne.s32.totalorder %s238, %s239
      %p251 = scmp.eq.s32.totalorder %s40, 1
      %p252 = por %p250, %p251
      %p254 = scmp.ne.s32.totalorder %s239, %s253
      %p255 = scmp.eq.s32.totalorder %s40, 0
      %p256 = por %p254, %p255
      %s258 = sadd.s32 %s257, 1
      %p261 = scmp.eq.s32.totalorder %s34, 1
      %p262 = scmp.ne.s32.totalorder %s257, %s259
      %p263 = scmp.eq.s32.totalorder %s34, 0
      %p264 = por %p262, %p263
      %p265 = scmp.ne.s32.totalorder %s257, %s259
      %p266 = scmp.eq.s32.totalorder %s39, 1
      %p267 = por %p265, %p266
      %p268 = scmp.ne.s32.totalorder %s259, %s260
      %p269 = scmp.eq.s32.totalorder %s39, 0
      %p270 = por %p268, %p269
      %p271 = scmp.ne.s32.totalorder %s259, %s260
      %p272 = scmp.eq.s32.totalorder %s40, 1
      %p273 = por %p271, %p272
      %p275 = scmp.ne.s32.totalorder %s260, %s274
      %p276 = scmp.eq.s32.totalorder %s40, 0
      %p277 = por %p275, %p276
      %s279 = sadd.s32 %s278, 1
      %p282 = scmp.eq.s32.totalorder %s34, 1
      %p283 = scmp.ne.s32.totalorder %s278, %s280
      %p284 = scmp.eq.s32.totalorder %s34, 0
      %p285 = por %p283, %p284
      %p286 = scmp.ne.s32.totalorder %s278, %s280
      %p287 = scmp.eq.s32.totalorder %s39, 1
      %p288 = por %p286, %p287
      %p289 = scmp.ne.s32.totalorder %s280, %s281
      %p290 = scmp.eq.s32.totalorder %s39, 0
      %p291 = por %p289, %p290
      %p292 = scmp.ne.s32.totalorder %s280, %s281
      %p293 = scmp.eq.s32.totalorder %s40, 1
      %p294 = por %p292, %p293
      %p296 = scmp.ne.s32.totalorder %s281, %s295
      %p297 = scmp.eq.s32.totalorder %s40, 0
      %p298 = por %p296, %p297
      %s300 = sadd.s32 %s299, 1
      %p303 = scmp.eq.s32.totalorder %s34, 1
      %p304 = scmp.ne.s32.totalorder %s299, %s301
      %p305 = scmp.eq.s32.totalorder %s34, 0
      %p306 = por %p304, %p305
      %p307 = scmp.ne.s32.totalorder %s299, %s301
      %p308 = scmp.eq.s32.totalorder %s39, 1
      %p309 = por %p307, %p308
      %p310 = scmp.ne.s32.totalorder %s301, %s302
      %p311 = scmp.eq.s32.totalorder %s39, 0
      %p312 = por %p310, %p311
      %p313 = scmp.ne.s32.totalorder %s301, %s302
      %p314 = scmp.eq.s32.totalorder %s40, 1
      %p315 = por %p313, %p314
      %p317 = scmp.ne.s32.totalorder %s302, %s316
      %p318 = scmp.eq.s32.totalorder %s40, 0
      %p319 = por %p317, %p318
      %s321 = sadd.s32 %s320, 1
      %p324 = scmp.eq.s32.totalorder %s34, 1
      %p325 = scmp.ne.s32.totalorder %s320, %s322
      %p326 = scmp.eq.s32.totalorder %s34, 0
      %p327 = por %p325, %p326
      %p328 = scmp.ne.s32.totalorder %s320, %s322
      %p329 = scmp.eq.s32.totalorder %s39, 1
      %p330 = por %p328, %p329
      %p331 = scmp.ne.s32.totalorder %s322, %s323
      %p332 = scmp.eq.s32.totalorder %s39, 0
      %p333 = por %p331, %p332
      %p334 = scmp.ne.s32.totalorder %s322, %s323
      %p335 = scmp.eq.s32.totalorder %s40, 1
      %p336 = por %p334, %p335
      %p338 = scmp.ne.s32.totalorder %s323, %s337
      %p339 = scmp.eq.s32.totalorder %s40, 0
      %p340 = por %p338, %p339
      %s342 = sadd.s32 %s341, 1
      %p345 = scmp.eq.s32.totalorder %s34, 1
      %p346 = scmp.ne.s32.totalorder %s341, %s343
      %p347 = scmp.eq.s32.totalorder %s34, 0
      %p348 = por %p346, %p347
      %p349 = scmp.ne.s32.totalorder %s341, %s343
      %p350 = scmp.eq.s32.totalorder %s39, 1
      %p351 = por %p349, %p350
      %p352 = scmp.ne.s32.totalorder %s343, %s344
      %p353 = scmp.eq.s32.totalorder %s39, 0
      %p354 = por %p352, %p353
      %p355 = scmp.ne.s32.totalorder %s343, %s344
      %p356 = scmp.eq.s32.totalorder %s40, 1
      %p357 = por %p355, %p356
      %p359 = scmp.ne.s32.totalorder %s344, %s358
      %p360 = scmp.eq.s32.totalorder %s40, 0
      %p361 = por %p359, %p360
      %s363 = sadd.s32 %s362, 1
      %p366 = scmp.eq.s32.totalorder %s34, 1
      %p367 = scmp.ne.s32.totalorder %s362, %s364
      %p368 = scmp.eq.s32.totalorder %s34, 0
      %p369 = por %p367, %p368
      %p370 = scmp.ne.s32.totalorder %s362, %s364
      %p371 = scmp.eq.s32.totalorder %s39, 1
      %p372 = por %p370, %p371
      %p373 = scmp.ne.s32.totalorder %s364, %s365
      %p374 = scmp.eq.s32.totalorder %s39, 0
      %p375 = por %p373, %p374
      %p376 = scmp.ne.s32.totalorder %s364, %s365
      %p377 = scmp.eq.s32.totalorder %s40, 1
      %p378 = por %p376, %p377
      %p380 = scmp.ne.s32.totalorder %s365, %s379
      %p381 = scmp.eq.s32.totalorder %s40, 0
      %p382 = por %p380, %p381
      %s384 = sadd.s32 %s383, 1
      %p387 = scmp.eq.s32.totalorder %s34, 1
      %p388 = scmp.ne.s32.totalorder %s383, %s385
      %p389 = scmp.eq.s32.totalorder %s34, 0
      %p390 = por %p388, %p389
      %p391 = scmp.ne.s32.totalorder %s383, %s385
      %p392 = scmp.eq.s32.totalorder %s39, 1
      %p393 = por %p391, %p392
      %p394 = scmp.ne.s32.totalorder %s385, %s386
      %p395 = scmp.eq.s32.totalorder %s39, 0
      %p396 = por %p394, %p395
      %p397 = scmp.ne.s32.totalorder %s385, %s386
      %p398 = scmp.eq.s32.totalorder %s40, 1
      %p399 = por %p397, %p398
      %p401 = scmp.ne.s32.totalorder %s386, %s400
      %p402 = scmp.eq.s32.totalorder %s40, 0
      %p403 = por %p401, %p402
      %s405 = sadd.s32 %s404, 1
      %p408 = scmp.eq.s32.totalorder %s34, 1
      %p409 = scmp.ne.s32.totalorder %s404, %s406
      %p410 = scmp.eq.s32.totalorder %s34, 0
      %p411 = por %p409, %p410
      %p412 = scmp.ne.s32.totalorder %s404, %s406
      %p413 = scmp.eq.s32.totalorder %s39, 1
      %p414 = por %p412, %p413
      %p415 = scmp.ne.s32.totalorder %s406, %s407
      %p416 = scmp.eq.s32.totalorder %s39, 0
      %p417 = por %p415, %p416
      %p418 = scmp.ne.s32.totalorder %s406, %s407
      %p419 = scmp.eq.s32.totalorder %s40, 1
      %p420 = por %p418, %p419
      %p422 = scmp.ne.s32.totalorder %s407, %s421
      %p423 = scmp.eq.s32.totalorder %s40, 0
      %p424 = por %p422, %p423
      %s426 = sadd.s32 %s425, 1
      %p429 = scmp.eq.s32.totalorder %s34, 1
      %p430 = scmp.ne.s32.totalorder %s425, %s427
      %p431 = scmp.eq.s32.totalorder %s34, 0
      %p432 = por %p430, %p431
      %p433 = scmp.ne.s32.totalorder %s425, %s427
      %p434 = scmp.eq.s32.totalorder %s39, 1
      %p435 = por %p433, %p434
      %p436 = scmp.ne.s32.totalorder %s427, %s428
      %p437 = scmp.eq.s32.totalorder %s39, 0
      %p438 = por %p436, %p437
      %p439 = scmp.ne.s32.totalorder %s427, %s428
      %p440 = scmp.eq.s32.totalorder %s40, 1
      %p441 = por %p439, %p440
      %p443 = scmp.ne.s32.totalorder %s428, %s442
      %p444 = scmp.eq.s32.totalorder %s40, 0
      %p445 = por %p443, %p444
      %s447 = sadd.s32 %s446, 1
      %p450 = scmp.eq.s32.totalorder %s34, 1
      %p451 = scmp.ne.s32.totalorder %s446, %s448
      %p452 = scmp.eq.s32.totalorder %s34, 0
      %p453 = por %p451, %p452
      %p454 = scmp.ne.s32.totalorder %s446, %s448
      %p455 = scmp.eq.s32.totalorder %s39, 1
      %p456 = por %p454, %p455
      %p457 = scmp.ne.s32.totalorder %s448, %s449
      %p458 = scmp.eq.s32.totalorder %s39, 0
      %p459 = por %p457, %p458
      %p460 = scmp.ne.s32.totalorder %s448, %s449
      %p461 = scmp.eq.s32.totalorder %s40, 1
      %p462 = por %p460, %p461
      %p464 = scmp.ne.s32.totalorder %s449, %s463
      %p465 = scmp.eq.s32.totalorder %s40, 0
      %p466 = por %p464, %p465
      %s467 = ssub.s32 %s34, %s41
      %p468 = scmp.eq.s32.totalorder %s467, 0
      %s470 = sadd.s32 %s469, 1
      %s471 = scalar_select %p468, %s469, %s470
      %p474 = pneg %p468
      %p475 = scmp.eq.s32.totalorder %s34, 1
      %p476 = por %p474, %p475
      %p477 = scmp.ne.s32.totalorder %s469, %s472
      %p478 = scmp.eq.s32.totalorder %s34, 0
      %p479 = por %p477, %p478
      %p480 = scmp.ne.s32.totalorder %s469, %s472
      %p481 = scmp.eq.s32.totalorder %s39, 1
      %p482 = por %p480, %p481
      %p483 = scmp.ne.s32.totalorder %s472, %s473
      %p484 = scmp.eq.s32.totalorder %s39, 0
      %p485 = por %p483, %p484
      %p486 = scmp.ne.s32.totalorder %s472, %s473
      %p487 = scmp.eq.s32.totalorder %s40, 1
      %p488 = por %p486, %p487
      %p490 = scmp.ne.s32.totalorder %s473, %s489
      %p491 = scmp.eq.s32.totalorder %s40, 0
      %p492 = por %p490, %p491
      %s493 = ssub.s32 %s34, %s41
      %p494 = scmp.eq.s32.totalorder %s493, 0
      %s496 = sadd.s32 %s495, 1
      %s497 = scalar_select %p494, %s495, %s496
      %p500 = pneg %p494
      %p501 = scmp.eq.s32.totalorder %s34, 1
      %p502 = por %p500, %p501
      %p503 = scmp.ne.s32.totalorder %s495, %s498
      %p504 = scmp.eq.s32.totalorder %s34, 0
      %p505 = por %p503, %p504
      %p506 = scmp.ne.s32.totalorder %s495, %s498
      %p507 = scmp.eq.s32.totalorder %s39, 1
      %p508 = por %p506, %p507
      %p509 = scmp.ne.s32.totalorder %s498, %s499
      %p510 = scmp.eq.s32.totalorder %s39, 0
      %p511 = por %p509, %p510
      %p512 = scmp.ne.s32.totalorder %s498, %s499
      %p513 = scmp.eq.s32.totalorder %s40, 1
      %p514 = por %p512, %p513
      %p516 = scmp.ne.s32.totalorder %s499, %s515
      %p517 = scmp.eq.s32.totalorder %s40, 0
      %p518 = por %p516, %p517
      %p519 = scmp.le.s32.totalorder 1, %s34
      %p520 = scmp.lt.s32.totalorder %s34, 3
      %p521 = pnand %p519, %p520
      %p522 = pneg %p521
      // Predicated region
      $region9: #{gpt2_forward.1} parent=5 // pred_check
        _
      $region10: #{gpt2_forward.1} parent=5 // pred_check_branch
        %524 = sbr.rel (%p521) target = $region12
      $region11: #{gpt2_forward.1} parent=5 // pred_region
        %s525 = ssub.s32 %s34, 1
        // Predicated region
        $region13: #{gpt2_forward.1} parent=11 // pred_check
          %p526 = pneg %p81
        $region14: #{gpt2_forward.1} parent=11 // pred_check_branch
          %528 = sbr.rel (%p526) target = $region16
        $region15: #{gpt2_forward.1} parent=11 // pred_region
          _
        $region16: #{gpt2_forward.1} parent=11 // pred_fallthru
          _
        // Predicated region
        $region17: #{gpt2_forward.1} parent=11 // pred_check
          %p529 = pneg %p102
        $region18: #{gpt2_forward.1} parent=11 // pred_check_branch
          %531 = sbr.rel (%p529) target = $region20
        $region19: #{gpt2_forward.1} parent=11 // pred_region
          _
        $region20: #{gpt2_forward.1} parent=11 // pred_fallthru
          _
        // Predicated region
        $region21: #{gpt2_forward.1} parent=11 // pred_check
          %p532 = pneg %p123
        $region22: #{gpt2_forward.1} parent=11 // pred_check_branch
          %534 = sbr.rel (%p532) target = $region24
        $region23: #{gpt2_forward.1} parent=11 // pred_region
          _
        $region24: #{gpt2_forward.1} parent=11 // pred_fallthru
          _
        // Predicated region
        $region25: #{gpt2_forward.1} parent=11 // pred_check
          %p535 = pneg %p144
        $region26: #{gpt2_forward.1} parent=11 // pred_check_branch
          %537 = sbr.rel (%p535) target = $region28
        $region27: #{gpt2_forward.1} parent=11 // pred_region
          _
        $region28: #{gpt2_forward.1} parent=11 // pred_fallthru
          _
        // Predicated region
        $region29: #{gpt2_forward.1} parent=11 // pred_check
          %p538 = pneg %p165
        $region30: #{gpt2_forward.1} parent=11 // pred_check_branch
          %540 = sbr.rel (%p538) target = $region32
        $region31: #{gpt2_forward.1} parent=11 // pred_region
          _
        $region32: #{gpt2_forward.1} parent=11 // pred_fallthru
          _
        // Predicated region
        $region33: #{gpt2_forward.1} parent=11 // pred_check
          %p541 = pneg %p186
        $region34: #{gpt2_forward.1} parent=11 // pred_check_branch
          %543 = sbr.rel (%p541) target = $region36
        $region35: #{gpt2_forward.1} parent=11 // pred_region
          _
        $region36: #{gpt2_forward.1} parent=11 // pred_fallthru
          _
        // Predicated region
        $region37: #{gpt2_forward.1} parent=11 // pred_check
          %p544 = pneg %p207
        $region38: #{gpt2_forward.1} parent=11 // pred_check_branch
          %546 = sbr.rel (%p544) target = $region40
        $region39: #{gpt2_forward.1} parent=11 // pred_region
          _
        $region40: #{gpt2_forward.1} parent=11 // pred_fallthru
          _
        // Predicated region
        $region41: #{gpt2_forward.1} parent=11 // pred_check
          %p547 = pneg %p228
        $region42: #{gpt2_forward.1} parent=11 // pred_check_branch
          %549 = sbr.rel (%p547) target = $region44
        $region43: #{gpt2_forward.1} parent=11 // pred_region
          _
        $region44: #{gpt2_forward.1} parent=11 // pred_fallthru
          _
        // Predicated region
        $region45: #{gpt2_forward.1} parent=11 // pred_check
          %p550 = pneg %p249
        $region46: #{gpt2_forward.1} parent=11 // pred_check_branch
          %552 = sbr.rel (%p550) target = $region48
        $region47: #{gpt2_forward.1} parent=11 // pred_region
          _
        $region48: #{gpt2_forward.1} parent=11 // pred_fallthru
          _
        // Predicated region
        $region49: #{gpt2_forward.1} parent=11 // pred_check
          %p553 = pneg %p270
        $region50: #{gpt2_forward.1} parent=11 // pred_check_branch
          %555 = sbr.rel (%p553) target = $region52
        $region51: #{gpt2_forward.1} parent=11 // pred_region
          _
        $region52: #{gpt2_forward.1} parent=11 // pred_fallthru
          _
        // Predicated region
        $region53: #{gpt2_forward.1} parent=11 // pred_check
          %p556 = pneg %p291
        $region54: #{gpt2_forward.1} parent=11 // pred_check_branch
          %558 = sbr.rel (%p556) target = $region56
        $region55: #{gpt2_forward.1} parent=11 // pred_region
          _
        $region56: #{gpt2_forward.1} parent=11 // pred_fallthru
          _
        // Predicated region
        $region57: #{gpt2_forward.1} parent=11 // pred_check
          %p559 = pneg %p312
        $region58: #{gpt2_forward.1} parent=11 // pred_check_branch
          %561 = sbr.rel (%p559) target = $region60
        $region59: #{gpt2_forward.1} parent=11 // pred_region
          _
        $region60: #{gpt2_forward.1} parent=11 // pred_fallthru
          _
        // Predicated region
        $region61: #{gpt2_forward.1} parent=11 // pred_check
          %p562 = pneg %p333
        $region62: #{gpt2_forward.1} parent=11 // pred_check_branch
          %564 = sbr.rel (%p562) target = $region64
        $region63: #{gpt2_forward.1} parent=11 // pred_region
          _
        $region64: #{gpt2_forward.1} parent=11 // pred_fallthru
          _
        // Predicated region
        $region65: #{gpt2_forward.1} parent=11 // pred_check
          %p565 = pneg %p354
        $region66: #{gpt2_forward.1} parent=11 // pred_check_branch
          %567 = sbr.rel (%p565) target = $region68
        $region67: #{gpt2_forward.1} parent=11 // pred_region
          _
        $region68: #{gpt2_forward.1} parent=11 // pred_fallthru
          _
        // Predicated region
        $region69: #{gpt2_forward.1} parent=11 // pred_check
          %p568 = pneg %p375
        $region70: #{gpt2_forward.1} parent=11 // pred_check_branch
          %570 = sbr.rel (%p568) target = $region72
        $region71: #{gpt2_forward.1} parent=11 // pred_region
          _
        $region72: #{gpt2_forward.1} parent=11 // pred_fallthru
          _
        // Predicated region
        $region73: #{gpt2_forward.1} parent=11 // pred_check
          %p571 = pneg %p396
        $region74: #{gpt2_forward.1} parent=11 // pred_check_branch
          %573 = sbr.rel (%p571) target = $region76
        $region75: #{gpt2_forward.1} parent=11 // pred_region
          _
        $region76: #{gpt2_forward.1} parent=11 // pred_fallthru
          _
        // Predicated region
        $region77: #{gpt2_forward.1} parent=11 // pred_check
          %p574 = pneg %p417
        $region78: #{gpt2_forward.1} parent=11 // pred_check_branch
          %576 = sbr.rel (%p574) target = $region80
        $region79: #{gpt2_forward.1} parent=11 // pred_region
          _
        $region80: #{gpt2_forward.1} parent=11 // pred_fallthru
          _
        // Predicated region
        $region81: #{gpt2_forward.1} parent=11 // pred_check
          %p577 = pneg %p438
        $region82: #{gpt2_forward.1} parent=11 // pred_check_branch
          %579 = sbr.rel (%p577) target = $region84
        $region83: #{gpt2_forward.1} parent=11 // pred_region
          _
        $region84: #{gpt2_forward.1} parent=11 // pred_fallthru
          _
        // Predicated region
        $region85: #{gpt2_forward.1} parent=11 // pred_check
          %p580 = pneg %p459
        $region86: #{gpt2_forward.1} parent=11 // pred_check_branch
          %582 = sbr.rel (%p580) target = $region88
        $region87: #{gpt2_forward.1} parent=11 // pred_region
          _
        $region88: #{gpt2_forward.1} parent=11 // pred_fallthru
          _
      $region12: #{gpt2_forward.1} parent=5 // pred_fallthru
        _
      %p583 = scmp.lt.s32.totalorder %s34, 2
      // Predicated region
      $region89: #{gpt2_forward.1} parent=5 // pred_check
        %p584 = pneg %p583
      $region90: #{gpt2_forward.1} parent=5 // pred_check_branch
        %586 = sbr.rel (%p584) target = $region92
      $region91: #{gpt2_forward.1} parent=5 // pred_region
        // Predicated region
        $region93: #{gpt2_forward.1} parent=91 // pred_check
          %p587 = pneg %p54
        $region94: #{gpt2_forward.1} parent=91 // pred_check_branch
          %589 = sbr.rel (%p587) target = $region96
        $region95: #{gpt2_forward.1} parent=91 // pred_region
          %p590 = scmp.lt.s32.totalorder %s34, 1
          %s591 = scalar_select %p590, %s34, 1
          %s592 = smul.addr %s591, 8
          %s593 = scalar_lea.vmem %s0, %s592
        $region96: #{gpt2_forward.1} parent=91 // pred_fallthru
          _
      $region92: #{gpt2_forward.1} parent=5 // pred_fallthru
        _
      %p594 = scmp.le.s32.totalorder 1, %s34
      %p595 = scmp.lt.s32.totalorder %s34, 3
      %p596 = pnand %p594, %p595
      %p597 = pneg %p596
      // Predicated region
      $region97: #{gpt2_forward.1} parent=5 // pred_check
        _
      $region98: #{gpt2_forward.1} parent=5 // pred_check_branch
        %599 = sbr.rel (%p596) target = $region100
      $region99: #{gpt2_forward.1} parent=5 // pred_region
        %s600 = ssub.s32 %s34, 1
        %p601 = scmp.lt.s32.totalorder %s39, 1
        %s602 = scalar_select %p601, %s39, 1
        %s603 = smul.addr %s602, 8
        %s604 = scalar_lea.vmem %s0, %s603
        %p605 = pneg %p60
        %p606 = pneg %p57
        %p607 = pneg %p81
        %p608 = pneg %p78
        %p609 = pneg %p102
        %p610 = pneg %p99
        %p611 = pneg %p123
        %p612 = pneg %p120
        %p613 = pneg %p144
        %p614 = pneg %p141
        %p615 = pneg %p165
        %p616 = pneg %p162
        %p617 = pneg %p186
        %p618 = pneg %p183
        %p619 = pneg %p207
        %p620 = pneg %p204
        %p621 = pneg %p228
        %p622 = pneg %p225
        %p623 = pneg %p249
        %p624 = pneg %p246
        %p625 = pneg %p270
        %p626 = pneg %p267
        %p627 = pneg %p291
        %p628 = pneg %p288
        %p629 = pneg %p312
        %p630 = pneg %p309
        %p631 = pneg %p333
        %p632 = pneg %p330
        %p633 = pneg %p354
        %p634 = pneg %p351
        %p635 = pneg %p375
        %p636 = pneg %p372
        %p637 = pneg %p396
        %p638 = pneg %p393
        %p639 = pneg %p417
        %p640 = pneg %p414
        %p641 = pneg %p438
        %p642 = pneg %p435
        %p643 = pneg %p459
        %p644 = pneg %p456
        %p645 = pneg %p485
        %p646 = pneg %p482
        %s647 = sand.u32 %s472, 1
        %s648 = scalar_lea.sflag [#allocation3], %s647
        %s649 = sand.u32 %s472, 1
        %s650 = smul.addr %s649, 8
        %s651 = scalar_lea.vmem [#allocation2], %s650
        %p652 = pneg %p511
        %p653 = pneg %p508
        %s654 = sand.u32 %s498, 1
        %s655 = scalar_lea.sflag [#allocation5], %s654
        %s656 = sand.u32 %s498, 1
        %s657 = smul.addr %s656, 16
        %s658 = scalar_lea.vmem [#allocation4], %s657
        %p659 = scmp.lt.s32.totalorder %s39, 1
        %s660 = scalar_select %p659, %s39, 1
        %s661 = smul.addr %s660, 8
        %s662 = scalar_lea.vmem %s0, %s661
        %v664 = vld [vmem:[%s662] sm:$0xff]
        %v665 = vld [vmem:[%s2] sm:$0x1]
        %v666 = vld [vmem:[%s3] sm:$0x1]
        %vm667 = vcmask 261120
        %v668 = vsel %vm667, %v664, 0.0
        %669 = vadd.xlane.f32.xlu0 %v668
        %v670 = vpop.xlane.xlu0 %669
        %v671 = vrcp.pop 32.0
        %v672 = vmul.f32 %v670, %v671
        %v673 = vmul.f32 %v664, %v664
        %v674 = vsel %vm667, %v673, 0.0
        %675 = vadd.xlane.f32.xlu0 %v674
        %v676 = vpop.xlane.xlu0 %675
        %v677 = vmul.f32 %v676, %v671
        %v678 = vmul.f32 %v672, %v672
        %v679 = vsub.f32 %v677, %v678
        %v680 = vsub.f32 %v664, %v672
        %v681 = vadd.f32 %v679, 1e-05
        %v682 = vrsqrt.pop %v681
        %v683 = vmul.f32 %v680, %v682
        %v685 = vlaneseq
        %v686 = vshrl.u32 %v685, 7
        %v687 = vsub.s32 0, %v686
        %v688 = vrot.slane %v665, %v687
        %v690 = vmul.f32 %v683, %v688
        %v692 = vlaneseq
        %v693 = vshrl.u32 %v692, 7
        %v694 = vsub.s32 0, %v693
        %v695 = vrot.slane %v666, %v694
        %v697 = vadd.f32 %v690, %v695
        %v698 = vld [vmem:[%s1] sm:$0xff]
        %v699 = vld [vmem:[%s4] sm:$0x1]
        %v700 = vld [vmem:[%s5] sm:$0x1]
        %v701 = vsel %vm667, %v698, 0.0
        %702 = vadd.xlane.f32.xlu0 %v701
        %v703 = vpop.xlane.xlu0 %702
        %v704 = vmul.f32 %v703, %v671
        %v705 = vmul.f32 %v698, %v698
        %v706 = vsel %vm667, %v705, 0.0
        %707 = vadd.xlane.f32.xlu0 %v706
        %v708 = vpop.xlane.xlu0 %707
        %v709 = vmul.f32 %v708, %v671
        %v710 = vmul.f32 %v704, %v704
        %v711 = vsub.f32 %v709, %v710
        %v712 = vsub.f32 %v698, %v704
        %v713 = vadd.f32 %v711, 1e-05
        %v714 = vrsqrt.pop %v713
        %v715 = vmul.f32 %v712, %v714
        %v717 = vlaneseq
        %v718 = vshrl.u32 %v717, 7
        %v719 = vsub.s32 0, %v718
        %v720 = vrot.slane %v699, %v719
        %v722 = vmul.f32 %v715, %v720
        %v724 = vlaneseq
        %v725 = vshrl.u32 %v724, 7
        %v726 = vsub.s32 0, %v725
        %v727 = vrot.slane %v700, %v726
        %v729 = vadd.f32 %v722, %v727
        %v730 = vadd.f32 %v697, %v729
        %v731 = vld [vmem:[%s6] sm:$0x1]
        %v732 = vld [vmem:[%s7] sm:$0x1]
        %v733 = vsel %vm667, %v730, 0.0
        %734 = vadd.xlane.f32.xlu0 %v733
        %v735 = vpop.xlane.xlu0 %734
        %v736 = vmul.f32 %v735, %v671
        %v737 = vmul.f32 %v730, %v730
        %v738 = vsel %vm667, %v737, 0.0
        %739 = vadd.xlane.f32.xlu0 %v738
        %v740 = vpop.xlane.xlu0 %739
        %v741 = vmul.f32 %v740, %v671
        %v742 = vmul.f32 %v736, %v736
        %v743 = vsub.f32 %v741, %v742
        %v744 = vsub.f32 %v730, %v736
        %v745 = vadd.f32 %v743, 1e-05
        %v746 = vrsqrt.pop %v745
        %v747 = vmul.f32 %v744, %v746
        %v749 = vlaneseq
        %v750 = vshrl.u32 %v749, 7
        %v751 = vsub.s32 0, %v750
        %v752 = vrot.slane %v731, %v751
        %v754 = vmul.f32 %v747, %v752
        %v756 = vlaneseq
        %v757 = vshrl.u32 %v756, 7
        %v758 = vsub.s32 0, %v757
        %v759 = vrot.slane %v732, %v758
        %v761 = vadd.f32 %v754, %v759
        %v762 = vpack.c.bf16 %v761, %v761
        %v763 = vld [vmem:[%s10] sm:$0xf]
        %v764 = vld [vmem:[%s10 + $0x4] sm:$0xf]
        %v765 = vld [vmem:[%s10 + $0x8] sm:$0xf]
        %v766 = vld [vmem:[%s10 + $0xc] sm:$0xf]
        %v767 = vld [vmem:[%s10 + $0x10] sm:$0xf]
        %v768 = vld [vmem:[%s10 + $0x14] sm:$0xf]
        %v769 = vld [vmem:[%s10 + $0x18] sm:$0xf]
        %v770 = vld [vmem:[%s10 + $0x1c] sm:$0xf]
        %v771 = vld [vmem:[%s10 + $0x20] sm:$0xf]
        %v772 = vld [vmem:[%s10 + $0x24] sm:$0xf]
        %v773 = vld [vmem:[%s10 + $0x28] sm:$0xf]
        %v774 = vld [vmem:[%s10 + $0x2c] sm:$0xf]
        %v775 = vld [vmem:[%s10 + $0x30] sm:$0xf]
        %v776 = vld [vmem:[%s10 + $0x34] sm:$0xf]
        %v777 = vld [vmem:[%s10 + $0x38] sm:$0xf]
        %v778 = vld [vmem:[%s10 + $0x3c] sm:$0xf]
        %v779 = vld [vmem:[%s11] sm:$0x1]
        %v780 = vld [vmem:[%s11 + $0x1] sm:$0x1]
        %v781 = vld [vmem:[%s11 + $0x2] sm:$0x1]
        %v782 = vld [vmem:[%s11 + $0x3] sm:$0x1]
        %v787 = vlaneseq
        %v788 = vshrl.u32 %v787, 7
        %v789 = vsub.s32 0, %v788
        %v790 = vrot.slane %v779, %v789
        %v791 = vlaneseq
        %v792 = vshrl.u32 %v791, 7
        %v793 = vsub.s32 0, %v792
        %v794 = vrot.slane %v780, %v793
        %v795 = vlaneseq
        %v796 = vshrl.u32 %v795, 7
        %v797 = vsub.s32 0, %v796
        %v798 = vrot.slane %v781, %v797
        %v799 = vlaneseq
        %v800 = vshrl.u32 %v799, 7
        %v801 = vsub.s32 0, %v800
        %v802 = vrot.slane %v782, %v801
        %v811 = vunpack.c.l.b16 %v763
        %v812 = vunpack.c.l.b16 %v764
        %v813 = vunpack.c.l.b16 %v765
        %v814 = vunpack.c.l.b16 %v766
        %v815 = vpack.c.b16 %v812, %v811
        %v816 = vpack.c.b16 %v814, %v813
        %v820 = vsel %vm667, %v762, 0
        %822 = vmatprep.subr.bf16.mxu0 0
        %823 = vmatpush1.bf16.msra.mxu0 0
        %824 = vmatprep.subr.bf16.mxu0 0
        %825 = vmatpush1.bf16.msra.mxu0 0
        %826 = vmatprep.subr.bf16.mxu0 0
        %827 = vmatpush1.bf16.msra.mxu0 0
        %828 = vmatprep.subr.bf16.mxu0 0
        %829 = vmatpush1.bf16.msra.mxu0 0
        %830 = vmatprep.subr.bf16.mxu0 0
        %831 = vmatpush1.bf16.msra.mxu0 0
        %832 = vmatprep.subr.bf16.mxu0 0
        %833 = vmatpush1.bf16.msra.mxu0 0
        %834 = vmatprep.subr.bf16.mxu0 0
        %835 = vmatpush1.bf16.msra.mxu0 %v816
        %836 = vmatprep.subr.bf16.mxu0 0
        %837 = vmatpush1.bf16.msra.mxu0 %v815
        %838 = vmatprep.subr.bf16.mxu0 0
        %839 = vmatpush2.bf16.msra.mxu0 0
        %840 = vmatprep.subr.bf16.mxu0 0
        %841 = vmatpush2.bf16.msra.mxu0 0
        %842 = vmatprep.subr.bf16.mxu0 0
        %843 = vmatpush2.bf16.msra.mxu0 0
        %844 = vmatprep.subr.bf16.mxu0 0
        %845 = vmatpush2.bf16.msra.mxu0 0
        %846 = vmatprep.subr.bf16.mxu0 0
        %847 = vmatpush2.bf16.msra.mxu0 0
        %848 = vmatprep.subr.bf16.mxu0 0
        %849 = vmatpush2.bf16.msra.mxu0 0
        %850 = vmatprep.subr.bf16.mxu0 0
        %851 = vmatpush2.bf16.msra.mxu0 0
        %852 = vmatprep.subr.bf16.mxu0 0
        %853 = vmatpush2.bf16.msra.mxu0 0
        %854 = vmatprep.mubr.bf16.mxu0 0
        %855 = vmatmul.mubr.bf16.gmra.mxu0 %v820
        %v856 = vpop.f32.mrf.mxu0
        %v857 = vadd.f32 %v790, %v856
        %v858 = vpop.f32.mrf.mxu0
        %v859 = vpop.f32.mrf.mxu0
        %v860 = vpop.f32.mrf.mxu0
        %861 = vdwg.mxu0
        %v866 = vunpack.c.l.b16 %v767
        %v867 = vunpack.c.l.b16 %v768
        %v868 = vunpack.c.l.b16 %v769
        %v869 = vunpack.c.l.b16 %v770
        %v870 = vpack.c.b16 %v867, %v866
        %v871 = vpack.c.b16 %v869, %v868
        %874 = vmatprep.subr.bf16.mxu0 0
        %875 = vmatpush1.bf16.msra.mxu0 0
        %876 = vmatprep.subr.bf16.mxu0 0
        %877 = vmatpush1.bf16.msra.mxu0 0
        %878 = vmatprep.subr.bf16.mxu0 0
        %879 = vmatpush1.bf16.msra.mxu0 0
        %880 = vmatprep.subr.bf16.mxu0 0
        %881 = vmatpush1.bf16.msra.mxu0 0
        %882 = vmatprep.subr.bf16.mxu0 0
        %883 = vmatpush1.bf16.msra.mxu0 0
        %884 = vmatprep.subr.bf16.mxu0 0
        %885 = vmatpush1.bf16.msra.mxu0 0
        %886 = vmatprep.subr.bf16.mxu0 0
        %887 = vmatpush1.bf16.msra.mxu0 %v871
        %888 = vmatprep.subr.bf16.mxu0 0
        %889 = vmatpush1.bf16.msra.mxu0 %v870
        %890 = vmatprep.subr.bf16.mxu0 0
        %891 = vmatpush2.bf16.msra.mxu0 0
        %892 = vmatprep.subr.bf16.mxu0 0
        %893 = vmatpush2.bf16.msra.mxu0 0
        %894 = vmatprep.subr.bf16.mxu0 0
        %895 = vmatpush2.bf16.msra.mxu0 0
        %896 = vmatprep.subr.bf16.mxu0 0
        %897 = vmatpush2.bf16.msra.mxu0 0
        %898 = vmatprep.subr.bf16.mxu0 0
        %899 = vmatpush2.bf16.msra.mxu0 0
        %900 = vmatprep.subr.bf16.mxu0 0
        %901 = vmatpush2.bf16.msra.mxu0 0
        %902 = vmatprep.subr.bf16.mxu0 0
        %903 = vmatpush2.bf16.msra.mxu0 0
        %904 = vmatprep.subr.bf16.mxu0 0
        %905 = vmatpush2.bf16.msra.mxu0 0
        %906 = vmatprep.mubr.bf16.mxu0 0
        %907 = vmatmul.mubr.bf16.gmra.mxu0 %v820
        %v908 = vpop.f32.mrf.mxu0
        %v909 = vadd.f32 %v794, %v908
        %v910 = vpop.f32.mrf.mxu0
        %v911 = vpop.f32.mrf.mxu0
        %v912 = vpop.f32.mrf.mxu0
        %913 = vdwg.mxu0
        %v918 = vunpack.c.l.b16 %v771
        %v919 = vunpack.c.l.b16 %v772
        %v920 = vunpack.c.l.b16 %v773
        %v921 = vunpack.c.l.b16 %v774
        %v922 = vpack.c.b16 %v919, %v918
        %v923 = vpack.c.b16 %v921, %v920
        %926 = vmatprep.subr.bf16.mxu0 0
        %927 = vmatpush1.bf16.msra.mxu0 0
        %928 = vmatprep.subr.bf16.mxu0 0
        %929 = vmatpush1.bf16.msra.mxu0 0
        %930 = vmatprep.subr.bf16.mxu0 0
        %931 = vmatpush1.bf16.msra.mxu0 0
        %932 = vmatprep.subr.bf16.mxu0 0
        %933 = vmatpush1.bf16.msra.mxu0 0
        %934 = vmatprep.subr.bf16.mxu0 0
        %935 = vmatpush1.bf16.msra.mxu0 0
        %936 = vmatprep.subr.bf16.mxu0 0
        %937 = vmatpush1.bf16.msra.mxu0 0
        %938 = vmatprep.subr.bf16.mxu0 0
        %939 = vmatpush1.bf16.msra.mxu0 %v923
        %940 = vmatprep.subr.bf16.mxu0 0
        %941 = vmatpush1.bf16.msra.mxu0 %v922
        %942 = vmatprep.subr.bf16.mxu0 0
        %943 = vmatpush2.bf16.msra.mxu0 0
        %944 = vmatprep.subr.bf16.mxu0 0
        %945 = vmatpush2.bf16.msra.mxu0 0
        %946 = vmatprep.subr.bf16.mxu0 0
        %947 = vmatpush2.bf16.msra.mxu0 0
        %948 = vmatprep.subr.bf16.mxu0 0
        %949 = vmatpush2.bf16.msra.mxu0 0
        %950 = vmatprep.subr.bf16.mxu0 0
        %951 = vmatpush2.bf16.msra.mxu0 0
        %952 = vmatprep.subr.bf16.mxu0 0
        %953 = vmatpush2.bf16.msra.mxu0 0
        %954 = vmatprep.subr.bf16.mxu0 0
        %955 = vmatpush2.bf16.msra.mxu0 0
        %956 = vmatprep.subr.bf16.mxu0 0
        %957 = vmatpush2.bf16.msra.mxu0 0
        %958 = vmatprep.mubr.bf16.mxu0 0
        %959 = vmatmul.mubr.bf16.gmra.mxu0 %v820
        %v960 = vpop.f32.mrf.mxu0
        %v961 = vadd.f32 %v798, %v960
        %v962 = vpop.f32.mrf.mxu0
        %v963 = vpop.f32.mrf.mxu0
        %v964 = vpop.f32.mrf.mxu0
        %965 = vdwg.mxu0
        %v970 = vunpack.c.l.b16 %v775
        %v971 = vunpack.c.l.b16 %v776
        %v972 = vunpack.c.l.b16 %v777
        %v973 = vunpack.c.l.b16 %v778
        %v974 = vpack.c.b16 %v971, %v970
        %v975 = vpack.c.b16 %v973, %v972
        %978 = vmatprep.subr.bf16.mxu0 0
        %979 = vmatpush1.bf16.msra.mxu0 0
        %980 = vmatprep.subr.bf16.mxu0 0
        %981 = vmatpush1.bf16.msra.mxu0 0
        %982 = vmatprep.subr.bf16.mxu0 0
        %983 = vmatpush1.bf16.msra.mxu0 0
        %984 = vmatprep.subr.bf16.mxu0 0
        %985 = vmatpush1.bf16.msra.mxu0 0
        %986 = vmatprep.subr.bf16.mxu0 0
        %987 = vmatpush1.bf16.msra.mxu0 0
        %988 = vmatprep.subr.bf16.mxu0 0
        %989 = vmatpush1.bf16.msra.mxu0 0
        %990 = vmatprep.subr.bf16.mxu0 0
        %991 = vmatpush1.bf16.msra.mxu0 %v975
        %992 = vmatprep.subr.bf16.mxu0 0
        %993 = vmatpush1.bf16.msra.mxu0 %v974
        %994 = vmatprep.subr.bf16.mxu0 0
        %995 = vmatpush2.bf16.msra.mxu0 0
        %996 = vmatprep.subr.bf16.mxu0 0
        %997 = vmatpush2.bf16.msra.mxu0 0
        %998 = vmatprep.subr.bf16.mxu0 0
        %999 = vmatpush2.bf16.msra.mxu0 0
        %1000 = vmatprep.subr.bf16.mxu0 0
        %1001 = vmatpush2.bf16.msra.mxu0 0
        %1002 = vmatprep.subr.bf16.mxu0 0
        %1003 = vmatpush2.bf16.msra.mxu0 0
        %1004 = vmatprep.subr.bf16.mxu0 0
        %1005 = vmatpush2.bf16.msra.mxu0 0
        %1006 = vmatprep.subr.bf16.mxu0 0
        %1007 = vmatpush2.bf16.msra.mxu0 0
        %1008 = vmatprep.subr.bf16.mxu0 0
        %1009 = vmatpush2.bf16.msra.mxu0 0
        %1010 = vmatprep.mubr.bf16.mxu0 0
        %1011 = vmatmul.mubr.bf16.gmra.mxu0 %v820
        %v1012 = vpop.f32.mrf.mxu0
        %v1013 = vadd.f32 %v802, %v1012
        %v1014 = vpop.f32.mrf.mxu0
        %v1015 = vpop.f32.mrf.mxu0
        %v1016 = vpop.f32.mrf.mxu0
        %1017 = vdwg.mxu0
        %v1018 = vpack.c.bf16 %v857, %v857
        %v1019 = vpack.c.bf16 %v909, %v909
        %v1020 = vpack.c.bf16 %v961, %v961
        %v1021 = vpack.c.bf16 %v1013, %v1013
        %1023 = vrot.lane.b32.xlu0 %v1018, 120
        %v1024 = vpop.permute.xlu0 %1023
        %vm1025 = vcmask 64512
        %v1027 = vsel %vm1025, %v1018, 0
        %v1030 = vsel %vm1025, %v1024, 0
        %1032 = vmatprep.subr.bf16.mxu0 0
        %1033 = vmatpush1.bf16.xpose.msra.mxu0 0
        %1034 = vmatprep.subr.bf16.mxu0 0
        %1035 = vmatpush1.bf16.xpose.msra.mxu0 0
        %1036 = vmatprep.subr.bf16.mxu0 0
        %1037 = vmatpush1.bf16.xpose.msra.mxu0 0
        %1038 = vmatprep.subr.bf16.mxu0 0
        %1039 = vmatpush1.bf16.xpose.msra.mxu0 0
        %1040 = vmatprep.subr.bf16.mxu0 0
        %1041 = vmatpush1.bf16.xpose.msra.mxu0 0
        %1042 = vmatprep.subr.bf16.mxu0 0
        %1043 = vmatpush1.bf16.xpose.msra.mxu0 0
        %1044 = vmatprep.subr.bf16.mxu0 0
        %1045 = vmatpush1.bf16.xpose.msra.mxu0 0
        %1046 = vmatprep.subr.bf16.mxu0 0
        %1047 = vmatpush1.bf16.xpose.msra.mxu0 %v1030
        %1048 = vmatprep.subr.bf16.mxu0 0
        %1049 = vmatpush2.bf16.xpose.msra.mxu0 0
        %1050 = vmatprep.subr.bf16.mxu0 0
        %1051 = vmatpush2.bf16.xpose.msra.mxu0 0
        %1052 = vmatprep.subr.bf16.mxu0 0
        %1053 = vmatpush2.bf16.xpose.msra.mxu0 0
        %1054 = vmatprep.subr.bf16.mxu0 0
        %1055 = vmatpush2.bf16.xpose.msra.mxu0 0
        %1056 = vmatprep.subr.bf16.mxu0 0
        %1057 = vmatpush2.bf16.xpose.msra.mxu0 0
        %1058 = vmatprep.subr.bf16.mxu0 0
        %1059 = vmatpush2.bf16.xpose.msra.mxu0 0
        %1060 = vmatprep.subr.bf16.mxu0 0
        %1061 = vmatpush2.bf16.xpose.msra.mxu0 0
        %1062 = vmatprep.subr.bf16.mxu0 0
        %1063 = vmatpush2.bf16.xpose.msra.mxu0 0
        %1064 = vmatprep.mubr.bf16.mxu0 0
        %1065 = vmatmul.mubr.bf16.gmra.mxu0 %v1027
        %v1066 = vpop.f32.mrf.mxu0
        %v1067 = vadd.f32 0.0, %v1066
        %v1068 = vpop.f32.mrf.mxu0
        %v1069 = vpop.f32.mrf.mxu0
        %v1070 = vpop.f32.mrf.mxu0
        %1071 = vdwg.mxu0
        %1073 = vrot.lane.b32.xlu0 %v1019, 120
        %v1074 = vpop.permute.xlu0 %1073
        %v1076 = vsel %vm1025, %v1019, 0
        %v1079 = vsel %vm1025, %v1074, 0
        %1081 = vmatprep.subr.bf16.mxu0 0
        %1082 = vmatpush1.bf16.xpose.msra.mxu0 0
        %1083 = vmatprep.subr.bf16.mxu0 0
        %1084 = vmatpush1.bf16.xpose.msra.mxu0 0
        %1085 = vmatprep.subr.bf16.mxu0 0
        %1086 = vmatpush1.bf16.xpose.msra.mxu0 0
        %1087 = vmatprep.subr.bf16.mxu0 0
        %1088 = vmatpush1.bf16.xpose.msra.mxu0 0
        %1089 = vmatprep.subr.bf16.mxu0 0
        %1090 = vmatpush1.bf16.xpose.msra.mxu0 0
        %1091 = vmatprep.subr.bf16.mxu0 0
        %1092 = vmatpush1.bf16.xpose.msra.mxu0 0
        %1093 = vmatprep.subr.bf16.mxu0 0
        %1094 = vmatpush1.bf16.xpose.msra.mxu0 0
        %1095 = vmatprep.subr.bf16.mxu0 0
        %1096 = vmatpush1.bf16.xpose.msra.mxu0 %v1079
        %1097 = vmatprep.subr.bf16.mxu0 0
        %1098 = vmatpush2.bf16.xpose.msra.mxu0 0
        %1099 = vmatprep.subr.bf16.mxu0 0
        %1100 = vmatpush2.bf16.xpose.msra.mxu0 0
        %1101 = vmatprep.subr.bf16.mxu0 0
        %1102 = vmatpush2.bf16.xpose.msra.mxu0 0
        %1103 = vmatprep.subr.bf16.mxu0 0
        %1104 = vmatpush2.bf16.xpose.msra.mxu0 0
        %1105 = vmatprep.subr.bf16.mxu0 0
        %1106 = vmatpush2.bf16.xpose.msra.mxu0 0
        %1107 = vmatprep.subr.bf16.mxu0 0
        %1108 = vmatpush2.bf16.xpose.msra.mxu0 0
        %1109 = vmatprep.subr.bf16.mxu0 0
        %1110 = vmatpush2.bf16.xpose.msra.mxu0 0
        %1111 = vmatprep.subr.bf16.mxu0 0
        %1112 = vmatpush2.bf16.xpose.msra.mxu0 0
        %1113 = vmatprep.mubr.bf16.mxu0 0
        %1114 = vmatmul.mubr.bf16.gmra.mxu0 %v1076
        %v1115 = vpop.f32.mrf.mxu0
        %v1116 = vadd.f32 0.0, %v1115
        %v1117 = vpop.f32.mrf.mxu0
        %v1118 = vpop.f32.mrf.mxu0
        %v1119 = vpop.f32.mrf.mxu0
        %1120 = vdwg.mxu0
        %1122 = vrot.lane.b32.xlu0 %v1020, 120
        %v1123 = vpop.permute.xlu0 %1122
        %v1125 = vsel %vm1025, %v1020, 0
        %v1128 = vsel %vm1025, %v1123, 0
        %1130 = vmatprep.subr.bf16.mxu0 0
        %1131 = vmatpush1.bf16.xpose.msra.mxu0 0
        %1132 = vmatprep.subr.bf16.mxu0 0
        %1133 = vmatpush1.bf16.xpose.msra.mxu0 0
        %1134 = vmatprep.subr.bf16.mxu0 0
        %1135 = vmatpush1.bf16.xpose.msra.mxu0 0
        %1136 = vmatprep.subr.bf16.mxu0 0
        %1137 = vmatpush1.bf16.xpose.msra.mxu0 0
        %1138 = vmatprep.subr.bf16.mxu0 0
        %1139 = vmatpush1.bf16.xpose.msra.mxu0 0
        %1140 = vmatprep.subr.bf16.mxu0 0
        %1141 = vmatpush1.bf16.xpose.msra.mxu0 0
        %1142 = vmatprep.subr.bf16.mxu0 0
        %1143 = vmatpush1.bf16.xpose.msra.mxu0 0
        %1144 = vmatprep.subr.bf16.mxu0 0
        %1145 = vmatpush1.bf16.xpose.msra.mxu0 %v1128
        %1146 = vmatprep.subr.bf16.mxu0 0
        %1147 = vmatpush2.bf16.xpose.msra.mxu0 0
        %1148 = vmatprep.subr.bf16.mxu0 0
        %1149 = vmatpush2.bf16.xpose.msra.mxu0 0
        %1150 = vmatprep.subr.bf16.mxu0 0
        %1151 = vmatpush2.bf16.xpose.msra.mxu0 0
        %1152 = vmatprep.subr.bf16.mxu0 0
        %1153 = vmatpush2.bf16.xpose.msra.mxu0 0
        %1154 = vmatprep.subr.bf16.mxu0 0
        %1155 = vmatpush2.bf16.xpose.msra.mxu0 0
        %1156 = vmatprep.subr.bf16.mxu0 0
        %1157 = vmatpush2.bf16.xpose.msra.mxu0 0
        %1158 = vmatprep.subr.bf16.mxu0 0
        %1159 = vmatpush2.bf16.xpose.msra.mxu0 0
        %1160 = vmatprep.subr.bf16.mxu0 0
        %1161 = vmatpush2.bf16.xpose.msra.mxu0 0
        %1162 = vmatprep.mubr.bf16.mxu0 0
        %1163 = vmatmul.mubr.bf16.gmra.mxu0 %v1125
        %v1164 = vpop.f32.mrf.mxu0
        %v1165 = vadd.f32 0.0, %v1164
        %v1166 = vpop.f32.mrf.mxu0
        %v1167 = vpop.f32.mrf.mxu0
        %v1168 = vpop.f32.mrf.mxu0
        %1169 = vdwg.mxu0
        %1171 = vrot.lane.b32.xlu0 %v1021, 120
        %v1172 = vpop.permute.xlu0 %1171
        %v1174 = vsel %vm1025, %v1021, 0
        %v1177 = vsel %vm1025, %v1172, 0
        %1179 = vmatprep.subr.bf16.mxu0 0
        %1180 = vmatpush1.bf16.xpose.msra.mxu0 0
        %1181 = vmatprep.subr.bf16.mxu0 0
        %1182 = vmatpush1.bf16.xpose.msra.mxu0 0
        %1183 = vmatprep.subr.bf16.mxu0 0
        %1184 = vmatpush1.bf16.xpose.msra.mxu0 0
        %1185 = vmatprep.subr.bf16.mxu0 0
        %1186 = vmatpush1.bf16.xpose.msra.mxu0 0
        %1187 = vmatprep.subr.bf16.mxu0 0
        %1188 = vmatpush1.bf16.xpose.msra.mxu0 0
        %1189 = vmatprep.subr.bf16.mxu0 0
        %1190 = vmatpush1.bf16.xpose.msra.mxu0 0
        %1191 = vmatprep.subr.bf16.mxu0 0
        %1192 = vmatpush1.bf16.xpose.msra.mxu0 0
        %1193 = vmatprep.subr.bf16.mxu0 0
        %1194 = vmatpush1.bf16.xpose.msra.mxu0 %v1177
        %1195 = vmatprep.subr.bf16.mxu0 0
        %1196 = vmatpush2.bf16.xpose.msra.mxu0 0
        %1197 = vmatprep.subr.bf16.mxu0 0
        %1198 = vmatpush2.bf16.xpose.msra.mxu0 0
        %1199 = vmatprep.subr.bf16.mxu0 0
        %1200 = vmatpush2.bf16.xpose.msra.mxu0 0
        %1201 = vmatprep.subr.bf16.mxu0 0
        %1202 = vmatpush2.bf16.xpose.msra.mxu0 0
        %1203 = vmatprep.subr.bf16.mxu0 0
        %1204 = vmatpush2.bf16.xpose.msra.mxu0 0
        %1205 = vmatprep.subr.bf16.mxu0 0
        %1206 = vmatpush2.bf16.xpose.msra.mxu0 0
        %1207 = vmatprep.subr.bf16.mxu0 0
        %1208 = vmatpush2.bf16.xpose.msra.mxu0 0
        %1209 = vmatprep.subr.bf16.mxu0 0
        %1210 = vmatpush2.bf16.xpose.msra.mxu0 0
        %1211 = vmatprep.mubr.bf16.mxu0 0
        %1212 = vmatmul.mubr.bf16.gmra.mxu0 %v1174
        %v1213 = vpop.f32.mrf.mxu0
        %v1214 = vadd.f32 0.0, %v1213
        %v1215 = vpop.f32.mrf.mxu0
        %v1216 = vpop.f32.mrf.mxu0
        %v1217 = vpop.f32.mrf.mxu0
        %1218 = vdwg.mxu0
        %v1219 = vmul.f32 %v1067, 0.35355338
        %v1220 = vmul.f32 %v1116, 0.35355338
        %v1221 = vmul.f32 %v1165, 0.35355338
        %v1222 = vmul.f32 %v1214, 0.35355338
        %v1223 = vsel %vm1025, %v1219, -inf
        %1224 = vmax.xlane.f32.xlu0 %v1223
        %v1225 = vpop.xlane.xlu0 %1224
        %v1226 = vsel %vm1025, %v1220, -inf
        %1227 = vmax.xlane.f32.xlu0 %v1226
        %v1228 = vpop.xlane.xlu0 %1227
        %v1229 = vsel %vm1025, %v1221, -inf
        %1230 = vmax.xlane.f32.xlu0 %v1229
        %v1231 = vpop.xlane.xlu0 %1230
        %v1232 = vsel %vm1025, %v1222, -inf
        %1233 = vmax.xlane.f32.xlu0 %v1232
        %v1234 = vpop.xlane.xlu0 %1233
        %v1235 = vsub.f32 %v1219, %v1225
        %v1236 = vsub.f32 %v1220, %v1228
        %v1237 = vsub.f32 %v1221, %v1231
        %v1238 = vsub.f32 %v1222, %v1234
        %v1239 = vmul.f32 %v1235, 1.442695
        %v1240 = vpow.pop %v1239
        %v1241 = vmul.f32 %v1236, 1.442695
        %v1242 = vpow.pop %v1241
        %v1243 = vmul.f32 %v1237, 1.442695
        %v1244 = vpow.pop %v1243
        %v1245 = vmul.f32 %v1238, 1.442695
        %v1246 = vpow.pop %v1245
        %v1247 = vsel %vm1025, %v1240, 0.0
        %1248 = vadd.xlane.f32.xlu0 %v1247
        %v1249 = vpop.xlane.xlu0 %1248
        %v1250 = vsel %vm1025, %v1242, 0.0
        %1251 = vadd.xlane.f32.xlu0 %v1250
        %v1252 = vpop.xlane.xlu0 %1251
        %v1253 = vsel %vm1025, %v1244, 0.0
        %1254 = vadd.xlane.f32.xlu0 %v1253
        %v1255 = vpop.xlane.xlu0 %1254
        %v1256 = vsel %vm1025, %v1246, 0.0
        %1257 = vadd.xlane.f32.xlu0 %v1256
        %v1258 = vpop.xlane.xlu0 %1257
        %v1259 = vrcp.pop %v1249
        %v1260 = vmul.f32 %v1240, %v1259
        %v1261 = vrcp.pop %v1252
        %v1262 = vmul.f32 %v1242, %v1261
        %v1263 = vrcp.pop %v1255
        %v1264 = vmul.f32 %v1244, %v1263
        %v1265 = vrcp.pop %v1258
        %v1266 = vmul.f32 %v1246, %v1265
        %v1267 = vpack.c.bf16 %v1260, %v1260
        %v1268 = vpack.c.bf16 %v1262, %v1262
        %v1269 = vpack.c.bf16 %v1264, %v1264
        %v1270 = vpack.c.bf16 %v1266, %v1266
        %1271 = vrot.lane.b32.xlu0 %v1018, 112
        %v1272 = vpop.permute.xlu0 %1271
        %v1274 = vsel %vm1025, %v1267, 0
        %vm1276 = vcmask 1043456
        %v1278 = vsel %vm1276, %v1272, 0
        %1280 = vmatprep.subr.bf16.mxu0 0
        %1281 = vmatpush1.bf16.msra.mxu0 0
        %1282 = vmatprep.subr.bf16.mxu0 0
        %1283 = vmatpush1.bf16.msra.mxu0 0
        %1284 = vmatprep.subr.bf16.mxu0 0
        %1285 = vmatpush1.bf16.msra.mxu0 0
        %1286 = vmatprep.subr.bf16.mxu0 0
        %1287 = vmatpush1.bf16.msra.mxu0 0
        %1288 = vmatprep.subr.bf16.mxu0 0
        %1289 = vmatpush1.bf16.msra.mxu0 0
        %1290 = vmatprep.subr.bf16.mxu0 0
        %1291 = vmatpush1.bf16.msra.mxu0 0
        %1292 = vmatprep.subr.bf16.mxu0 0
        %1293 = vmatpush1.bf16.msra.mxu0 0
        %1294 = vmatprep.subr.bf16.mxu0 0
        %1295 = vmatpush1.bf16.msra.mxu0 %v1278
        %1296 = vmatprep.subr.bf16.mxu0 0
        %1297 = vmatpush2.bf16.msra.mxu0 0
        %1298 = vmatprep.subr.bf16.mxu0 0
        %1299 = vmatpush2.bf16.msra.mxu0 0
        %1300 = vmatprep.subr.bf16.mxu0 0
        %1301 = vmatpush2.bf16.msra.mxu0 0
        %1302 = vmatprep.subr.bf16.mxu0 0
        %1303 = vmatpush2.bf16.msra.mxu0 0
        %1304 = vmatprep.subr.bf16.mxu0 0
        %1305 = vmatpush2.bf16.msra.mxu0 0
        %1306 = vmatprep.subr.bf16.mxu0 0
        %1307 = vmatpush2.bf16.msra.mxu0 0
        %1308 = vmatprep.subr.bf16.mxu0 0
        %1309 = vmatpush2.bf16.msra.mxu0 0
        %1310 = vmatprep.subr.bf16.mxu0 0
        %1311 = vmatpush2.bf16.msra.mxu0 0
        %1312 = vmatprep.mubr.bf16.mxu0 0
        %1313 = vmatmul.mubr.bf16.gmra.mxu0 %v1274
        %v1314 = vpop.f32.mrf.mxu0
        %v1315 = vadd.f32 0.0, %v1314
        %v1316 = vpop.f32.mrf.mxu0
        %v1317 = vpop.f32.mrf.mxu0
        %v1318 = vpop.f32.mrf.mxu0
        %1319 = vdwg.mxu0
        %1320 = vrot.lane.b32.xlu0 %v1019, 112
        %v1321 = vpop.permute.xlu0 %1320
        %v1323 = vsel %vm1025, %v1268, 0
        %v1326 = vsel %vm1276, %v1321, 0
        %1328 = vmatprep.subr.bf16.mxu0 0
        %1329 = vmatpush1.bf16.msra.mxu0 0
        %1330 = vmatprep.subr.bf16.mxu0 0
        %1331 = vmatpush1.bf16.msra.mxu0 0
        %1332 = vmatprep.subr.bf16.mxu0 0
        %1333 = vmatpush1.bf16.msra.mxu0 0
        %1334 = vmatprep.subr.bf16.mxu0 0
        %1335 = vmatpush1.bf16.msra.mxu0 0
        %1336 = vmatprep.subr.bf16.mxu0 0
        %1337 = vmatpush1.bf16.msra.mxu0 0
        %1338 = vmatprep.subr.bf16.mxu0 0
        %1339 = vmatpush1.bf16.msra.mxu0 0
        %1340 = vmatprep.subr.bf16.mxu0 0
        %1341 = vmatpush1.bf16.msra.mxu0 0
        %1342 = vmatprep.subr.bf16.mxu0 0
        %1343 = vmatpush1.bf16.msra.mxu0 %v1326
        %1344 = vmatprep.subr.bf16.mxu0 0
        %1345 = vmatpush2.bf16.msra.mxu0 0
        %1346 = vmatprep.subr.bf16.mxu0 0
        %1347 = vmatpush2.bf16.msra.mxu0 0
        %1348 = vmatprep.subr.bf16.mxu0 0
        %1349 = vmatpush2.bf16.msra.mxu0 0
        %1350 = vmatprep.subr.bf16.mxu0 0
        %1351 = vmatpush2.bf16.msra.mxu0 0
        %1352 = vmatprep.subr.bf16.mxu0 0
        %1353 = vmatpush2.bf16.msra.mxu0 0
        %1354 = vmatprep.subr.bf16.mxu0 0
        %1355 = vmatpush2.bf16.msra.mxu0 0
        %1356 = vmatprep.subr.bf16.mxu0 0
        %1357 = vmatpush2.bf16.msra.mxu0 0
        %1358 = vmatprep.subr.bf16.mxu0 0
        %1359 = vmatpush2.bf16.msra.mxu0 0
        %1360 = vmatprep.mubr.bf16.mxu0 0
        %1361 = vmatmul.mubr.bf16.gmra.mxu0 %v1323
        %v1362 = vpop.f32.mrf.mxu0
        %v1363 = vadd.f32 0.0, %v1362
        %v1364 = vpop.f32.mrf.mxu0
        %v1365 = vpop.f32.mrf.mxu0
        %v1366 = vpop.f32.mrf.mxu0
        %1367 = vdwg.mxu0
        %1368 = vrot.lane.b32.xlu0 %v1020, 112
        %v1369 = vpop.permute.xlu0 %1368
        %v1371 = vsel %vm1025, %v1269, 0
        %v1374 = vsel %vm1276, %v1369, 0
        %1376 = vmatprep.subr.bf16.mxu0 0
        %1377 = vmatpush1.bf16.msra.mxu0 0
        %1378 = vmatprep.subr.bf16.mxu0 0
        %1379 = vmatpush1.bf16.msra.mxu0 0
        %1380 = vmatprep.subr.bf16.mxu0 0
        %1381 = vmatpush1.bf16.msra.mxu0 0
        %1382 = vmatprep.subr.bf16.mxu0 0
        %1383 = vmatpush1.bf16.msra.mxu0 0
        %1384 = vmatprep.subr.bf16.mxu0 0
        %1385 = vmatpush1.bf16.msra.mxu0 0
        %1386 = vmatprep.subr.bf16.mxu0 0
        %1387 = vmatpush1.bf16.msra.mxu0 0
        %1388 = vmatprep.subr.bf16.mxu0 0
        %1389 = vmatpush1.bf16.msra.mxu0 0
        %1390 = vmatprep.subr.bf16.mxu0 0
        %1391 = vmatpush1.bf16.msra.mxu0 %v1374
        %1392 = vmatprep.subr.bf16.mxu0 0
        %1393 = vmatpush2.bf16.msra.mxu0 0
        %1394 = vmatprep.subr.bf16.mxu0 0
        %1395 = vmatpush2.bf16.msra.mxu0 0
        %1396 = vmatprep.subr.bf16.mxu0 0
        %1397 = vmatpush2.bf16.msra.mxu0 0
        %1398 = vmatprep.subr.bf16.mxu0 0
        %1399 = vmatpush2.bf16.msra.mxu0 0
        %1400 = vmatprep.subr.bf16.mxu0 0
        %1401 = vmatpush2.bf16.msra.mxu0 0
        %1402 = vmatprep.subr.bf16.mxu0 0
        %1403 = vmatpush2.bf16.msra.mxu0 0
        %1404 = vmatprep.subr.bf16.mxu0 0
        %1405 = vmatpush2.bf16.msra.mxu0 0
        %1406 = vmatprep.subr.bf16.mxu0 0
        %1407 = vmatpush2.bf16.msra.mxu0 0
        %1408 = vmatprep.mubr.bf16.mxu0 0
        %1409 = vmatmul.mubr.bf16.gmra.mxu0 %v1371
        %v1410 = vpop.f32.mrf.mxu0
        %v1411 = vadd.f32 0.0, %v1410
        %v1412 = vpop.f32.mrf.mxu0
        %v1413 = vpop.f32.mrf.mxu0
        %v1414 = vpop.f32.mrf.mxu0
        %1415 = vdwg.mxu0
        %1416 = vrot.lane.b32.xlu0 %v1021, 112
        %v1417 = vpop.permute.xlu0 %1416
        %v1419 = vsel %vm1025, %v1270, 0
        %v1422 = vsel %vm1276, %v1417, 0
        %1424 = vmatprep.subr.bf16.mxu0 0
        %1425 = vmatpush1.bf16.msra.mxu0 0
        %1426 = vmatprep.subr.bf16.mxu0 0
        %1427 = vmatpush1.bf16.msra.mxu0 0
        %1428 = vmatprep.subr.bf16.mxu0 0
        %1429 = vmatpush1.bf16.msra.mxu0 0
        %1430 = vmatprep.subr.bf16.mxu0 0
        %1431 = vmatpush1.bf16.msra.mxu0 0
        %1432 = vmatprep.subr.bf16.mxu0 0
        %1433 = vmatpush1.bf16.msra.mxu0 0
        %1434 = vmatprep.subr.bf16.mxu0 0
        %1435 = vmatpush1.bf16.msra.mxu0 0
        %1436 = vmatprep.subr.bf16.mxu0 0
        %1437 = vmatpush1.bf16.msra.mxu0 0
        %1438 = vmatprep.subr.bf16.mxu0 0
        %1439 = vmatpush1.bf16.msra.mxu0 %v1422
        %1440 = vmatprep.subr.bf16.mxu0 0
        %1441 = vmatpush2.bf16.msra.mxu0 0
        %1442 = vmatprep.subr.bf16.mxu0 0
        %1443 = vmatpush2.bf16.msra.mxu0 0
        %1444 = vmatprep.subr.bf16.mxu0 0
        %1445 = vmatpush2.bf16.msra.mxu0 0
        %1446 = vmatprep.subr.bf16.mxu0 0
        %1447 = vmatpush2.bf16.msra.mxu0 0
        %1448 = vmatprep.subr.bf16.mxu0 0
        %1449 = vmatpush2.bf16.msra.mxu0 0
        %1450 = vmatprep.subr.bf16.mxu0 0
        %1451 = vmatpush2.bf16.msra.mxu0 0
        %1452 = vmatprep.subr.bf16.mxu0 0
        %1453 = vmatpush2.bf16.msra.mxu0 0
        %1454 = vmatprep.subr.bf16.mxu0 0
        %1455 = vmatpush2.bf16.msra.mxu0 0
        %1456 = vmatprep.mubr.bf16.mxu0 0
        %1457 = vmatmul.mubr.bf16.gmra.mxu0 %v1419
        %v1458 = vpop.f32.mrf.mxu0
        %v1459 = vadd.f32 0.0, %v1458
        %v1460 = vpop.f32.mrf.mxu0
        %v1461 = vpop.f32.mrf.mxu0
        %v1462 = vpop.f32.mrf.mxu0
        %1463 = vdwg.mxu0
        %v1464 = vpack.c.bf16 %v1315, %v1315
        %v1465 = vpack.c.bf16 %v1363, %v1363
        %v1466 = vpack.c.bf16 %v1411, %v1411
        %v1467 = vpack.c.bf16 %v1459, %v1459
        %v1468 = vld [vmem:[%s12] sm:$0xf]
        %v1469 = vld [vmem:[%s12 + $0x4] sm:$0xf]
        %v1470 = vld [vmem:[%s12 + $0x8] sm:$0xf]
        %v1471 = vld [vmem:[%s12 + $0xc] sm:$0xf]
        %v1473 = vsel %vm1025, %v1464, 0
        %v1476 = vsel %vm1276, %v1468, 0
        %1478 = vmatprep.subr.bf16.mxu0 0
        %1479 = vmatpush1.bf16.msra.mxu0 0
        %1480 = vmatprep.subr.bf16.mxu0 0
        %1481 = vmatpush1.bf16.msra.mxu0 0
        %1482 = vmatprep.subr.bf16.mxu0 0
        %1483 = vmatpush1.bf16.msra.mxu0 0
        %1484 = vmatprep.subr.bf16.mxu0 0
        %1485 = vmatpush1.bf16.msra.mxu0 0
        %1486 = vmatprep.subr.bf16.mxu0 0
        %1487 = vmatpush1.bf16.msra.mxu0 0
        %1488 = vmatprep.subr.bf16.mxu0 0
        %1489 = vmatpush1.bf16.msra.mxu0 0
        %1490 = vmatprep.subr.bf16.mxu0 0
        %1491 = vmatpush1.bf16.msra.mxu0 0
        %1492 = vmatprep.subr.bf16.mxu0 0
        %1493 = vmatpush1.bf16.msra.mxu0 %v1476
        %1494 = vmatprep.subr.bf16.mxu0 0
        %1495 = vmatpush2.bf16.msra.mxu0 0
        %1496 = vmatprep.subr.bf16.mxu0 0
        %1497 = vmatpush2.bf16.msra.mxu0 0
        %1498 = vmatprep.subr.bf16.mxu0 0
        %1499 = vmatpush2.bf16.msra.mxu0 0
        %1500 = vmatprep.subr.bf16.mxu0 0
        %1501 = vmatpush2.bf16.msra.mxu0 0
        %1502 = vmatprep.subr.bf16.mxu0 0
        %1503 = vmatpush2.bf16.msra.mxu0 0
        %1504 = vmatprep.subr.bf16.mxu0 0
        %1505 = vmatpush2.bf16.msra.mxu0 0
        %1506 = vmatprep.subr.bf16.mxu0 0
        %1507 = vmatpush2.bf16.msra.mxu0 0
        %1508 = vmatprep.subr.bf16.mxu0 0
        %1509 = vmatpush2.bf16.msra.mxu0 0
        %1510 = vmatprep.mubr.bf16.mxu0 0
        %1511 = vmatmul.mubr.bf16.gmra.mxu0 %v1473
        %v1512 = vpop.f32.mrf.mxu0
        %v1513 = vadd.f32 0.0, %v1512
        %v1514 = vpop.f32.mrf.mxu0
        %v1515 = vpop.f32.mrf.mxu0
        %v1516 = vpop.f32.mrf.mxu0
        %1517 = vdwg.mxu0
        %v1519 = vsel %vm1025, %v1465, 0
        %v1522 = vsel %vm1276, %v1469, 0
        %1524 = vmatprep.subr.bf16.mxu0 0
        %1525 = vmatpush1.bf16.msra.mxu0 0
        %1526 = vmatprep.subr.bf16.mxu0 0
        %1527 = vmatpush1.bf16.msra.mxu0 0
        %1528 = vmatprep.subr.bf16.mxu0 0
        %1529 = vmatpush1.bf16.msra.mxu0 0
        %1530 = vmatprep.subr.bf16.mxu0 0
        %1531 = vmatpush1.bf16.msra.mxu0 0
        %1532 = vmatprep.subr.bf16.mxu0 0
        %1533 = vmatpush1.bf16.msra.mxu0 0
        %1534 = vmatprep.subr.bf16.mxu0 0
        %1535 = vmatpush1.bf16.msra.mxu0 0
        %1536 = vmatprep.subr.bf16.mxu0 0
        %1537 = vmatpush1.bf16.msra.mxu0 0
        %1538 = vmatprep.subr.bf16.mxu0 0
        %1539 = vmatpush1.bf16.msra.mxu0 %v1522
        %1540 = vmatprep.subr.bf16.mxu0 0
        %1541 = vmatpush2.bf16.msra.mxu0 0
        %1542 = vmatprep.subr.bf16.mxu0 0
        %1543 = vmatpush2.bf16.msra.mxu0 0
        %1544 = vmatprep.subr.bf16.mxu0 0
        %1545 = vmatpush2.bf16.msra.mxu0 0
        %1546 = vmatprep.subr.bf16.mxu0 0
        %1547 = vmatpush2.bf16.msra.mxu0 0
        %1548 = vmatprep.subr.bf16.mxu0 0
        %1549 = vmatpush2.bf16.msra.mxu0 0
        %1550 = vmatprep.subr.bf16.mxu0 0
        %1551 = vmatpush2.bf16.msra.mxu0 0
        %1552 = vmatprep.subr.bf16.mxu0 0
        %1553 = vmatpush2.bf16.msra.mxu0 0
        %1554 = vmatprep.subr.bf16.mxu0 0
        %1555 = vmatpush2.bf16.msra.mxu0 0
        %1556 = vmatprep.mubr.bf16.mxu0 0
        %1557 = vmatmul.mubr.bf16.gmra.mxu0 %v1519
        %v1558 = vpop.f32.mrf.mxu0
        %v1559 = vadd.f32 0.0, %v1558
        %v1560 = vpop.f32.mrf.mxu0
        %v1561 = vpop.f32.mrf.mxu0
        %v1562 = vpop.f32.mrf.mxu0
        %1563 = vdwg.mxu0
        %v1565 = vsel %vm1025, %v1466, 0
        %v1568 = vsel %vm1276, %v1470, 0
        %1570 = vmatprep.subr.bf16.mxu0 0
        %1571 = vmatpush1.bf16.msra.mxu0 0
        %1572 = vmatprep.subr.bf16.mxu0 0
        %1573 = vmatpush1.bf16.msra.mxu0 0
        %1574 = vmatprep.subr.bf16.mxu0 0
        %1575 = vmatpush1.bf16.msra.mxu0 0
        %1576 = vmatprep.subr.bf16.mxu0 0
        %1577 = vmatpush1.bf16.msra.mxu0 0
        %1578 = vmatprep.subr.bf16.mxu0 0
        %1579 = vmatpush1.bf16.msra.mxu0 0
        %1580 = vmatprep.subr.bf16.mxu0 0
        %1581 = vmatpush1.bf16.msra.mxu0 0
        %1582 = vmatprep.subr.bf16.mxu0 0
        %1583 = vmatpush1.bf16.msra.mxu0 0
        %1584 = vmatprep.subr.bf16.mxu0 0
        %1585 = vmatpush1.bf16.msra.mxu0 %v1568
        %1586 = vmatprep.subr.bf16.mxu0 0
        %1587 = vmatpush2.bf16.msra.mxu0 0
        %1588 = vmatprep.subr.bf16.mxu0 0
        %1589 = vmatpush2.bf16.msra.mxu0 0
        %1590 = vmatprep.subr.bf16.mxu0 0
        %1591 = vmatpush2.bf16.msra.mxu0 0
        %1592 = vmatprep.subr.bf16.mxu0 0
        %1593 = vmatpush2.bf16.msra.mxu0 0
        %1594 = vmatprep.subr.bf16.mxu0 0
        %1595 = vmatpush2.bf16.msra.mxu0 0
        %1596 = vmatprep.subr.bf16.mxu0 0
        %1597 = vmatpush2.bf16.msra.mxu0 0
        %1598 = vmatprep.subr.bf16.mxu0 0
        %1599 = vmatpush2.bf16.msra.mxu0 0
        %1600 = vmatprep.subr.bf16.mxu0 0
        %1601 = vmatpush2.bf16.msra.mxu0 0
        %1602 = vmatprep.mubr.bf16.mxu0 0
        %1603 = vmatmul.mubr.bf16.gmra.mxu0 %v1565
        %v1604 = vpop.f32.mrf.mxu0
        %v1605 = vadd.f32 0.0, %v1604
        %v1606 = vpop.f32.mrf.mxu0
        %v1607 = vpop.f32.mrf.mxu0
        %v1608 = vpop.f32.mrf.mxu0
        %1609 = vdwg.mxu0
        %v1611 = vsel %vm1025, %v1467, 0
        %v1614 = vsel %vm1276, %v1471, 0
        %1616 = vmatprep.subr.bf16.mxu0 0
        %1617 = vmatpush1.bf16.msra.mxu0 0
        %1618 = vmatprep.subr.bf16.mxu0 0
        %1619 = vmatpush1.bf16.msra.mxu0 0
        %1620 = vmatprep.subr.bf16.mxu0 0
        %1621 = vmatpush1.bf16.msra.mxu0 0
        %1622 = vmatprep.subr.bf16.mxu0 0
        %1623 = vmatpush1.bf16.msra.mxu0 0
        %1624 = vmatprep.subr.bf16.mxu0 0
        %1625 = vmatpush1.bf16.msra.mxu0 0
        %1626 = vmatprep.subr.bf16.mxu0 0
        %1627 = vmatpush1.bf16.msra.mxu0 0
        %1628 = vmatprep.subr.bf16.mxu0 0
        %1629 = vmatpush1.bf16.msra.mxu0 0
        %1630 = vmatprep.subr.bf16.mxu0 0
        %1631 = vmatpush1.bf16.msra.mxu0 %v1614
        %1632 = vmatprep.subr.bf16.mxu0 0
        %1633 = vmatpush2.bf16.msra.mxu0 0
        %1634 = vmatprep.subr.bf16.mxu0 0
        %1635 = vmatpush2.bf16.msra.mxu0 0
        %1636 = vmatprep.subr.bf16.mxu0 0
        %1637 = vmatpush2.bf16.msra.mxu0 0
        %1638 = vmatprep.subr.bf16.mxu0 0
        %1639 = vmatpush2.bf16.msra.mxu0 0
        %1640 = vmatprep.subr.bf16.mxu0 0
        %1641 = vmatpush2.bf16.msra.mxu0 0
        %1642 = vmatprep.subr.bf16.mxu0 0
        %1643 = vmatpush2.bf16.msra.mxu0 0
        %1644 = vmatprep.subr.bf16.mxu0 0
        %1645 = vmatpush2.bf16.msra.mxu0 0
        %1646 = vmatprep.subr.bf16.mxu0 0
        %1647 = vmatpush2.bf16.msra.mxu0 0
        %1648 = vmatprep.mubr.bf16.mxu0 0
        %1649 = vmatmul.mubr.bf16.gmra.mxu0 %v1611
        %v1650 = vpop.f32.mrf.mxu0
        %v1651 = vadd.f32 0.0, %v1650
        %v1652 = vpop.f32.mrf.mxu0
        %v1653 = vpop.f32.mrf.mxu0
        %v1654 = vpop.f32.mrf.mxu0
        %1655 = vdwg.mxu0
        %v1656 = vsel %vm667, %v1513, 0.0
        %v1657 = vsel %vm667, %v1559, 0.0
        %v1658 = vadd.f32 %v1656, %v1657
        %v1659 = vsel %vm667, %v1605, 0.0
        %v1660 = vadd.f32 %v1658, %v1659
        %v1661 = vsel %vm667, %v1651, 0.0
        %v1662 = vadd.f32 %v1660, %v1661
        %v1663 = vld [vmem:[%s13] sm:$0x1]
        %v1665 = vlaneseq
        %v1666 = vshrl.u32 %v1665, 7
        %v1667 = vsub.s32 0, %v1666
        %v1668 = vrot.slane %v1663, %v1667
        %v1670 = vadd.f32 %v1662, %v1668
        %v1671 = vadd.f32 %v1670, %v730
        %v1672 = vld [vmem:[%s8] sm:$0x1]
        %v1673 = vld [vmem:[%s9] sm:$0x1]
        %v1674 = vsel %vm667, %v1671, 0.0
        %1675 = vadd.xlane.f32.xlu0 %v1674
        %v1676 = vpop.xlane.xlu0 %1675
        %v1677 = vmul.f32 %v1676, %v671
        %v1678 = vmul.f32 %v1671, %v1671
        %v1679 = vsel %vm667, %v1678, 0.0
        %1680 = vadd.xlane.f32.xlu0 %v1679
        %v1681 = vpop.xlane.xlu0 %1680
        %v1682 = vmul.f32 %v1681, %v671
        %v1683 = vmul.f32 %v1677, %v1677
        %v1684 = vsub.f32 %v1682, %v1683
        %v1685 = vsub.f32 %v1671, %v1677
        %v1686 = vadd.f32 %v1684, 1e-05
        %v1687 = vrsqrt.pop %v1686
        %v1688 = vmul.f32 %v1685, %v1687
        %v1690 = vlaneseq
        %v1691 = vshrl.u32 %v1690, 7
        %v1692 = vsub.s32 0, %v1691
        %v1693 = vrot.slane %v1672, %v1692
        %v1695 = vmul.f32 %v1688, %v1693
        %v1697 = vlaneseq
        %v1698 = vshrl.u32 %v1697, 7
        %v1699 = vsub.s32 0, %v1698
        %v1700 = vrot.slane %v1673, %v1699
        %v1702 = vadd.f32 %v1695, %v1700
        %v1703 = vpack.c.bf16 %v1702, %v1702
        %v1704 = vld [vmem:[%s14] sm:$0xf]
        %v1705 = vld [vmem:[%s14 + $0x4] sm:$0xf]
        %v1706 = vld [vmem:[%s14 + $0x8] sm:$0xf]
        %v1707 = vld [vmem:[%s14 + $0xc] sm:$0xf]
        %v1708 = vld [vmem:[%s15] sm:$0x1]
        %v1710 = vlaneseq
        %v1711 = vshrl.u32 %v1710, 7
        %v1712 = vsub.s32 0, %v1711
        %v1713 = vrot.slane %v1708, %v1712
        %v1719 = vunpack.c.l.b16 %v1704
        %v1720 = vunpack.c.l.b16 %v1705
        %v1721 = vunpack.c.l.b16 %v1706
        %v1722 = vunpack.c.l.b16 %v1707
        %v1723 = vpack.c.b16 %v1720, %v1719
        %v1724 = vpack.c.b16 %v1722, %v1721
        %v1728 = vsel %vm667, %v1703, 0
        %1730 = vmatprep.subr.bf16.mxu0 0
        %1731 = vmatpush1.bf16.msra.mxu0 0
        %1732 = vmatprep.subr.bf16.mxu0 0
        %1733 = vmatpush1.bf16.msra.mxu0 0
        %1734 = vmatprep.subr.bf16.mxu0 0
        %1735 = vmatpush1.bf16.msra.mxu0 0
        %1736 = vmatprep.subr.bf16.mxu0 0
        %1737 = vmatpush1.bf16.msra.mxu0 0
        %1738 = vmatprep.subr.bf16.mxu0 0
        %1739 = vmatpush1.bf16.msra.mxu0 0
        %1740 = vmatprep.subr.bf16.mxu0 0
        %1741 = vmatpush1.bf16.msra.mxu0 0
        %1742 = vmatprep.subr.bf16.mxu0 0
        %1743 = vmatpush1.bf16.msra.mxu0 %v1724
        %1744 = vmatprep.subr.bf16.mxu0 0
        %1745 = vmatpush1.bf16.msra.mxu0 %v1723
        %1746 = vmatprep.subr.bf16.mxu0 0
        %1747 = vmatpush2.bf16.msra.mxu0 0
        %1748 = vmatprep.subr.bf16.mxu0 0
        %1749 = vmatpush2.bf16.msra.mxu0 0
        %1750 = vmatprep.subr.bf16.mxu0 0
        %1751 = vmatpush2.bf16.msra.mxu0 0
        %1752 = vmatprep.subr.bf16.mxu0 0
        %1753 = vmatpush2.bf16.msra.mxu0 0
        %1754 = vmatprep.subr.bf16.mxu0 0
        %1755 = vmatpush2.bf16.msra.mxu0 0
        %1756 = vmatprep.subr.bf16.mxu0 0
        %1757 = vmatpush2.bf16.msra.mxu0 0
        %1758 = vmatprep.subr.bf16.mxu0 0
        %1759 = vmatpush2.bf16.msra.mxu0 0
        %1760 = vmatprep.subr.bf16.mxu0 0
        %1761 = vmatpush2.bf16.msra.mxu0 0
        %1762 = vmatprep.mubr.bf16.mxu0 0
        %1763 = vmatmul.mubr.bf16.gmra.mxu0 %v1728
        %v1764 = vpop.f32.mrf.mxu0
        %v1765 = vadd.f32 %v1713, %v1764
        %v1766 = vpop.f32.mrf.mxu0
        %v1767 = vpop.f32.mrf.mxu0
        %v1768 = vpop.f32.mrf.mxu0
        %1769 = vdwg.mxu0
        %v1770 = vmul.f32 %v1765, 0.5
        %v1771 = vmul.f32 %v1765, 0.70710677
        %v1772 = verf.f32.pop %v1771
        %v1773 = vadd.f32 %v1772, 1.0
        %v1774 = vmul.f32 %v1770, %v1773
        %v1775 = vpack.c.bf16 %v1774, %v1774
        %v1776 = vld [vmem:[%s16] sm:$0xf]
        %v1777 = vld [vmem:[%s16 + $0x4] sm:$0xf]
        %v1778 = vld [vmem:[%s16 + $0x8] sm:$0xf]
        %v1779 = vld [vmem:[%s16 + $0xc] sm:$0xf]
        %v1780 = vld [vmem:[%s16 + $0x10] sm:$0xf]
        %v1781 = vld [vmem:[%s16 + $0x14] sm:$0xf]
        %v1782 = vld [vmem:[%s16 + $0x18] sm:$0xf]
        %v1783 = vld [vmem:[%s16 + $0x1c] sm:$0xf]
        %v1784 = vld [vmem:[%s17] sm:$0x1]
        %v1786 = vlaneseq
        %v1787 = vshrl.u32 %v1786, 7
        %v1788 = vsub.s32 0, %v1787
        %v1789 = vrot.slane %v1784, %v1788
        %v1799 = vunpack.c.l.b16 %v1776
        %v1800 = vunpack.c.l.b16 %v1777
        %v1801 = vunpack.c.l.b16 %v1778
        %v1802 = vunpack.c.l.b16 %v1779
        %v1803 = vunpack.c.l.b16 %v1780
        %v1804 = vunpack.c.l.b16 %v1781
        %v1805 = vunpack.c.l.b16 %v1782
        %v1806 = vunpack.c.l.b16 %v1783
        %v1807 = vpack.c.b16 %v1800, %v1799
        %v1808 = vpack.c.b16 %v1802, %v1801
        %v1809 = vpack.c.b16 %v1804, %v1803
        %v1810 = vpack.c.b16 %v1806, %v1805
        %vm1815 = vcmask 523264
        %v1817 = vsel %vm1815, %v1775, 0
        %1819 = vmatprep.subr.bf16.mxu0 0
        %1820 = vmatpush1.bf16.msra.mxu0 0
        %1821 = vmatprep.subr.bf16.mxu0 0
        %1822 = vmatpush1.bf16.msra.mxu0 0
        %1823 = vmatprep.subr.bf16.mxu0 0
        %1824 = vmatpush1.bf16.msra.mxu0 0
        %1825 = vmatprep.subr.bf16.mxu0 0
        %1826 = vmatpush1.bf16.msra.mxu0 0
        %1827 = vmatprep.subr.bf16.mxu0 0
        %1828 = vmatpush1.bf16.msra.mxu0 %v1810
        %1829 = vmatprep.subr.bf16.mxu0 0
        %1830 = vmatpush1.bf16.msra.mxu0 %v1809
        %1831 = vmatprep.subr.bf16.mxu0 0
        %1832 = vmatpush1.bf16.msra.mxu0 %v1808
        %1833 = vmatprep.subr.bf16.mxu0 0
        %1834 = vmatpush1.bf16.msra.mxu0 %v1807
        %1835 = vmatprep.subr.bf16.mxu0 0
        %1836 = vmatpush2.bf16.msra.mxu0 0
        %1837 = vmatprep.subr.bf16.mxu0 0
        %1838 = vmatpush2.bf16.msra.mxu0 0
        %1839 = vmatprep.subr.bf16.mxu0 0
        %1840 = vmatpush2.bf16.msra.mxu0 0
        %1841 = vmatprep.subr.bf16.mxu0 0
        %1842 = vmatpush2.bf16.msra.mxu0 0
        %1843 = vmatprep.subr.bf16.mxu0 0
        %1844 = vmatpush2.bf16.msra.mxu0 0
        %1845 = vmatprep.subr.bf16.mxu0 0
        %1846 = vmatpush2.bf16.msra.mxu0 0
        %1847 = vmatprep.subr.bf16.mxu0 0
        %1848 = vmatpush2.bf16.msra.mxu0 0
        %1849 = vmatprep.subr.bf16.mxu0 0
        %1850 = vmatpush2.bf16.msra.mxu0 0
        %1851 = vmatprep.mubr.bf16.mxu0 0
        %1852 = vmatmul.mubr.bf16.gmra.mxu0 %v1817
        %v1853 = vpop.f32.mrf.mxu0
        %v1854 = vadd.f32 %v1789, %v1853
        %v1855 = vpop.f32.mrf.mxu0
        %v1856 = vpop.f32.mrf.mxu0
        %v1857 = vpop.f32.mrf.mxu0
        %1858 = vdwg.mxu0
        %v1859 = vadd.f32 %v1854, %v1671
        %1860 = vst.msk [vmem:[%s658] sm:$0xff] %vm667, %v1859
        %s1861 = scalar_lea.vmem %s6, 1
        %v1862 = vld [vmem:[%s1861] sm:$0x1]
        %s1863 = scalar_lea.vmem %s7, 1
        %v1864 = vld [vmem:[%s1863] sm:$0x1]
        %v1865 = vsel %vm667, %v1859, 0.0
        %1866 = vadd.xlane.f32.xlu0 %v1865
        %v1867 = vpop.xlane.xlu0 %1866
        %v1868 = vmul.f32 %v1867, %v671
        %v1869 = vmul.f32 %v1859, %v1859
        %v1870 = vsel %vm667, %v1869, 0.0
        %1871 = vadd.xlane.f32.xlu0 %v1870
        %v1872 = vpop.xlane.xlu0 %1871
        %v1873 = vmul.f32 %v1872, %v671
        %v1874 = vmul.f32 %v1868, %v1868
        %v1875 = vsub.f32 %v1873, %v1874
        %v1876 = vsub.f32 %v1859, %v1868
        %v1877 = vadd.f32 %v1875, 1e-05
        %v1878 = vrsqrt.pop %v1877
        %v1879 = vmul.f32 %v1876, %v1878
        %v1881 = vlaneseq
        %v1882 = vshrl.u32 %v1881, 7
        %v1883 = vsub.s32 0, %v1882
        %v1884 = vrot.slane %v1862, %v1883
        %v1886 = vmul.f32 %v1879, %v1884
        %v1888 = vlaneseq
        %v1889 = vshrl.u32 %v1888, 7
        %v1890 = vsub.s32 0, %v1889
        %v1891 = vrot.slane %v1864, %v1890
        %v1893 = vadd.f32 %v1886, %v1891
        %v1894 = vpack.c.bf16 %v1893, %v1893
        %s1895 = scalar_lea.vmem %s10, 64
        %v1896 = vld [vmem:[%s1895] sm:$0xf]
        %v1897 = vld [vmem:[%s1895 + $0x4] sm:$0xf]
        %v1898 = vld [vmem:[%s1895 + $0x8] sm:$0xf]
        %v1899 = vld [vmem:[%s1895 + $0xc] sm:$0xf]
        %v1900 = vld [vmem:[%s1895 + $0x10] sm:$0xf]
        %v1901 = vld [vmem:[%s1895 + $0x14] sm:$0xf]
        %v1902 = vld [vmem:[%s1895 + $0x18] sm:$0xf]
        %v1903 = vld [vmem:[%s1895 + $0x1c] sm:$0xf]
        %v1904 = vld [vmem:[%s1895 + $0x20] sm:$0xf]
        %v1905 = vld [vmem:[%s1895 + $0x24] sm:$0xf]
        %v1906 = vld [vmem:[%s1895 + $0x28] sm:$0xf]
        %v1907 = vld [vmem:[%s1895 + $0x2c] sm:$0xf]
        %v1908 = vld [vmem:[%s1895 + $0x30] sm:$0xf]
        %v1909 = vld [vmem:[%s1895 + $0x34] sm:$0xf]
        %v1910 = vld [vmem:[%s1895 + $0x38] sm:$0xf]
        %v1911 = vld [vmem:[%s1895 + $0x3c] sm:$0xf]
        %s1912 = scalar_lea.vmem %s11, 4
        %v1913 = vld [vmem:[%s1912] sm:$0x1]
        %v1914 = vld [vmem:[%s1912 + $0x1] sm:$0x1]
        %v1915 = vld [vmem:[%s1912 + $0x2] sm:$0x1]
        %v1916 = vld [vmem:[%s1912 + $0x3] sm:$0x1]
        %v1921 = vlaneseq
        %v1922 = vshrl.u32 %v1921, 7
        %v1923 = vsub.s32 0, %v1922
        %v1924 = vrot.slane %v1913, %v1923
        %v1925 = vlaneseq
        %v1926 = vshrl.u32 %v1925, 7
        %v1927 = vsub.s32 0, %v1926
        %v1928 = vrot.slane %v1914, %v1927
        %v1929 = vlaneseq
        %v1930 = vshrl.u32 %v1929, 7
        %v1931 = vsub.s32 0, %v1930
        %v1932 = vrot.slane %v1915, %v1931
        %v1933 = vlaneseq
        %v1934 = vshrl.u32 %v1933, 7
        %v1935 = vsub.s32 0, %v1934
        %v1936 = vrot.slane %v1916, %v1935
        %v1945 = vunpack.c.l.b16 %v1896
        %v1946 = vunpack.c.l.b16 %v1897
        %v1947 = vunpack.c.l.b16 %v1898
        %v1948 = vunpack.c.l.b16 %v1899
        %v1949 = vpack.c.b16 %v1946, %v1945
        %v1950 = vpack.c.b16 %v1948, %v1947
        %v1954 = vsel %vm667, %v1894, 0
        %1956 = vmatprep.subr.bf16.mxu0 0
        %1957 = vmatpush1.bf16.msra.mxu0 0
        %1958 = vmatprep.subr.bf16.mxu0 0
        %1959 = vmatpush1.bf16.msra.mxu0 0
        %1960 = vmatprep.subr.bf16.mxu0 0
        %1961 = vmatpush1.bf16.msra.mxu0 0
        %1962 = vmatprep.subr.bf16.mxu0 0
        %1963 = vmatpush1.bf16.msra.mxu0 0
        %1964 = vmatprep.subr.bf16.mxu0 0
        %1965 = vmatpush1.bf16.msra.mxu0 0
        %1966 = vmatprep.subr.bf16.mxu0 0
        %1967 = vmatpush1.bf16.msra.mxu0 0
        %1968 = vmatprep.subr.bf16.mxu0 0
        %1969 = vmatpush1.bf16.msra.mxu0 %v1950
        %1970 = vmatprep.subr.bf16.mxu0 0
        %1971 = vmatpush1.bf16.msra.mxu0 %v1949
        %1972 = vmatprep.subr.bf16.mxu0 0
        %1973 = vmatpush2.bf16.msra.mxu0 0
        %1974 = vmatprep.subr.bf16.mxu0 0
        %1975 = vmatpush2.bf16.msra.mxu0 0
        %1976 = vmatprep.subr.bf16.mxu0 0
        %1977 = vmatpush2.bf16.msra.mxu0 0
        %1978 = vmatprep.subr.bf16.mxu0 0
        %1979 = vmatpush2.bf16.msra.mxu0 0
        %1980 = vmatprep.subr.bf16.mxu0 0
        %1981 = vmatpush2.bf16.msra.mxu0 0
        %1982 = vmatprep.subr.bf16.mxu0 0
        %1983 = vmatpush2.bf16.msra.mxu0 0
        %1984 = vmatprep.subr.bf16.mxu0 0
        %1985 = vmatpush2.bf16.msra.mxu0 0
        %1986 = vmatprep.subr.bf16.mxu0 0
        %1987 = vmatpush2.bf16.msra.mxu0 0
        %1988 = vmatprep.mubr.bf16.mxu0 0
        %1989 = vmatmul.mubr.bf16.gmra.mxu0 %v1954
        %v1990 = vpop.f32.mrf.mxu0
        %v1991 = vadd.f32 %v1924, %v1990
        %v1992 = vpop.f32.mrf.mxu0
        %v1993 = vpop.f32.mrf.mxu0
        %v1994 = vpop.f32.mrf.mxu0
        %1995 = vdwg.mxu0
        %v2000 = vunpack.c.l.b16 %v1900
        %v2001 = vunpack.c.l.b16 %v1901
        %v2002 = vunpack.c.l.b16 %v1902
        %v2003 = vunpack.c.l.b16 %v1903
        %v2004 = vpack.c.b16 %v2001, %v2000
        %v2005 = vpack.c.b16 %v2003, %v2002
        %2008 = vmatprep.subr.bf16.mxu0 0
        %2009 = vmatpush1.bf16.msra.mxu0 0
        %2010 = vmatprep.subr.bf16.mxu0 0
        %2011 = vmatpush1.bf16.msra.mxu0 0
        %2012 = vmatprep.subr.bf16.mxu0 0
        %2013 = vmatpush1.bf16.msra.mxu0 0
        %2014 = vmatprep.subr.bf16.mxu0 0
        %2015 = vmatpush1.bf16.msra.mxu0 0
        %2016 = vmatprep.subr.bf16.mxu0 0
        %2017 = vmatpush1.bf16.msra.mxu0 0
        %2018 = vmatprep.subr.bf16.mxu0 0
        %2019 = vmatpush1.bf16.msra.mxu0 0
        %2020 = vmatprep.subr.bf16.mxu0 0
        %2021 = vmatpush1.bf16.msra.mxu0 %v2005
        %2022 = vmatprep.subr.bf16.mxu0 0
        %2023 = vmatpush1.bf16.msra.mxu0 %v2004
        %2024 = vmatprep.subr.bf16.mxu0 0
        %2025 = vmatpush2.bf16.msra.mxu0 0
        %2026 = vmatprep.subr.bf16.mxu0 0
        %2027 = vmatpush2.bf16.msra.mxu0 0
        %2028 = vmatprep.subr.bf16.mxu0 0
        %2029 = vmatpush2.bf16.msra.mxu0 0
        %2030 = vmatprep.subr.bf16.mxu0 0
        %2031 = vmatpush2.bf16.msra.mxu0 0
        %2032 = vmatprep.subr.bf16.mxu0 0
        %2033 = vmatpush2.bf16.msra.mxu0 0
        %2034 = vmatprep.subr.bf16.mxu0 0
        %2035 = vmatpush2.bf16.msra.mxu0 0
        %2036 = vmatprep.subr.bf16.mxu0 0
        %2037 = vmatpush2.bf16.msra.mxu0 0
        %2038 = vmatprep.subr.bf16.mxu0 0
        %2039 = vmatpush2.bf16.msra.mxu0 0
        %2040 = vmatprep.mubr.bf16.mxu0 0
        %2041 = vmatmul.mubr.bf16.gmra.mxu0 %v1954
        %v2042 = vpop.f32.mrf.mxu0
        %v2043 = vadd.f32 %v1928, %v2042
        %v2044 = vpop.f32.mrf.mxu0
        %v2045 = vpop.f32.mrf.mxu0
        %v2046 = vpop.f32.mrf.mxu0
        %2047 = vdwg.mxu0
        %v2052 = vunpack.c.l.b16 %v1904
        %v2053 = vunpack.c.l.b16 %v1905
        %v2054 = vunpack.c.l.b16 %v1906
        %v2055 = vunpack.c.l.b16 %v1907
        %v2056 = vpack.c.b16 %v2053, %v2052
        %v2057 = vpack.c.b16 %v2055, %v2054
        %2060 = vmatprep.subr.bf16.mxu0 0
        %2061 = vmatpush1.bf16.msra.mxu0 0
        %2062 = vmatprep.subr.bf16.mxu0 0
        %2063 = vmatpush1.bf16.msra.mxu0 0
        %2064 = vmatprep.subr.bf16.mxu0 0
        %2065 = vmatpush1.bf16.msra.mxu0 0
        %2066 = vmatprep.subr.bf16.mxu0 0
        %2067 = vmatpush1.bf16.msra.mxu0 0
        %2068 = vmatprep.subr.bf16.mxu0 0
        %2069 = vmatpush1.bf16.msra.mxu0 0
        %2070 = vmatprep.subr.bf16.mxu0 0
        %2071 = vmatpush1.bf16.msra.mxu0 0
        %2072 = vmatprep.subr.bf16.mxu0 0
        %2073 = vmatpush1.bf16.msra.mxu0 %v2057
        %2074 = vmatprep.subr.bf16.mxu0 0
        %2075 = vmatpush1.bf16.msra.mxu0 %v2056
        %2076 = vmatprep.subr.bf16.mxu0 0
        %2077 = vmatpush2.bf16.msra.mxu0 0
        %2078 = vmatprep.subr.bf16.mxu0 0
        %2079 = vmatpush2.bf16.msra.mxu0 0
        %2080 = vmatprep.subr.bf16.mxu0 0
        %2081 = vmatpush2.bf16.msra.mxu0 0
        %2082 = vmatprep.subr.bf16.mxu0 0
        %2083 = vmatpush2.bf16.msra.mxu0 0
        %2084 = vmatprep.subr.bf16.mxu0 0
        %2085 = vmatpush2.bf16.msra.mxu0 0
        %2086 = vmatprep.subr.bf16.mxu0 0
        %2087 = vmatpush2.bf16.msra.mxu0 0
        %2088 = vmatprep.subr.bf16.mxu0 0
        %2089 = vmatpush2.bf16.msra.mxu0 0
        %2090 = vmatprep.subr.bf16.mxu0 0
        %2091 = vmatpush2.bf16.msra.mxu0 0
        %2092 = vmatprep.mubr.bf16.mxu0 0
        %2093 = vmatmul.mubr.bf16.gmra.mxu0 %v1954
        %v2094 = vpop.f32.mrf.mxu0
        %v2095 = vadd.f32 %v1932, %v2094
        %v2096 = vpop.f32.mrf.mxu0
        %v2097 = vpop.f32.mrf.mxu0
        %v2098 = vpop.f32.mrf.mxu0
        %2099 = vdwg.mxu0
        %v2104 = vunpack.c.l.b16 %v1908
        %v2105 = vunpack.c.l.b16 %v1909
        %v2106 = vunpack.c.l.b16 %v1910
        %v2107 = vunpack.c.l.b16 %v1911
        %v2108 = vpack.c.b16 %v2105, %v2104
        %v2109 = vpack.c.b16 %v2107, %v2106
        %2112 = vmatprep.subr.bf16.mxu0 0
        %2113 = vmatpush1.bf16.msra.mxu0 0
        %2114 = vmatprep.subr.bf16.mxu0 0
        %2115 = vmatpush1.bf16.msra.mxu0 0
        %2116 = vmatprep.subr.bf16.mxu0 0
        %2117 = vmatpush1.bf16.msra.mxu0 0
        %2118 = vmatprep.subr.bf16.mxu0 0
        %2119 = vmatpush1.bf16.msra.mxu0 0
        %2120 = vmatprep.subr.bf16.mxu0 0
        %2121 = vmatpush1.bf16.msra.mxu0 0
        %2122 = vmatprep.subr.bf16.mxu0 0
        %2123 = vmatpush1.bf16.msra.mxu0 0
        %2124 = vmatprep.subr.bf16.mxu0 0
        %2125 = vmatpush1.bf16.msra.mxu0 %v2109
        %2126 = vmatprep.subr.bf16.mxu0 0
        %2127 = vmatpush1.bf16.msra.mxu0 %v2108
        %2128 = vmatprep.subr.bf16.mxu0 0
        %2129 = vmatpush2.bf16.msra.mxu0 0
        %2130 = vmatprep.subr.bf16.mxu0 0
        %2131 = vmatpush2.bf16.msra.mxu0 0
        %2132 = vmatprep.subr.bf16.mxu0 0
        %2133 = vmatpush2.bf16.msra.mxu0 0
        %2134 = vmatprep.subr.bf16.mxu0 0
        %2135 = vmatpush2.bf16.msra.mxu0 0
        %2136 = vmatprep.subr.bf16.mxu0 0
        %2137 = vmatpush2.bf16.msra.mxu0 0
        %2138 = vmatprep.subr.bf16.mxu0 0
        %2139 = vmatpush2.bf16.msra.mxu0 0
        %2140 = vmatprep.subr.bf16.mxu0 0
        %2141 = vmatpush2.bf16.msra.mxu0 0
        %2142 = vmatprep.subr.bf16.mxu0 0
        %2143 = vmatpush2.bf16.msra.mxu0 0
        %2144 = vmatprep.mubr.bf16.mxu0 0
        %2145 = vmatmul.mubr.bf16.gmra.mxu0 %v1954
        %v2146 = vpop.f32.mrf.mxu0
        %v2147 = vadd.f32 %v1936, %v2146
        %v2148 = vpop.f32.mrf.mxu0
        %v2149 = vpop.f32.mrf.mxu0
        %v2150 = vpop.f32.mrf.mxu0
        %2151 = vdwg.mxu0
        %v2152 = vpack.c.bf16 %v1991, %v1991
        %v2153 = vpack.c.bf16 %v2043, %v2043
        %v2154 = vpack.c.bf16 %v2095, %v2095
        %v2155 = vpack.c.bf16 %v2147, %v2147
        %2157 = vrot.lane.b32.xlu0 %v2152, 120
        %v2158 = vpop.permute.xlu0 %2157
        %v2160 = vsel %vm1025, %v2152, 0
        %v2163 = vsel %vm1025, %v2158, 0
        %2165 = vmatprep.subr.bf16.mxu0 0
        %2166 = vmatpush1.bf16.xpose.msra.mxu0 0
        %2167 = vmatprep.subr.bf16.mxu0 0
        %2168 = vmatpush1.bf16.xpose.msra.mxu0 0
        %2169 = vmatprep.subr.bf16.mxu0 0
        %2170 = vmatpush1.bf16.xpose.msra.mxu0 0
        %2171 = vmatprep.subr.bf16.mxu0 0
        %2172 = vmatpush1.bf16.xpose.msra.mxu0 0
        %2173 = vmatprep.subr.bf16.mxu0 0
        %2174 = vmatpush1.bf16.xpose.msra.mxu0 0
        %2175 = vmatprep.subr.bf16.mxu0 0
        %2176 = vmatpush1.bf16.xpose.msra.mxu0 0
        %2177 = vmatprep.subr.bf16.mxu0 0
        %2178 = vmatpush1.bf16.xpose.msra.mxu0 0
        %2179 = vmatprep.subr.bf16.mxu0 0
        %2180 = vmatpush1.bf16.xpose.msra.mxu0 %v2163
        %2181 = vmatprep.subr.bf16.mxu0 0
        %2182 = vmatpush2.bf16.xpose.msra.mxu0 0
        %2183 = vmatprep.subr.bf16.mxu0 0
        %2184 = vmatpush2.bf16.xpose.msra.mxu0 0
        %2185 = vmatprep.subr.bf16.mxu0 0
        %2186 = vmatpush2.bf16.xpose.msra.mxu0 0
        %2187 = vmatprep.subr.bf16.mxu0 0
        %2188 = vmatpush2.bf16.xpose.msra.mxu0 0
        %2189 = vmatprep.subr.bf16.mxu0 0
        %2190 = vmatpush2.bf16.xpose.msra.mxu0 0
        %2191 = vmatprep.subr.bf16.mxu0 0
        %2192 = vmatpush2.bf16.xpose.msra.mxu0 0
        %2193 = vmatprep.subr.bf16.mxu0 0
        %2194 = vmatpush2.bf16.xpose.msra.mxu0 0
        %2195 = vmatprep.subr.bf16.mxu0 0
        %2196 = vmatpush2.bf16.xpose.msra.mxu0 0
        %2197 = vmatprep.mubr.bf16.mxu0 0
        %2198 = vmatmul.mubr.bf16.gmra.mxu0 %v2160
        %v2199 = vpop.f32.mrf.mxu0
        %v2200 = vadd.f32 0.0, %v2199
        %v2201 = vpop.f32.mrf.mxu0
        %v2202 = vpop.f32.mrf.mxu0
        %v2203 = vpop.f32.mrf.mxu0
        %2204 = vdwg.mxu0
        %2206 = vrot.lane.b32.xlu0 %v2153, 120
        %v2207 = vpop.permute.xlu0 %2206
        %v2209 = vsel %vm1025, %v2153, 0
        %v2212 = vsel %vm1025, %v2207, 0
        %2214 = vmatprep.subr.bf16.mxu0 0
        %2215 = vmatpush1.bf16.xpose.msra.mxu0 0
        %2216 = vmatprep.subr.bf16.mxu0 0
        %2217 = vmatpush1.bf16.xpose.msra.mxu0 0
        %2218 = vmatprep.subr.bf16.mxu0 0
        %2219 = vmatpush1.bf16.xpose.msra.mxu0 0
        %2220 = vmatprep.subr.bf16.mxu0 0
        %2221 = vmatpush1.bf16.xpose.msra.mxu0 0
        %2222 = vmatprep.subr.bf16.mxu0 0
        %2223 = vmatpush1.bf16.xpose.msra.mxu0 0
        %2224 = vmatprep.subr.bf16.mxu0 0
        %2225 = vmatpush1.bf16.xpose.msra.mxu0 0
        %2226 = vmatprep.subr.bf16.mxu0 0
        %2227 = vmatpush1.bf16.xpose.msra.mxu0 0
        %2228 = vmatprep.subr.bf16.mxu0 0
        %2229 = vmatpush1.bf16.xpose.msra.mxu0 %v2212
        %2230 = vmatprep.subr.bf16.mxu0 0
        %2231 = vmatpush2.bf16.xpose.msra.mxu0 0
        %2232 = vmatprep.subr.bf16.mxu0 0
        %2233 = vmatpush2.bf16.xpose.msra.mxu0 0
        %2234 = vmatprep.subr.bf16.mxu0 0
        %2235 = vmatpush2.bf16.xpose.msra.mxu0 0
        %2236 = vmatprep.subr.bf16.mxu0 0
        %2237 = vmatpush2.bf16.xpose.msra.mxu0 0
        %2238 = vmatprep.subr.bf16.mxu0 0
        %2239 = vmatpush2.bf16.xpose.msra.mxu0 0
        %2240 = vmatprep.subr.bf16.mxu0 0
        %2241 = vmatpush2.bf16.xpose.msra.mxu0 0
        %2242 = vmatprep.subr.bf16.mxu0 0
        %2243 = vmatpush2.bf16.xpose.msra.mxu0 0
        %2244 = vmatprep.subr.bf16.mxu0 0
        %2245 = vmatpush2.bf16.xpose.msra.mxu0 0
        %2246 = vmatprep.mubr.bf16.mxu0 0
        %2247 = vmatmul.mubr.bf16.gmra.mxu0 %v2209
        %v2248 = vpop.f32.mrf.mxu0
        %v2249 = vadd.f32 0.0, %v2248
        %v2250 = vpop.f32.mrf.mxu0
        %v2251 = vpop.f32.mrf.mxu0
        %v2252 = vpop.f32.mrf.mxu0
        %2253 = vdwg.mxu0
        %2255 = vrot.lane.b32.xlu0 %v2154, 120
        %v2256 = vpop.permute.xlu0 %2255
        %v2258 = vsel %vm1025, %v2154, 0
        %v2261 = vsel %vm1025, %v2256, 0
        %2263 = vmatprep.subr.bf16.mxu0 0
        %2264 = vmatpush1.bf16.xpose.msra.mxu0 0
        %2265 = vmatprep.subr.bf16.mxu0 0
        %2266 = vmatpush1.bf16.xpose.msra.mxu0 0
        %2267 = vmatprep.subr.bf16.mxu0 0
        %2268 = vmatpush1.bf16.xpose.msra.mxu0 0
        %2269 = vmatprep.subr.bf16.mxu0 0
        %2270 = vmatpush1.bf16.xpose.msra.mxu0 0
        %2271 = vmatprep.subr.bf16.mxu0 0
        %2272 = vmatpush1.bf16.xpose.msra.mxu0 0
        %2273 = vmatprep.subr.bf16.mxu0 0
        %2274 = vmatpush1.bf16.xpose.msra.mxu0 0
        %2275 = vmatprep.subr.bf16.mxu0 0
        %2276 = vmatpush1.bf16.xpose.msra.mxu0 0
        %2277 = vmatprep.subr.bf16.mxu0 0
        %2278 = vmatpush1.bf16.xpose.msra.mxu0 %v2261
        %2279 = vmatprep.subr.bf16.mxu0 0
        %2280 = vmatpush2.bf16.xpose.msra.mxu0 0
        %2281 = vmatprep.subr.bf16.mxu0 0
        %2282 = vmatpush2.bf16.xpose.msra.mxu0 0
        %2283 = vmatprep.subr.bf16.mxu0 0
        %2284 = vmatpush2.bf16.xpose.msra.mxu0 0
        %2285 = vmatprep.subr.bf16.mxu0 0
        %2286 = vmatpush2.bf16.xpose.msra.mxu0 0
        %2287 = vmatprep.subr.bf16.mxu0 0
        %2288 = vmatpush2.bf16.xpose.msra.mxu0 0
        %2289 = vmatprep.subr.bf16.mxu0 0
        %2290 = vmatpush2.bf16.xpose.msra.mxu0 0
        %2291 = vmatprep.subr.bf16.mxu0 0
        %2292 = vmatpush2.bf16.xpose.msra.mxu0 0
        %2293 = vmatprep.subr.bf16.mxu0 0
        %2294 = vmatpush2.bf16.xpose.msra.mxu0 0
        %2295 = vmatprep.mubr.bf16.mxu0 0
        %2296 = vmatmul.mubr.bf16.gmra.mxu0 %v2258
        %v2297 = vpop.f32.mrf.mxu0
        %v2298 = vadd.f32 0.0, %v2297
        %v2299 = vpop.f32.mrf.mxu0
        %v2300 = vpop.f32.mrf.mxu0
        %v2301 = vpop.f32.mrf.mxu0
        %2302 = vdwg.mxu0
        %2304 = vrot.lane.b32.xlu0 %v2155, 120
        %v2305 = vpop.permute.xlu0 %2304
        %v2307 = vsel %vm1025, %v2155, 0
        %v2310 = vsel %vm1025, %v2305, 0
        %2312 = vmatprep.subr.bf16.mxu0 0
        %2313 = vmatpush1.bf16.xpose.msra.mxu0 0
        %2314 = vmatprep.subr.bf16.mxu0 0
        %2315 = vmatpush1.bf16.xpose.msra.mxu0 0
        %2316 = vmatprep.subr.bf16.mxu0 0
        %2317 = vmatpush1.bf16.xpose.msra.mxu0 0
        %2318 = vmatprep.subr.bf16.mxu0 0
        %2319 = vmatpush1.bf16.xpose.msra.mxu0 0
        %2320 = vmatprep.subr.bf16.mxu0 0
        %2321 = vmatpush1.bf16.xpose.msra.mxu0 0
        %2322 = vmatprep.subr.bf16.mxu0 0
        %2323 = vmatpush1.bf16.xpose.msra.mxu0 0
        %2324 = vmatprep.subr.bf16.mxu0 0
        %2325 = vmatpush1.bf16.xpose.msra.mxu0 0
        %2326 = vmatprep.subr.bf16.mxu0 0
        %2327 = vmatpush1.bf16.xpose.msra.mxu0 %v2310
        %2328 = vmatprep.subr.bf16.mxu0 0
        %2329 = vmatpush2.bf16.xpose.msra.mxu0 0
        %2330 = vmatprep.subr.bf16.mxu0 0
        %2331 = vmatpush2.bf16.xpose.msra.mxu0 0
        %2332 = vmatprep.subr.bf16.mxu0 0
        %2333 = vmatpush2.bf16.xpose.msra.mxu0 0
        %2334 = vmatprep.subr.bf16.mxu0 0
        %2335 = vmatpush2.bf16.xpose.msra.mxu0 0
        %2336 = vmatprep.subr.bf16.mxu0 0
        %2337 = vmatpush2.bf16.xpose.msra.mxu0 0
        %2338 = vmatprep.subr.bf16.mxu0 0
        %2339 = vmatpush2.bf16.xpose.msra.mxu0 0
        %2340 = vmatprep.subr.bf16.mxu0 0
        %2341 = vmatpush2.bf16.xpose.msra.mxu0 0
        %2342 = vmatprep.subr.bf16.mxu0 0
        %2343 = vmatpush2.bf16.xpose.msra.mxu0 0
        %2344 = vmatprep.mubr.bf16.mxu0 0
        %2345 = vmatmul.mubr.bf16.gmra.mxu0 %v2307
        %v2346 = vpop.f32.mrf.mxu0
        %v2347 = vadd.f32 0.0, %v2346
        %v2348 = vpop.f32.mrf.mxu0
        %v2349 = vpop.f32.mrf.mxu0
        %v2350 = vpop.f32.mrf.mxu0
        %2351 = vdwg.mxu0
        %v2352 = vmul.f32 %v2200, 0.35355338
        %v2353 = vmul.f32 %v2249, 0.35355338
        %v2354 = vmul.f32 %v2298, 0.35355338
        %v2355 = vmul.f32 %v2347, 0.35355338
        %v2356 = vsel %vm1025, %v2352, -inf
        %2357 = vmax.xlane.f32.xlu0 %v2356
        %v2358 = vpop.xlane.xlu0 %2357
        %v2359 = vsel %vm1025, %v2353, -inf
        %2360 = vmax.xlane.f32.xlu0 %v2359
        %v2361 = vpop.xlane.xlu0 %2360
        %v2362 = vsel %vm1025, %v2354, -inf
        %2363 = vmax.xlane.f32.xlu0 %v2362
        %v2364 = vpop.xlane.xlu0 %2363
        %v2365 = vsel %vm1025, %v2355, -inf
        %2366 = vmax.xlane.f32.xlu0 %v2365
        %v2367 = vpop.xlane.xlu0 %2366
        %v2368 = vsub.f32 %v2352, %v2358
        %v2369 = vsub.f32 %v2353, %v2361
        %v2370 = vsub.f32 %v2354, %v2364
        %v2371 = vsub.f32 %v2355, %v2367
        %v2372 = vmul.f32 %v2368, 1.442695
        %v2373 = vpow.pop %v2372
        %v2374 = vmul.f32 %v2369, 1.442695
        %v2375 = vpow.pop %v2374
        %v2376 = vmul.f32 %v2370, 1.442695
        %v2377 = vpow.pop %v2376
        %v2378 = vmul.f32 %v2371, 1.442695
        %v2379 = vpow.pop %v2378
        %v2380 = vsel %vm1025, %v2373, 0.0
        %2381 = vadd.xlane.f32.xlu0 %v2380
        %v2382 = vpop.xlane.xlu0 %2381
        %v2383 = vsel %vm1025, %v2375, 0.0
        %2384 = vadd.xlane.f32.xlu0 %v2383
        %v2385 = vpop.xlane.xlu0 %2384
        %v2386 = vsel %vm1025, %v2377, 0.0
        %2387 = vadd.xlane.f32.xlu0 %v2386
        %v2388 = vpop.xlane.xlu0 %2387
        %v2389 = vsel %vm1025, %v2379, 0.0
        %2390 = vadd.xlane.f32.xlu0 %v2389
        %v2391 = vpop.xlane.xlu0 %2390
        %v2392 = vrcp.pop %v2382
        %v2393 = vmul.f32 %v2373, %v2392
        %v2394 = vrcp.pop %v2385
        %v2395 = vmul.f32 %v2375, %v2394
        %v2396 = vrcp.pop %v2388
        %v2397 = vmul.f32 %v2377, %v2396
        %v2398 = vrcp.pop %v2391
        %v2399 = vmul.f32 %v2379, %v2398
        %v2400 = vpack.c.bf16 %v2393, %v2393
        %v2401 = vpack.c.bf16 %v2395, %v2395
        %v2402 = vpack.c.bf16 %v2397, %v2397
        %v2403 = vpack.c.bf16 %v2399, %v2399
        %2404 = vrot.lane.b32.xlu0 %v2152, 112
        %v2405 = vpop.permute.xlu0 %2404
        %v2407 = vsel %vm1025, %v2400, 0
        %v2410 = vsel %vm1276, %v2405, 0
        %2412 = vmatprep.subr.bf16.mxu0 0
        %2413 = vmatpush1.bf16.msra.mxu0 0
        %2414 = vmatprep.subr.bf16.mxu0 0
        %2415 = vmatpush1.bf16.msra.mxu0 0
        %2416 = vmatprep.subr.bf16.mxu0 0
        %2417 = vmatpush1.bf16.msra.mxu0 0
        %2418 = vmatprep.subr.bf16.mxu0 0
        %2419 = vmatpush1.bf16.msra.mxu0 0
        %2420 = vmatprep.subr.bf16.mxu0 0
        %2421 = vmatpush1.bf16.msra.mxu0 0
        %2422 = vmatprep.subr.bf16.mxu0 0
        %2423 = vmatpush1.bf16.msra.mxu0 0
        %2424 = vmatprep.subr.bf16.mxu0 0
        %2425 = vmatpush1.bf16.msra.mxu0 0
        %2426 = vmatprep.subr.bf16.mxu0 0
        %2427 = vmatpush1.bf16.msra.mxu0 %v2410
        %2428 = vmatprep.subr.bf16.mxu0 0
        %2429 = vmatpush2.bf16.msra.mxu0 0
        %2430 = vmatprep.subr.bf16.mxu0 0
        %2431 = vmatpush2.bf16.msra.mxu0 0
        %2432 = vmatprep.subr.bf16.mxu0 0
        %2433 = vmatpush2.bf16.msra.mxu0 0
        %2434 = vmatprep.subr.bf16.mxu0 0
        %2435 = vmatpush2.bf16.msra.mxu0 0
        %2436 = vmatprep.subr.bf16.mxu0 0
        %2437 = vmatpush2.bf16.msra.mxu0 0
        %2438 = vmatprep.subr.bf16.mxu0 0
        %2439 = vmatpush2.bf16.msra.mxu0 0
        %2440 = vmatprep.subr.bf16.mxu0 0
        %2441 = vmatpush2.bf16.msra.mxu0 0
        %2442 = vmatprep.subr.bf16.mxu0 0
        %2443 = vmatpush2.bf16.msra.mxu0 0
        %2444 = vmatprep.mubr.bf16.mxu0 0
        %2445 = vmatmul.mubr.bf16.gmra.mxu0 %v2407
        %v2446 = vpop.f32.mrf.mxu0
        %v2447 = vadd.f32 0.0, %v2446
        %v2448 = vpop.f32.mrf.mxu0
        %v2449 = vpop.f32.mrf.mxu0
        %v2450 = vpop.f32.mrf.mxu0
        %2451 = vdwg.mxu0
        %2452 = vrot.lane.b32.xlu0 %v2153, 112
        %v2453 = vpop.permute.xlu0 %2452
        %v2455 = vsel %vm1025, %v2401, 0
        %v2458 = vsel %vm1276, %v2453, 0
        %2460 = vmatprep.subr.bf16.mxu0 0
        %2461 = vmatpush1.bf16.msra.mxu0 0
        %2462 = vmatprep.subr.bf16.mxu0 0
        %2463 = vmatpush1.bf16.msra.mxu0 0
        %2464 = vmatprep.subr.bf16.mxu0 0
        %2465 = vmatpush1.bf16.msra.mxu0 0
        %2466 = vmatprep.subr.bf16.mxu0 0
        %2467 = vmatpush1.bf16.msra.mxu0 0
        %2468 = vmatprep.subr.bf16.mxu0 0
        %2469 = vmatpush1.bf16.msra.mxu0 0
        %2470 = vmatprep.subr.bf16.mxu0 0
        %2471 = vmatpush1.bf16.msra.mxu0 0
        %2472 = vmatprep.subr.bf16.mxu0 0
        %2473 = vmatpush1.bf16.msra.mxu0 0
        %2474 = vmatprep.subr.bf16.mxu0 0
        %2475 = vmatpush1.bf16.msra.mxu0 %v2458
        %2476 = vmatprep.subr.bf16.mxu0 0
        %2477 = vmatpush2.bf16.msra.mxu0 0
        %2478 = vmatprep.subr.bf16.mxu0 0
        %2479 = vmatpush2.bf16.msra.mxu0 0
        %2480 = vmatprep.subr.bf16.mxu0 0
        %2481 = vmatpush2.bf16.msra.mxu0 0
        %2482 = vmatprep.subr.bf16.mxu0 0
        %2483 = vmatpush2.bf16.msra.mxu0 0
        %2484 = vmatprep.subr.bf16.mxu0 0
        %2485 = vmatpush2.bf16.msra.mxu0 0
        %2486 = vmatprep.subr.bf16.mxu0 0
        %2487 = vmatpush2.bf16.msra.mxu0 0
        %2488 = vmatprep.subr.bf16.mxu0 0
        %2489 = vmatpush2.bf16.msra.mxu0 0
        %2490 = vmatprep.subr.bf16.mxu0 0
        %2491 = vmatpush2.bf16.msra.mxu0 0
        %2492 = vmatprep.mubr.bf16.mxu0 0
        %2493 = vmatmul.mubr.bf16.gmra.mxu0 %v2455
        %v2494 = vpop.f32.mrf.mxu0
        %v2495 = vadd.f32 0.0, %v2494
        %v2496 = vpop.f32.mrf.mxu0
        %v2497 = vpop.f32.mrf.mxu0
        %v2498 = vpop.f32.mrf.mxu0
        %2499 = vdwg.mxu0
        %2500 = vrot.lane.b32.xlu0 %v2154, 112
        %v2501 = vpop.permute.xlu0 %2500
        %v2503 = vsel %vm1025, %v2402, 0
        %v2506 = vsel %vm1276, %v2501, 0
        %2508 = vmatprep.subr.bf16.mxu0 0
        %2509 = vmatpush1.bf16.msra.mxu0 0
        %2510 = vmatprep.subr.bf16.mxu0 0
        %2511 = vmatpush1.bf16.msra.mxu0 0
        %2512 = vmatprep.subr.bf16.mxu0 0
        %2513 = vmatpush1.bf16.msra.mxu0 0
        %2514 = vmatprep.subr.bf16.mxu0 0
        %2515 = vmatpush1.bf16.msra.mxu0 0
        %2516 = vmatprep.subr.bf16.mxu0 0
        %2517 = vmatpush1.bf16.msra.mxu0 0
        %2518 = vmatprep.subr.bf16.mxu0 0
        %2519 = vmatpush1.bf16.msra.mxu0 0
        %2520 = vmatprep.subr.bf16.mxu0 0
        %2521 = vmatpush1.bf16.msra.mxu0 0
        %2522 = vmatprep.subr.bf16.mxu0 0
        %2523 = vmatpush1.bf16.msra.mxu0 %v2506
        %2524 = vmatprep.subr.bf16.mxu0 0
        %2525 = vmatpush2.bf16.msra.mxu0 0
        %2526 = vmatprep.subr.bf16.mxu0 0
        %2527 = vmatpush2.bf16.msra.mxu0 0
        %2528 = vmatprep.subr.bf16.mxu0 0
        %2529 = vmatpush2.bf16.msra.mxu0 0
        %2530 = vmatprep.subr.bf16.mxu0 0
        %2531 = vmatpush2.bf16.msra.mxu0 0
        %2532 = vmatprep.subr.bf16.mxu0 0
        %2533 = vmatpush2.bf16.msra.mxu0 0
        %2534 = vmatprep.subr.bf16.mxu0 0
        %2535 = vmatpush2.bf16.msra.mxu0 0
        %2536 = vmatprep.subr.bf16.mxu0 0
        %2537 = vmatpush2.bf16.msra.mxu0 0
        %2538 = vmatprep.subr.bf16.mxu0 0
        %2539 = vmatpush2.bf16.msra.mxu0 0
        %2540 = vmatprep.mubr.bf16.mxu0 0
        %2541 = vmatmul.mubr.bf16.gmra.mxu0 %v2503
        %v2542 = vpop.f32.mrf.mxu0
        %v2543 = vadd.f32 0.0, %v2542
        %v2544 = vpop.f32.mrf.mxu0
        %v2545 = vpop.f32.mrf.mxu0
        %v2546 = vpop.f32.mrf.mxu0
        %2547 = vdwg.mxu0
        %2548 = vrot.lane.b32.xlu0 %v2155, 112
        %v2549 = vpop.permute.xlu0 %2548
        %v2551 = vsel %vm1025, %v2403, 0
        %v2554 = vsel %vm1276, %v2549, 0
        %2556 = vmatprep.subr.bf16.mxu0 0
        %2557 = vmatpush1.bf16.msra.mxu0 0
        %2558 = vmatprep.subr.bf16.mxu0 0
        %2559 = vmatpush1.bf16.msra.mxu0 0
        %2560 = vmatprep.subr.bf16.mxu0 0
        %2561 = vmatpush1.bf16.msra.mxu0 0
        %2562 = vmatprep.subr.bf16.mxu0 0
        %2563 = vmatpush1.bf16.msra.mxu0 0
        %2564 = vmatprep.subr.bf16.mxu0 0
        %2565 = vmatpush1.bf16.msra.mxu0 0
        %2566 = vmatprep.subr.bf16.mxu0 0
        %2567 = vmatpush1.bf16.msra.mxu0 0
        %2568 = vmatprep.subr.bf16.mxu0 0
        %2569 = vmatpush1.bf16.msra.mxu0 0
        %2570 = vmatprep.subr.bf16.mxu0 0
        %2571 = vmatpush1.bf16.msra.mxu0 %v2554
        %2572 = vmatprep.subr.bf16.mxu0 0
        %2573 = vmatpush2.bf16.msra.mxu0 0
        %2574 = vmatprep.subr.bf16.mxu0 0
        %2575 = vmatpush2.bf16.msra.mxu0 0
        %2576 = vmatprep.subr.bf16.mxu0 0
        %2577 = vmatpush2.bf16.msra.mxu0 0
        %2578 = vmatprep.subr.bf16.mxu0 0
        %2579 = vmatpush2.bf16.msra.mxu0 0
        %2580 = vmatprep.subr.bf16.mxu0 0
        %2581 = vmatpush2.bf16.msra.mxu0 0
        %2582 = vmatprep.subr.bf16.mxu0 0
        %2583 = vmatpush2.bf16.msra.mxu0 0
        %2584 = vmatprep.subr.bf16.mxu0 0
        %2585 = vmatpush2.bf16.msra.mxu0 0
        %2586 = vmatprep.subr.bf16.mxu0 0
        %2587 = vmatpush2.bf16.msra.mxu0 0
        %2588 = vmatprep.mubr.bf16.mxu0 0
        %2589 = vmatmul.mubr.bf16.gmra.mxu0 %v2551
        %v2590 = vpop.f32.mrf.mxu0
        %v2591 = vadd.f32 0.0, %v2590
        %v2592 = vpop.f32.mrf.mxu0
        %v2593 = vpop.f32.mrf.mxu0
        %v2594 = vpop.f32.mrf.mxu0
        %2595 = vdwg.mxu0
        %v2596 = vpack.c.bf16 %v2447, %v2447
        %v2597 = vpack.c.bf16 %v2495, %v2495
        %v2598 = vpack.c.bf16 %v2543, %v2543
        %v2599 = vpack.c.bf16 %v2591, %v2591
        %s2600 = scalar_lea.vmem %s12, 16
        %v2601 = vld [vmem:[%s2600] sm:$0xf]
        %v2602 = vld [vmem:[%s2600 + $0x4] sm:$0xf]
        %v2603 = vld [vmem:[%s2600 + $0x8] sm:$0xf]
        %v2604 = vld [vmem:[%s2600 + $0xc] sm:$0xf]
        %v2606 = vsel %vm1025, %v2596, 0
        %v2609 = vsel %vm1276, %v2601, 0
        %2611 = vmatprep.subr.bf16.mxu0 0
        %2612 = vmatpush1.bf16.msra.mxu0 0
        %2613 = vmatprep.subr.bf16.mxu0 0
        %2614 = vmatpush1.bf16.msra.mxu0 0
        %2615 = vmatprep.subr.bf16.mxu0 0
        %2616 = vmatpush1.bf16.msra.mxu0 0
        %2617 = vmatprep.subr.bf16.mxu0 0
        %2618 = vmatpush1.bf16.msra.mxu0 0
        %2619 = vmatprep.subr.bf16.mxu0 0
        %2620 = vmatpush1.bf16.msra.mxu0 0
        %2621 = vmatprep.subr.bf16.mxu0 0
        %2622 = vmatpush1.bf16.msra.mxu0 0
        %2623 = vmatprep.subr.bf16.mxu0 0
        %2624 = vmatpush1.bf16.msra.mxu0 0
        %2625 = vmatprep.subr.bf16.mxu0 0
        %2626 = vmatpush1.bf16.msra.mxu0 %v2609
        %2627 = vmatprep.subr.bf16.mxu0 0
        %2628 = vmatpush2.bf16.msra.mxu0 0
        %2629 = vmatprep.subr.bf16.mxu0 0
        %2630 = vmatpush2.bf16.msra.mxu0 0
        %2631 = vmatprep.subr.bf16.mxu0 0
        %2632 = vmatpush2.bf16.msra.mxu0 0
        %2633 = vmatprep.subr.bf16.mxu0 0
        %2634 = vmatpush2.bf16.msra.mxu0 0
        %2635 = vmatprep.subr.bf16.mxu0 0
        %2636 = vmatpush2.bf16.msra.mxu0 0
        %2637 = vmatprep.subr.bf16.mxu0 0
        %2638 = vmatpush2.bf16.msra.mxu0 0
        %2639 = vmatprep.subr.bf16.mxu0 0
        %2640 = vmatpush2.bf16.msra.mxu0 0
        %2641 = vmatprep.subr.bf16.mxu0 0
        %2642 = vmatpush2.bf16.msra.mxu0 0
        %2643 = vmatprep.mubr.bf16.mxu0 0
        %2644 = vmatmul.mubr.bf16.gmra.mxu0 %v2606
        %v2645 = vpop.f32.mrf.mxu0
        %v2646 = vadd.f32 0.0, %v2645
        %v2647 = vpop.f32.mrf.mxu0
        %v2648 = vpop.f32.mrf.mxu0
        %v2649 = vpop.f32.mrf.mxu0
        %2650 = vdwg.mxu0
        %v2652 = vsel %vm1025, %v2597, 0
        %v2655 = vsel %vm1276, %v2602, 0
        %2657 = vmatprep.subr.bf16.mxu0 0
        %2658 = vmatpush1.bf16.msra.mxu0 0
        %2659 = vmatprep.subr.bf16.mxu0 0
        %2660 = vmatpush1.bf16.msra.mxu0 0
        %2661 = vmatprep.subr.bf16.mxu0 0
        %2662 = vmatpush1.bf16.msra.mxu0 0
        %2663 = vmatprep.subr.bf16.mxu0 0
        %2664 = vmatpush1.bf16.msra.mxu0 0
        %2665 = vmatprep.subr.bf16.mxu0 0
        %2666 = vmatpush1.bf16.msra.mxu0 0
        %2667 = vmatprep.subr.bf16.mxu0 0
        %2668 = vmatpush1.bf16.msra.mxu0 0
        %2669 = vmatprep.subr.bf16.mxu0 0
        %2670 = vmatpush1.bf16.msra.mxu0 0
        %2671 = vmatprep.subr.bf16.mxu0 0
        %2672 = vmatpush1.bf16.msra.mxu0 %v2655
        %2673 = vmatprep.subr.bf16.mxu0 0
        %2674 = vmatpush2.bf16.msra.mxu0 0
        %2675 = vmatprep.subr.bf16.mxu0 0
        %2676 = vmatpush2.bf16.msra.mxu0 0
        %2677 = vmatprep.subr.bf16.mxu0 0
        %2678 = vmatpush2.bf16.msra.mxu0 0
        %2679 = vmatprep.subr.bf16.mxu0 0
        %2680 = vmatpush2.bf16.msra.mxu0 0
        %2681 = vmatprep.subr.bf16.mxu0 0
        %2682 = vmatpush2.bf16.msra.mxu0 0
        %2683 = vmatprep.subr.bf16.mxu0 0
        %2684 = vmatpush2.bf16.msra.mxu0 0
        %2685 = vmatprep.subr.bf16.mxu0 0
        %2686 = vmatpush2.bf16.msra.mxu0 0
        %2687 = vmatprep.subr.bf16.mxu0 0
        %2688 = vmatpush2.bf16.msra.mxu0 0
        %2689 = vmatprep.mubr.bf16.mxu0 0
        %2690 = vmatmul.mubr.bf16.gmra.mxu0 %v2652
        %v2691 = vpop.f32.mrf.mxu0
        %v2692 = vadd.f32 0.0, %v2691
        %v2693 = vpop.f32.mrf.mxu0
        %v2694 = vpop.f32.mrf.mxu0
        %v2695 = vpop.f32.mrf.mxu0
        %2696 = vdwg.mxu0
        %v2698 = vsel %vm1025, %v2598, 0
        %v2701 = vsel %vm1276, %v2603, 0
        %2703 = vmatprep.subr.bf16.mxu0 0
        %2704 = vmatpush1.bf16.msra.mxu0 0
        %2705 = vmatprep.subr.bf16.mxu0 0
        %2706 = vmatpush1.bf16.msra.mxu0 0
        %2707 = vmatprep.subr.bf16.mxu0 0
        %2708 = vmatpush1.bf16.msra.mxu0 0
        %2709 = vmatprep.subr.bf16.mxu0 0
        %2710 = vmatpush1.bf16.msra.mxu0 0
        %2711 = vmatprep.subr.bf16.mxu0 0
        %2712 = vmatpush1.bf16.msra.mxu0 0
        %2713 = vmatprep.subr.bf16.mxu0 0
        %2714 = vmatpush1.bf16.msra.mxu0 0
        %2715 = vmatprep.subr.bf16.mxu0 0
        %2716 = vmatpush1.bf16.msra.mxu0 0
        %2717 = vmatprep.subr.bf16.mxu0 0
        %2718 = vmatpush1.bf16.msra.mxu0 %v2701
        %2719 = vmatprep.subr.bf16.mxu0 0
        %2720 = vmatpush2.bf16.msra.mxu0 0
        %2721 = vmatprep.subr.bf16.mxu0 0
        %2722 = vmatpush2.bf16.msra.mxu0 0
        %2723 = vmatprep.subr.bf16.mxu0 0
        %2724 = vmatpush2.bf16.msra.mxu0 0
        %2725 = vmatprep.subr.bf16.mxu0 0
        %2726 = vmatpush2.bf16.msra.mxu0 0
        %2727 = vmatprep.subr.bf16.mxu0 0
        %2728 = vmatpush2.bf16.msra.mxu0 0
        %2729 = vmatprep.subr.bf16.mxu0 0
        %2730 = vmatpush2.bf16.msra.mxu0 0
        %2731 = vmatprep.subr.bf16.mxu0 0
        %2732 = vmatpush2.bf16.msra.mxu0 0
        %2733 = vmatprep.subr.bf16.mxu0 0
        %2734 = vmatpush2.bf16.msra.mxu0 0
        %2735 = vmatprep.mubr.bf16.mxu0 0
        %2736 = vmatmul.mubr.bf16.gmra.mxu0 %v2698
        %v2737 = vpop.f32.mrf.mxu0
        %v2738 = vadd.f32 0.0, %v2737
        %v2739 = vpop.f32.mrf.mxu0
        %v2740 = vpop.f32.mrf.mxu0
        %v2741 = vpop.f32.mrf.mxu0
        %2742 = vdwg.mxu0
        %v2744 = vsel %vm1025, %v2599, 0
        %v2747 = vsel %vm1276, %v2604, 0
        %2749 = vmatprep.subr.bf16.mxu0 0
        %2750 = vmatpush1.bf16.msra.mxu0 0
        %2751 = vmatprep.subr.bf16.mxu0 0
        %2752 = vmatpush1.bf16.msra.mxu0 0
        %2753 = vmatprep.subr.bf16.mxu0 0
        %2754 = vmatpush1.bf16.msra.mxu0 0
        %2755 = vmatprep.subr.bf16.mxu0 0
        %2756 = vmatpush1.bf16.msra.mxu0 0
        %2757 = vmatprep.subr.bf16.mxu0 0
        %2758 = vmatpush1.bf16.msra.mxu0 0
        %2759 = vmatprep.subr.bf16.mxu0 0
        %2760 = vmatpush1.bf16.msra.mxu0 0
        %2761 = vmatprep.subr.bf16.mxu0 0
        %2762 = vmatpush1.bf16.msra.mxu0 0
        %2763 = vmatprep.subr.bf16.mxu0 0
        %2764 = vmatpush1.bf16.msra.mxu0 %v2747
        %2765 = vmatprep.subr.bf16.mxu0 0
        %2766 = vmatpush2.bf16.msra.mxu0 0
        %2767 = vmatprep.subr.bf16.mxu0 0
        %2768 = vmatpush2.bf16.msra.mxu0 0
        %2769 = vmatprep.subr.bf16.mxu0 0
        %2770 = vmatpush2.bf16.msra.mxu0 0
        %2771 = vmatprep.subr.bf16.mxu0 0
        %2772 = vmatpush2.bf16.msra.mxu0 0
        %2773 = vmatprep.subr.bf16.mxu0 0
        %2774 = vmatpush2.bf16.msra.mxu0 0
        %2775 = vmatprep.subr.bf16.mxu0 0
        %2776 = vmatpush2.bf16.msra.mxu0 0
        %2777 = vmatprep.subr.bf16.mxu0 0
        %2778 = vmatpush2.bf16.msra.mxu0 0
        %2779 = vmatprep.subr.bf16.mxu0 0
        %2780 = vmatpush2.bf16.msra.mxu0 0
        %2781 = vmatprep.mubr.bf16.mxu0 0
        %2782 = vmatmul.mubr.bf16.gmra.mxu0 %v2744
        %v2783 = vpop.f32.mrf.mxu0
        %v2784 = vadd.f32 0.0, %v2783
        %v2785 = vpop.f32.mrf.mxu0
        %v2786 = vpop.f32.mrf.mxu0
        %v2787 = vpop.f32.mrf.mxu0
        %2788 = vdwg.mxu0
        %v2789 = vsel %vm667, %v2646, 0.0
        %v2790 = vsel %vm667, %v2692, 0.0
        %v2791 = vadd.f32 %v2789, %v2790
        %v2792 = vsel %vm667, %v2738, 0.0
        %v2793 = vadd.f32 %v2791, %v2792
        %v2794 = vsel %vm667, %v2784, 0.0
        %v2795 = vadd.f32 %v2793, %v2794
        %s2796 = scalar_lea.vmem %s13, 1
        %v2797 = vld [vmem:[%s2796] sm:$0x1]
        %v2799 = vlaneseq
        %v2800 = vshrl.u32 %v2799, 7
        %v2801 = vsub.s32 0, %v2800
        %v2802 = vrot.slane %v2797, %v2801
        %v2804 = vadd.f32 %v2795, %v2802
        %v2805 = vadd.f32 %v2804, %v1859
        %s2806 = scalar_lea.vmem %s8, 1
        %v2807 = vld [vmem:[%s2806] sm:$0x1]
        %s2808 = scalar_lea.vmem %s9, 1
        %v2809 = vld [vmem:[%s2808] sm:$0x1]
        %v2810 = vsel %vm667, %v2805, 0.0
        %2811 = vadd.xlane.f32.xlu0 %v2810
        %v2812 = vpop.xlane.xlu0 %2811
        %v2813 = vmul.f32 %v2812, %v671
        %v2814 = vmul.f32 %v2805, %v2805
        %v2815 = vsel %vm667, %v2814, 0.0
        %2816 = vadd.xlane.f32.xlu0 %v2815
        %v2817 = vpop.xlane.xlu0 %2816
        %v2818 = vmul.f32 %v2817, %v671
        %v2819 = vmul.f32 %v2813, %v2813
        %v2820 = vsub.f32 %v2818, %v2819
        %v2821 = vsub.f32 %v2805, %v2813
        %v2822 = vadd.f32 %v2820, 1e-05
        %v2823 = vrsqrt.pop %v2822
        %v2824 = vmul.f32 %v2821, %v2823
        %v2826 = vlaneseq
        %v2827 = vshrl.u32 %v2826, 7
        %v2828 = vsub.s32 0, %v2827
        %v2829 = vrot.slane %v2807, %v2828
        %v2831 = vmul.f32 %v2824, %v2829
        %v2833 = vlaneseq
        %v2834 = vshrl.u32 %v2833, 7
        %v2835 = vsub.s32 0, %v2834
        %v2836 = vrot.slane %v2809, %v2835
        %v2838 = vadd.f32 %v2831, %v2836
        %v2839 = vpack.c.bf16 %v2838, %v2838
        %s2840 = scalar_lea.vmem %s14, 16
        %v2841 = vld [vmem:[%s2840] sm:$0xf]
        %v2842 = vld [vmem:[%s2840 + $0x4] sm:$0xf]
        %v2843 = vld [vmem:[%s2840 + $0x8] sm:$0xf]
        %v2844 = vld [vmem:[%s2840 + $0xc] sm:$0xf]
        %s2845 = scalar_lea.vmem %s15, 1
        %v2846 = vld [vmem:[%s2845] sm:$0x1]
        %v2848 = vlaneseq
        %v2849 = vshrl.u32 %v2848, 7
        %v2850 = vsub.s32 0, %v2849
        %v2851 = vrot.slane %v2846, %v2850
        %v2857 = vunpack.c.l.b16 %v2841
        %v2858 = vunpack.c.l.b16 %v2842
        %v2859 = vunpack.c.l.b16 %v2843
        %v2860 = vunpack.c.l.b16 %v2844
        %v2861 = vpack.c.b16 %v2858, %v2857
        %v2862 = vpack.c.b16 %v2860, %v2859
        %v2866 = vsel %vm667, %v2839, 0
        %2868 = vmatprep.subr.bf16.mxu0 0
        %2869 = vmatpush1.bf16.msra.mxu0 0
        %2870 = vmatprep.subr.bf16.mxu0 0
        %2871 = vmatpush1.bf16.msra.mxu0 0
        %2872 = vmatprep.subr.bf16.mxu0 0
        %2873 = vmatpush1.bf16.msra.mxu0 0
        %2874 = vmatprep.subr.bf16.mxu0 0
        %2875 = vmatpush1.bf16.msra.mxu0 0
        %2876 = vmatprep.subr.bf16.mxu0 0
        %2877 = vmatpush1.bf16.msra.mxu0 0
        %2878 = vmatprep.subr.bf16.mxu0 0
        %2879 = vmatpush1.bf16.msra.mxu0 0
        %2880 = vmatprep.subr.bf16.mxu0 0
        %2881 = vmatpush1.bf16.msra.mxu0 %v2862
        %2882 = vmatprep.subr.bf16.mxu0 0
        %2883 = vmatpush1.bf16.msra.mxu0 %v2861
        %2884 = vmatprep.subr.bf16.mxu0 0
        %2885 = vmatpush2.bf16.msra.mxu0 0
        %2886 = vmatprep.subr.bf16.mxu0 0
        %2887 = vmatpush2.bf16.msra.mxu0 0
        %2888 = vmatprep.subr.bf16.mxu0 0
        %2889 = vmatpush2.bf16.msra.mxu0 0
        %2890 = vmatprep.subr.bf16.mxu0 0
        %2891 = vmatpush2.bf16.msra.mxu0 0
        %2892 = vmatprep.subr.bf16.mxu0 0
        %2893 = vmatpush2.bf16.msra.mxu0 0
        %2894 = vmatprep.subr.bf16.mxu0 0
        %2895 = vmatpush2.bf16.msra.mxu0 0
        %2896 = vmatprep.subr.bf16.mxu0 0
        %2897 = vmatpush2.bf16.msra.mxu0 0
        %2898 = vmatprep.subr.bf16.mxu0 0
        %2899 = vmatpush2.bf16.msra.mxu0 0
        %2900 = vmatprep.mubr.bf16.mxu0 0
        %2901 = vmatmul.mubr.bf16.gmra.mxu0 %v2866
        %v2902 = vpop.f32.mrf.mxu0
        %v2903 = vadd.f32 %v2851, %v2902
        %v2904 = vpop.f32.mrf.mxu0
        %v2905 = vpop.f32.mrf.mxu0
        %v2906 = vpop.f32.mrf.mxu0
        %2907 = vdwg.mxu0
        %v2908 = vmul.f32 %v2903, 0.5
        %v2909 = vmul.f32 %v2903, 0.70710677
        %v2910 = verf.f32.pop %v2909
        %v2911 = vadd.f32 %v2910, 1.0
        %v2912 = vmul.f32 %v2908, %v2911
        %v2913 = vpack.c.bf16 %v2912, %v2912
        %s2914 = scalar_lea.vmem %s16, 32
        %v2915 = vld [vmem:[%s2914] sm:$0xf]
        %v2916 = vld [vmem:[%s2914 + $0x4] sm:$0xf]
        %v2917 = vld [vmem:[%s2914 + $0x8] sm:$0xf]
        %v2918 = vld [vmem:[%s2914 + $0xc] sm:$0xf]
        %v2919 = vld [vmem:[%s2914 + $0x10] sm:$0xf]
        %v2920 = vld [vmem:[%s2914 + $0x14] sm:$0xf]
        %v2921 = vld [vmem:[%s2914 + $0x18] sm:$0xf]
        %v2922 = vld [vmem:[%s2914 + $0x1c] sm:$0xf]
        %s2923 = scalar_lea.vmem %s17, 1
        %v2924 = vld [vmem:[%s2923] sm:$0x1]
        %v2926 = vlaneseq
        %v2927 = vshrl.u32 %v2926, 7
        %v2928 = vsub.s32 0, %v2927
        %v2929 = vrot.slane %v2924, %v2928
        %v2939 = vunpack.c.l.b16 %v2915
        %v2940 = vunpack.c.l.b16 %v2916
        %v2941 = vunpack.c.l.b16 %v2917
        %v2942 = vunpack.c.l.b16 %v2918
        %v2943 = vunpack.c.l.b16 %v2919
        %v2944 = vunpack.c.l.b16 %v2920
        %v2945 = vunpack.c.l.b16 %v2921
        %v2946 = vunpack.c.l.b16 %v2922
        %v2947 = vpack.c.b16 %v2940, %v2939
        %v2948 = vpack.c.b16 %v2942, %v2941
        %v2949 = vpack.c.b16 %v2944, %v2943
        %v2950 = vpack.c.b16 %v2946, %v2945
        %v2956 = vsel %vm1815, %v2913, 0
        %2958 = vmatprep.subr.bf16.mxu0 0
        %2959 = vmatpush1.bf16.msra.mxu0 0
        %2960 = vmatprep.subr.bf16.mxu0 0
        %2961 = vmatpush1.bf16.msra.mxu0 0
        %2962 = vmatprep.subr.bf16.mxu0 0
        %2963 = vmatpush1.bf16.msra.mxu0 0
        %2964 = vmatprep.subr.bf16.mxu0 0
        %2965 = vmatpush1.bf16.msra.mxu0 0
        %2966 = vmatprep.subr.bf16.mxu0 0
        %2967 = vmatpush1.bf16.msra.mxu0 %v2950
        %2968 = vmatprep.subr.bf16.mxu0 0
        %2969 = vmatpush1.bf16.msra.mxu0 %v2949
        %2970 = vmatprep.subr.bf16.mxu0 0
        %2971 = vmatpush1.bf16.msra.mxu0 %v2948
        %2972 = vmatprep.subr.bf16.mxu0 0
        %2973 = vmatpush1.bf16.msra.mxu0 %v2947
        %2974 = vmatprep.subr.bf16.mxu0 0
        %2975 = vmatpush2.bf16.msra.mxu0 0
        %2976 = vmatprep.subr.bf16.mxu0 0
        %2977 = vmatpush2.bf16.msra.mxu0 0
        %2978 = vmatprep.subr.bf16.mxu0 0
        %2979 = vmatpush2.bf16.msra.mxu0 0
        %2980 = vmatprep.subr.bf16.mxu0 0
        %2981 = vmatpush2.bf16.msra.mxu0 0
        %2982 = vmatprep.subr.bf16.mxu0 0
        %2983 = vmatpush2.bf16.msra.mxu0 0
        %2984 = vmatprep.subr.bf16.mxu0 0
        %2985 = vmatpush2.bf16.msra.mxu0 0
        %2986 = vmatprep.subr.bf16.mxu0 0
        %2987 = vmatpush2.bf16.msra.mxu0 0
        %2988 = vmatprep.subr.bf16.mxu0 0
        %2989 = vmatpush2.bf16.msra.mxu0 0
        %2990 = vmatprep.mubr.bf16.mxu0 0
        %2991 = vmatmul.mubr.bf16.gmra.mxu0 %v2956
        %v2992 = vpop.f32.mrf.mxu0
        %v2993 = vadd.f32 %v2929, %v2992
        %v2994 = vpop.f32.mrf.mxu0
        %v2995 = vpop.f32.mrf.mxu0
        %v2996 = vpop.f32.mrf.mxu0
        %2997 = vdwg.mxu0
        %v2998 = vadd.f32 %v2993, %v2805
        %s2999 = scalar_lea.vmem %s658, 8 [#allocation4]
        %3000 = vst.msk [vmem:[%s2999] sm:$0xff] %vm667, %v2998
        %v3001 = vld [vmem:[%s18] sm:$0x1]
        %v3002 = vld [vmem:[%s19] sm:$0x1]
        %v3003 = vsel %vm667, %v2998, 0.0
        %3004 = vadd.xlane.f32.xlu0 %v3003
        %v3005 = vpop.xlane.xlu0 %3004
        %v3006 = vmul.f32 %v3005, %v671
        %v3007 = vmul.f32 %v2998, %v2998
        %v3008 = vsel %vm667, %v3007, 0.0
        %3009 = vadd.xlane.f32.xlu0 %v3008
        %v3010 = vpop.xlane.xlu0 %3009
        %v3011 = vmul.f32 %v3010, %v671
        %v3012 = vmul.f32 %v3006, %v3006
        %v3013 = vsub.f32 %v3011, %v3012
        %v3014 = vsub.f32 %v2998, %v3006
        %v3015 = vadd.f32 %v3013, 1e-05
        %v3016 = vrsqrt.pop %v3015
        %v3017 = vmul.f32 %v3014, %v3016
        %v3019 = vlaneseq
        %v3020 = vshrl.u32 %v3019, 7
        %v3021 = vsub.s32 0, %v3020
        %v3022 = vrot.slane %v3001, %v3021
        %v3024 = vmul.f32 %v3017, %v3022
        %v3026 = vlaneseq
        %v3027 = vshrl.u32 %v3026, 7
        %v3028 = vsub.s32 0, %v3027
        %v3029 = vrot.slane %v3002, %v3028
        %v3031 = vadd.f32 %v3024, %v3029
        %3032 = vst.msk [vmem:[%s651] sm:$0xff] %vm667, %v3031
        %s3033 = sand.u32 %s472, 1
        %s3034 = scalar_lea.sflag [#allocation3], %s3033
        %s3035 = sand.u32 %s472, 1
        %s3036 = smul.addr %s3035, 8
        %s3037 = scalar_lea.vmem [#allocation2], %s3036
        %s3038 = sand.u32 %s498, 1
        %s3039 = scalar_lea.sflag [#allocation5], %s3038
        %s3040 = sand.u32 %s498, 1
        %s3041 = smul.addr %s3040, 16
        %s3042 = scalar_lea.vmem [#allocation4], %s3041
        // Predicated region
        $region101: #{gpt2_forward.1} parent=99 // pred_check
          %p3043 = pneg %p482
        $region102: #{gpt2_forward.1} parent=99 // pred_check_branch
          %3045 = sbr.rel (%p3043) target = $region104
        $region103: #{gpt2_forward.1} parent=99 // pred_region
          %s3047 = ssub.s32 128, 128
          %3048 = vsyncadd %s3034, %s3047
          %s3049 = smul.addr %s39, 128
          %s3050 = scalar_lea.hbm %s20, %s3049
          %s3052 = sshll.u32 %s3037, 4
          %s3053 = int_to_ptr.vmem [resolvable:$true] %s3052
          %3055 = dma.vmem_to_hbm [thread:$0]  %s3053, 128, %s3050, %s3034
        $region104: #{gpt2_forward.1} parent=99 // pred_fallthru
          _
        // Predicated region
        $region105: #{gpt2_forward.1} parent=99 // pred_check
          %p3056 = pneg %p508
        $region106: #{gpt2_forward.1} parent=99 // pred_check_branch
          %3058 = sbr.rel (%p3056) target = $region108
        $region107: #{gpt2_forward.1} parent=99 // pred_region
          %s3060 = ssub.s32 256, 256
          %3061 = vsyncadd %s3039, %s3060
          %s3062 = smul.addr %s39, 128
          %s3063 = scalar_lea.hbm %s21, %s3062
          %s3064 = sshll.u32 %s3042, 4
          %s3065 = int_to_ptr.vmem [resolvable:$true] %s3064
          %3070 = dma.vmem_to_hbm [thread:$0]  %s3065, 256, %s3063, %s3039, 128, 256, 8
        $region108: #{gpt2_forward.1} parent=99 // pred_fallthru
          _
      $region100: #{gpt2_forward.1} parent=5 // pred_fallthru
        _
      %p3071 = scmp.le.s32.totalorder 2, %s34
      // Predicated region
      $region109: #{gpt2_forward.1} parent=5 // pred_check
        %p3072 = pneg %p3071
      $region110: #{gpt2_forward.1} parent=5 // pred_check_branch
        %3074 = sbr.rel (%p3072) target = $region112
      $region111: #{gpt2_forward.1} parent=5 // pred_region
        %s3075 = ssub.s32 %s34, 2
        // Predicated region
        $region113: #{gpt2_forward.1} parent=111 // pred_check
          %p3076 = pneg %p488
        $region114: #{gpt2_forward.1} parent=111 // pred_check_branch
          %3078 = sbr.rel (%p3076) target = $region116
        $region115: #{gpt2_forward.1} parent=111 // pred_region
          %s3079 = sand.u32 %s473, 1
          %s3080 = scalar_lea.sflag [#allocation3], %s3079
          %s3081 = sand.u32 %s473, 1
          %s3082 = smul.addr %s3081, 8
          %s3083 = scalar_lea.vmem [#allocation2], %s3082
          %3084 = dma.done %s3080, 128
        $region116: #{gpt2_forward.1} parent=111 // pred_fallthru
          _
        // Predicated region
        $region117: #{gpt2_forward.1} parent=111 // pred_check
          %p3085 = pneg %p514
        $region118: #{gpt2_forward.1} parent=111 // pred_check_branch
          %3087 = sbr.rel (%p3085) target = $region120
        $region119: #{gpt2_forward.1} parent=111 // pred_region
          %s3088 = sand.u32 %s499, 1
          %s3089 = scalar_lea.sflag [#allocation5], %s3088
          %s3090 = sand.u32 %s499, 1
          %s3091 = smul.addr %s3090, 16
          %s3092 = scalar_lea.vmem [#allocation4], %s3091
          %3093 = dma.done %s3089, 256
        $region120: #{gpt2_forward.1} parent=111 // pred_fallthru
          _
      $region112: #{gpt2_forward.1} parent=5 // pred_fallthru
        _
    $region6: #{gpt2_forward.1} parent=1 // loop_footer
      %s38 = sadd.s32 1, %s34
    $region7: #{gpt2_forward.1} parent=1 // loop_footer_branch
      %33 = sbr.rel target = $region3
    $region8: #{gpt2_forward.1} parent=1 // loop_exit
      _
    %3094 = vsyncpa [#allocation3], 1
    %s3095 = scalar_lea.sflag [#allocation3], 1
    %3096 = vsyncpa %s3095, 1
    %3097 = vsyncpa [#allocation5], 1
    %s3098 = scalar_lea.sflag [#allocation5], 1
    %3099 = vsyncpa %s3098, 1

</llo_original>
